<compile_context>
chip_gen: v5e
topology: v5e:2x2
jax: 0.10.0
libtpu: 0.0.40
codegen_flags: <defaults>
</compile_context>

<pallas_src>
import jax
import jax.numpy as jnp
from jax import lax
from jax.experimental import pallas as pl
from jax.experimental.pallas import tpu as pltpu


# ----------------------------------------------------------------------------
# helpers
# ----------------------------------------------------------------------------
def _round_up(x, m):
    return ((x + m - 1) // m) * m


def _vmem_limit_bytes(est):
    # explicit scoped-VMEM limit (don't rely on the 16/32 MiB defaults)
    return int(min(64 * 1024 * 1024, max(32 * 1024 * 1024, int(1.5 * est))))


def _choose_time_chunk(T, Bp, din_max, H, budget_bytes=6 * 1024 * 1024):
    """Pick the time-chunk length so the per-chunk VMEM footprint (double-
    buffered in/out blocks + f32 gate scratch, both directions) stays within
    `budget_bytes`."""
    per_t = Bp * (2 * 2 * din_max * 2     # input chunks: 2 dirs x 2 buffers, bf16
                  + 2 * 2 * H * 2         # output chunks: 2 dirs x 2 buffers, bf16
                  + 2 * 4 * H * 4         # gate scratch:  2 dirs x 4H, f32
                  + 2 * 2 * 4)            # mask chunks
    return int(max(1, min(T, budget_bytes // per_t)))


# ----------------------------------------------------------------------------
# Bidirectional LSTM layer kernel: time-chunked grid, fwd/bwd interleaved
# ----------------------------------------------------------------------------
def _make_bilstm_kernel(P, Tc, Bp, H):
    # unroll the (serial) time loop, capped when the per-step slab is large
    if Tc <= 8:
        unroll = Tc
    elif Bp * 4 * H <= 4096:
        unroll = 4
    else:
        unroll = 2

    def nonlin(gates):
        # gates: (Bp, 4H) f32, PyTorch gate order [i, f, g, o]
        if H % 128 == 0:
            # lane-aligned slices -> only ~4H lanes of EUP work per step
            if_s = jax.nn.sigmoid(gates[:, 0:2 * H])
            g_t = jnp.tanh(gates[:, 2 * H:3 * H])
            o_s = jax.nn.sigmoid(gates[:, 3 * H:4 * H])
            return if_s[:, 0:H], if_s[:, H:2 * H], g_t, o_s
        # 4H <= 128-ish: two full-vreg EUP passes beat lane-unaligned slicing
        sig = jax.nn.sigmoid(gates)
        th = jnp.tanh(gates)
        return sig[:, 0:H], sig[:, H:2 * H], th[:, 2 * H:3 * H], sig[:, 3 * H:4 * H]

    def kernel(*refs):
        xf = refs[0:P]            # forward-chunk input parts, each (Tc*Bp, Dp) bf16
        xb = refs[P:2 * P]        # backward-chunk input parts
        (mf_ref, mb_ref, wih_ref, whh_ref, b_ref,
         of_ref, ob_ref,
         gf_sc, gb_sc, hf_sc, cf_sc, hb_sc, cb_sc) = refs[2 * P:]

        @pl.when(pl.program_id(0) == 0)
        def _():
            hf_sc[...] = jnp.zeros_like(hf_sc)
            cf_sc[...] = jnp.zeros_like(cf_sc)
            hb_sc[...] = jnp.zeros_like(hb_sc)
            cb_sc[...] = jnp.zeros_like(cb_sc)

        # ---- (1) hoisted input projection for this chunk (one MXU pass / dir) ----
        proj_f = jnp.dot(xf[0][...], wih_ref[0, 0], preferred_element_type=jnp.float32)
        proj_b = jnp.dot(xb[0][...], wih_ref[1, 0], preferred_element_type=jnp.float32)
        for p in range(1, P):
            proj_f = proj_f + jnp.dot(xf[p][...], wih_ref[0, p],
                                      preferred_element_type=jnp.float32)
            proj_b = proj_b + jnp.dot(xb[p][...], wih_ref[1, p],
                                      preferred_element_type=jnp.float32)
        gf_sc[...] = proj_f + b_ref[0]        # (Tc*Bp, 4H) f32
        gb_sc[...] = proj_b + b_ref[1]

        whh_f = whh_ref[0]                    # (H, 4H) bf16, hoisted out of the loop
        whh_b = whh_ref[1]

        # ---- (2) interleaved fwd/bwd recurrence over the Tc steps of the chunk ----
        def step(j, carry):
            row_f = pl.multiple_of(j * Bp, 8)
            row_b = pl.multiple_of((Tc - 1 - j) * Bp, 8)

            gates_f = gf_sc[pl.ds(row_f, Bp), :] + jnp.dot(
                hf_sc[...].astype(jnp.bfloat16), whh_f,
                preferred_element_type=jnp.float32)
            gates_b = gb_sc[pl.ds(row_b, Bp), :] + jnp.dot(
                hb_sc[...].astype(jnp.bfloat16), whh_b,
                preferred_element_type=jnp.float32)

            ig_f, fg_f, gg_f, og_f = nonlin(gates_f)
            ig_b, fg_b, gg_b, og_b = nonlin(gates_b)

            cf_new = fg_f * cf_sc[...] + ig_f * gg_f
            hf_new = og_f * jnp.tanh(cf_new)
            cb_new = fg_b * cb_sc[...] + ig_b * gg_b
            hb_new = og_b * jnp.tanh(cb_new)

            mf = mf_ref[pl.ds(row_f, Bp), :]      # (Bp, 1) f32, 1.0 while t < len
            mb = mb_ref[pl.ds(row_b, Bp), :]
            keep_f = mf > 0.0
            keep_b = mb > 0.0

            cf_sc[...] = jnp.where(keep_f, cf_new, cf_sc[...])
            hf_sc[...] = jnp.where(keep_f, hf_new, hf_sc[...])
            cb_sc[...] = jnp.where(keep_b, cb_new, cb_sc[...])
            hb_sc[...] = jnp.where(keep_b, hb_new, hb_sc[...])

            of_ref[pl.ds(row_f, Bp), :] = (hf_new * mf).astype(of_ref.dtype)
            ob_ref[pl.ds(row_b, Bp), :] = (hb_new * mb).astype(ob_ref.dtype)
            return carry

        lax.fori_loop(0, Tc, step, 0, unroll=unroll)

    return kernel


def bilstm_layer(x_parts, mask2d, layer, T_pad, Bp, H, Tc):
    """One bidirectional LSTM layer.

    x_parts: tuple of P arrays, each (T_pad*Bp, Dp) bf16 (raw features for layer
    0, or the previous layer's fwd/bwd halves).  Returns (out_fwd, out_bwd),
    each (T_pad*Bp, H) bf16 -- no concat / relayout between layers."""
    P = len(x_parts)
    Dp = x_parts[0].shape[-1]
    nchunks = T_pad // Tc
    rows_c = Tc * Bp

    fwd_map = lambda i: (i, 0)
    bwd_map = lambda i: (nchunks - 1 - i, 0)

    in_specs = (
        [pl.BlockSpec((rows_c, Dp), fwd_map) for _ in range(P)]
        + [pl.BlockSpec((rows_c, Dp), bwd_map) for _ in range(P)]
        + [pl.BlockSpec((rows_c, 1), fwd_map),
           pl.BlockSpec((rows_c, 1), bwd_map),
           pl.BlockSpec((2, P, Dp, 4 * H), lambda i: (0, 0, 0, 0)),   # W_ih^T
           pl.BlockSpec((2, H, 4 * H), lambda i: (0, 0, 0)),          # W_hh^T
           pl.BlockSpec((2, 1, 4 * H), lambda i: (0, 0, 0))])         # bias
    out_specs = [pl.BlockSpec((rows_c, H), fwd_map),
                 pl.BlockSpec((rows_c, H), bwd_map)]

    # rough resident-VMEM estimate -> explicit scoped-vmem limit
    est = (2 * 2 * P * rows_c * Dp * 2          # input chunks, double-buffered
           + 2 * 2 * rows_c * H * 2             # output chunks, double-buffered
           + 2 * 2 * rows_c * 4                 # mask chunks
           + 2 * rows_c * 4 * H * 4             # f32 gate scratch (both dirs)
           + 4 * Bp * H * 4                     # h/c scratch
           + 2 * (2 * P * Dp * 4 * H + 2 * H * 4 * H + 2 * 4 * H) * 2)  # weights

    out_f, out_b = pl.pallas_call(
        _make_bilstm_kernel(P, Tc, Bp, H),
        grid=(nchunks,),
        in_specs=in_specs,
        out_specs=out_specs,
        out_shape=[jax.ShapeDtypeStruct((T_pad * Bp, H), jnp.bfloat16),
                   jax.ShapeDtypeStruct((T_pad * Bp, H), jnp.bfloat16)],
        scratch_shapes=[
            pltpu.VMEM((rows_c, 4 * H), jnp.float32),   # fwd pre-projected gates
            pltpu.VMEM((rows_c, 4 * H), jnp.float32),   # bwd pre-projected gates
            pltpu.VMEM((Bp, H), jnp.float32),           # h fwd
            pltpu.VMEM((Bp, H), jnp.float32),           # c fwd
            pltpu.VMEM((Bp, H), jnp.float32),           # h bwd
            pltpu.VMEM((Bp, H), jnp.float32),           # c bwd
        ],
        compiler_params=pltpu.CompilerParams(
            dimension_semantics=("arbitrary",),          # state carried across chunks
            vmem_limit_bytes=_vmem_limit_bytes(est)),
    )(*x_parts, *x_parts, mask2d, mask2d,
      layer["wih"], layer["whh_t"], layer["bias"])
    return out_f, out_b


# ----------------------------------------------------------------------------
# Scoring (Linear + log_softmax), lane-dense padded class dim, row-tiled
# ----------------------------------------------------------------------------
def _scoring_kernel(xf_ref, xb_ref, w_ref, b_ref, out_ref):
    # xf/xb: (tile, H) bf16; w: (2, H, Cp) bf16; b: (1, Cp) f32 (padding = -1e30)
    logits = (jnp.dot(xf_ref[...], w_ref[0], preferred_element_type=jnp.float32)
              + jnp.dot(xb_ref[...], w_ref[1], preferred_element_type=jnp.float32)
              + b_ref[...])
    m = jnp.max(logits, axis=-1, keepdims=True)
    s = logits - m
    lse = jnp.log(jnp.sum(jnp.exp(s), axis=-1, keepdims=True))
    out_ref[...] = s - lse                       # lane-dense (tile, Cp) store


def scoring_log_softmax(x_f, x_b, w_p, b_pad):
    rows, H = x_f.shape
    Cp = w_p.shape[-1]
    tile = 256 if rows >= 256 else rows          # rows is a multiple of 8 (Bp-padded)
    rows_p = _round_up(rows, tile)
    if rows_p != rows:                           # never fall back to one giant tile
        x_f = jnp.pad(x_f, ((0, rows_p - rows), (0, 0)))
        x_b = jnp.pad(x_b, ((0, rows_p - rows), (0, 0)))
    est = (2 * 2 * tile * H * 2 + 2 * (2 * H * Cp * 2 + Cp * 4) + 2 * tile * Cp * 4)
    out = pl.pallas_call(
        _scoring_kernel,
        out_shape=jax.ShapeDtypeStruct((rows_p, Cp), jnp.float32),
        grid=(rows_p // tile,),
        in_specs=[pl.BlockSpec((tile, H), lambda i: (i, 0)),
                  pl.BlockSpec((tile, H), lambda i: (i, 0)),
                  pl.BlockSpec((2, H, Cp), lambda i: (0, 0, 0)),
                  pl.BlockSpec((1, Cp), lambda i: (0, 0))],
        out_specs=pl.BlockSpec((tile, Cp), lambda i: (i, 0)),
        compiler_params=pltpu.CompilerParams(
            dimension_semantics=("parallel",),
            vmem_limit_bytes=_vmem_limit_bytes(est)),
    )(x_f, x_b, w_p, b_pad)
    return out[:rows]


# ----------------------------------------------------------------------------
# Parameter init (torch-shaped weights, pre-stacked/padded/bf16 for the kernels)
# ----------------------------------------------------------------------------
def init_params(key, frame_features, num_classes, hidden_size, nlayers):
    H = hidden_size
    params = {"lstm": [], "num_classes": num_classes}
    k = 1.0 / (H ** 0.5)
    for layer in range(nlayers):
        din = frame_features if layer == 0 else 2 * H
        nparts = 1 if layer == 0 else 2
        dpart = din // nparts
        wih_l, whh_l, b_l = [], [], []
        for _ in range(2):  # forward, backward
            key, k1, k2, k3, k4 = jax.random.split(key, 5)
            wih = jax.random.uniform(k1, (4 * H, din), jnp.float32, -k, k)
            whh = jax.random.uniform(k2, (4 * H, H), jnp.float32, -k, k)
            bih = jax.random.uniform(k3, (4 * H,), jnp.float32, -k, k)
            bhh = jax.random.uniform(k4, (4 * H,), jnp.float32, -k, k)
            # W_ih^T rows split into "parts" (fwd / bwd halves of the layer input)
            wih_l.append(wih.T.reshape(nparts, dpart, 4 * H))
            whh_l.append(whh.T)                               # (H, 4H)
            b_l.append((bih + bhh).reshape(1, 4 * H))
        params["lstm"].append({
            "wih": jnp.stack(wih_l).astype(jnp.bfloat16),     # (2, P, Dp, 4H)
            "whh_t": jnp.stack(whh_l).astype(jnp.bfloat16),   # (2, H, 4H)
            "bias": jnp.stack(b_l),                           # (2, 1, 4H) f32
        })
    key, k1, k2 = jax.random.split(key, 3)
    ks = 1.0 / ((2 * H) ** 0.5)
    w = jax.random.uniform(k1, (num_classes, 2 * H), jnp.float32, -ks, ks)
    b = jax.random.uniform(k2, (num_classes,), jnp.float32, -ks, ks)
    cp = max(128, _round_up(num_classes, 128))                # lane-dense class dim
    w_parts = w.T.reshape(2, H, num_classes)                  # [fwd half; bwd half]
    params["scoring_w_p"] = jnp.pad(
        w_parts, ((0, 0), (0, 0), (0, cp - num_classes))).astype(jnp.bfloat16)
    params["scoring_b"] = jnp.pad(
        b.reshape(1, num_classes), ((0, 0), (0, cp - num_classes)),
        constant_values=-1e30)                                # (1, Cp) f32
    return params


# ----------------------------------------------------------------------------
# Forward pass (Pallas)
# ----------------------------------------------------------------------------
def phoneme_predictor_forward(params, seq_batch, input_len, hidden_size):
    # seq_batch: (T_in, B, F) f32; input_len: python list / array of ints
    H = hidden_size
    lens_list = [int(l) for l in input_len]
    T = max(lens_list)                        # pad_packed_sequence max length
    B = seq_batch.shape[1]
    F = seq_batch.shape[2]
    Bp = _round_up(B, 8)                      # sublane-align batch

    Tc = _choose_time_chunk(T, Bp, max(F, 2 * H), H)
    nchunks = -(-T // Tc)
    T_pad = nchunks * Tc

    x = seq_batch[:T]                         # trim wasted timesteps up front
    x = jnp.pad(x, ((0, T_pad - T), (0, Bp - B), (0, 0)))

    # packed-sequence validity mask, precomputed once and reused by every layer
    lens = jnp.asarray(lens_list + [0] * (Bp - B), jnp.int32)
    mask2d = (jnp.arange(T_pad, dtype=jnp.int32)[:, None] < lens[None, :]
              ).astype(jnp.float32).reshape(T_pad * Bp, 1)

    parts = (x.astype(jnp.bfloat16).reshape(T_pad * Bp, F),)   # (P=1, ...)
    for layer in params["lstm"]:
        parts = bilstm_layer(parts, mask2d, layer, T_pad, Bp, H, Tc)  # (fwd, bwd)

    out2d = scoring_log_softmax(parts[0], parts[1],
                                params["scoring_w_p"], params["scoring_b"])
    C = params["num_classes"]
    out = out2d[:, :C].reshape(T_pad, Bp, C)[:T, :B, :]        # (T, B, num_classes)
    out_lens = jnp.asarray(lens_list, jnp.int32)
    return out, out_lens


# ----------------------------------------------------------------------------
# Pure-JAX reference mirroring the kernel math (bf16 matmul inputs, f32 accum)
# ----------------------------------------------------------------------------
def _ref_forward(params, seq_batch, input_len, H):
    lens_list = [int(l) for l in input_len]
    T = max(lens_list)
    seq = seq_batch[:T]
    _, B, _ = seq.shape
    lens = jnp.asarray(lens_list, jnp.int32).reshape(B, 1)
    parts = [seq.astype(jnp.bfloat16)]                         # list of (T, B, Dp)

    for layer in params["lstm"]:
        P = layer["wih"].shape[1]
        outs = []
        for d in range(2):
            wih = layer["wih"][d]       # (P, Dp, 4H) bf16
            whh = layer["whh_t"][d]     # (H, 4H) bf16
            bias = layer["bias"][d]     # (1, 4H) f32
            g_all = jnp.dot(parts[0].reshape(T * B, -1), wih[0],
                            preferred_element_type=jnp.float32)
            for p in range(1, P):
                g_all = g_all + jnp.dot(parts[p].reshape(T * B, -1), wih[p],
                                        preferred_element_type=jnp.float32)
            g_all = (g_all + bias).reshape(T, B, 4 * H)
            h = jnp.zeros((B, H), jnp.float32)
            c = jnp.zeros((B, H), jnp.float32)
            out_t = [None] * T
            order = range(T) if d == 0 else range(T - 1, -1, -1)
            for t in order:
                g = g_all[t] + jnp.dot(h.astype(jnp.bfloat16), whh,
                                       preferred_element_type=jnp.float32)
                sig = jax.nn.sigmoid(g)
                th = jnp.tanh(g)
                i_g = sig[:, :H]; f_g = sig[:, H:2 * H]
                o_g = sig[:, 3 * H:]; g_g = th[:, 2 * H:3 * H]
                c2 = f_g * c + i_g * g_g
                h2 = o_g * jnp.tanh(c2)
                m = t < lens
                h = jnp.where(m, h2, h)
                c = jnp.where(m, c2, c)
                out_t[t] = jnp.where(m, h2, 0.0).astype(jnp.bfloat16)
            outs.append(jnp.stack(out_t))                      # (T, B, H)
        parts = outs

    xf = parts[0].reshape(T * B, H)
    xb = parts[1].reshape(T * B, H)
    wp = params["scoring_w_p"]; bp = params["scoring_b"]
    logits = (jnp.dot(xf, wp[0], preferred_element_type=jnp.float32)
              + jnp.dot(xb, wp[1], preferred_element_type=jnp.float32) + bp)
    m = jnp.max(logits, axis=-1, keepdims=True)
    s = logits - m
    lse = jnp.log(jnp.sum(jnp.exp(s), axis=-1, keepdims=True))
    C = params["num_classes"]
    return (s - lse)[:, :C].reshape(T, B, C)


# ----------------------------------------------------------------------------
if __name__ == "__main__":
    # module hyperparams
    frame_features = 16
    num_classes = 16
    hidden_size = 32
    nlayers = 2

    # small example: (T=8, B=2, F=16), lengths [8, 5]
    T, B = 8, 2
    key = jax.random.PRNGKey(0)
    key, kx = jax.random.split(key)
    seq_batch = jax.random.normal(kx, (T, B, frame_features), jnp.float32)
    input_len = [8, 5]

    params = init_params(key, frame_features, num_classes, hidden_size, nlayers)

    out, out_lens = phoneme_predictor_forward(params, seq_batch, input_len, hidden_size)
    out = jax.block_until_ready(out)
    out_lens = jax.block_until_ready(out_lens)

    assert out.shape == (max(input_len), B, num_classes), out.shape
    assert bool(jnp.all(jnp.isfinite(out)))
    assert bool(jnp.all(out_lens == jnp.asarray(input_len, jnp.int32)))

    ref = jax.block_until_ready(_ref_forward(params, seq_batch, input_len, hidden_size))
    err = float(jnp.max(jnp.abs(out - ref)))
    assert err < 5e-3, err

    print("KERNEL_OK")
</pallas_src>

<mosaic_0001>
module attributes {stable_mosaic.version = 11 : i64} {
  func.func @kernel(%arg0: i32, %arg1: memref<64x16xbf16, #tpu.memory_space<vmem>>, %arg2: memref<64x16xbf16, #tpu.memory_space<vmem>>, %arg3: memref<64x1xf32, #tpu.memory_space<vmem>>, %arg4: memref<64x1xf32, #tpu.memory_space<vmem>>, %arg5: memref<2x1x16x128xbf16, #tpu.memory_space<vmem>>, %arg6: memref<2x32x128xbf16, #tpu.memory_space<vmem>>, %arg7: memref<2x1x128xf32, #tpu.memory_space<vmem>>, %arg8: memref<64x32xbf16, #tpu.memory_space<vmem>>, %arg9: memref<64x32xbf16, #tpu.memory_space<vmem>>, %arg10: memref<64x128xf32, #tpu.memory_space<vmem>>, %arg11: memref<64x128xf32, #tpu.memory_space<vmem>>, %arg12: memref<8x32xf32, #tpu.memory_space<vmem>>, %arg13: memref<8x32xf32, #tpu.memory_space<vmem>>, %arg14: memref<8x32xf32, #tpu.memory_space<vmem>>, %arg15: memref<8x32xf32, #tpu.memory_space<vmem>>) attributes {dimension_semantics = [#tpu.dimension_semantics<arbitrary>], iteration_bounds = array<i64: 1>, scalar_prefetch = 0 : i64, scratch_operands = 6 : i64, tpu.core_type = #tpu.core_type<tc>, window_params = [{transform_indices = @transform_0, window_bounds = array<i64: 64, 16>}, {transform_indices = @transform_1, window_bounds = array<i64: 64, 16>}, {transform_indices = @transform_2, window_bounds = array<i64: 64, 1>}, {transform_indices = @transform_3, window_bounds = array<i64: 64, 1>}, {pipeline_mode = #tpu.pipeline_mode<synchronous>, transform_indices = @transform_4, window_bounds = array<i64: 2, 1, 16, 128>}, {pipeline_mode = #tpu.pipeline_mode<synchronous>, transform_indices = @transform_5, window_bounds = array<i64: 2, 32, 128>}, {pipeline_mode = #tpu.pipeline_mode<synchronous>, transform_indices = @transform_6, window_bounds = array<i64: 2, 1, 128>}, {transform_indices = @transform_7, window_bounds = array<i64: 64, 32>}, {transform_indices = @transform_8, window_bounds = array<i64: 64, 32>}]} {
    %c0_i32 = arith.constant 0 : i32
    %0 = arith.cmpi eq, %arg0, %c0_i32 : i32
    %1 = arith.extui %0 : i1 to i32
    %c0_i32_0 = arith.constant 0 : i32
    %2 = arith.cmpi ne, %1, %c0_i32_0 : i32
    scf.if %2 {
      %cst_341 = arith.constant 0.000000e+00 : f32
      %721 = vector.broadcast %cst_341 : f32 to vector<8x32xf32>
      %c0_342 = arith.constant 0 : index
      %c0_343 = arith.constant 0 : index
      %722 = vector.load %arg12[%c0_342, %c0_343] : memref<8x32xf32, #tpu.memory_space<vmem>>, vector<8x32xf32>
      tpu.vector_store %arg12[%c0_342, %c0_343], %721 {strides = array<i32>} : memref<8x32xf32, #tpu.memory_space<vmem>>, vector<8x32xf32>,
      %cst_344 = arith.constant 0.000000e+00 : f32
      %723 = vector.broadcast %cst_344 : f32 to vector<8x32xf32>
      %c0_345 = arith.constant 0 : index
      %c0_346 = arith.constant 0 : index
      %724 = vector.load %arg13[%c0_345, %c0_346] : memref<8x32xf32, #tpu.memory_space<vmem>>, vector<8x32xf32>
      tpu.vector_store %arg13[%c0_345, %c0_346], %723 {strides = array<i32>} : memref<8x32xf32, #tpu.memory_space<vmem>>, vector<8x32xf32>,
      %cst_347 = arith.constant 0.000000e+00 : f32
      %725 = vector.broadcast %cst_347 : f32 to vector<8x32xf32>
      %c0_348 = arith.constant 0 : index
      %c0_349 = arith.constant 0 : index
      %726 = vector.load %arg14[%c0_348, %c0_349] : memref<8x32xf32, #tpu.memory_space<vmem>>, vector<8x32xf32>
      tpu.vector_store %arg14[%c0_348, %c0_349], %725 {strides = array<i32>} : memref<8x32xf32, #tpu.memory_space<vmem>>, vector<8x32xf32>,
      %cst_350 = arith.constant 0.000000e+00 : f32
      %727 = vector.broadcast %cst_350 : f32 to vector<8x32xf32>
      %c0_351 = arith.constant 0 : index
      %c0_352 = arith.constant 0 : index
      %728 = vector.load %arg15[%c0_351, %c0_352] : memref<8x32xf32, #tpu.memory_space<vmem>>, vector<8x32xf32>
      tpu.vector_store %arg15[%c0_351, %c0_352], %727 {strides = array<i32>} : memref<8x32xf32, #tpu.memory_space<vmem>>, vector<8x32xf32>,
    } else {
    }
    %c0 = arith.constant 0 : index
    %c0_1 = arith.constant 0 : index
    %3 = vector.load %arg1[%c0, %c0_1] : memref<64x16xbf16, #tpu.memory_space<vmem>>, vector<64x16xbf16>
    %c0_2 = arith.constant 0 : index
    %c0_3 = arith.constant 0 : index
    %c0_4 = arith.constant 0 : index
    %c0_5 = arith.constant 0 : index
    %4 = vector.load %arg5[%c0_2, %c0_3, %c0_4, %c0_5] : memref<2x1x16x128xbf16, #tpu.memory_space<vmem>>, vector<1x1x16x128xbf16>
    %5 = vector.shape_cast %4 : vector<1x1x16x128xbf16> to vector<16x128xbf16>
    %cst = arith.constant dense<0.000000e+00> : vector<64x128xf32>
    %6 = tpu.matmul %3, %5, %cst {dimension_numbers = #tpu.dot_dimension_numbers<[1], [0], [0], [1], [0, 0, 1, 1], [], []>} : vector<64x16xbf16>, vector<16x128xbf16>, vector<64x128xf32> -> vector<64x128xf32>
    %c0_6 = arith.constant 0 : index
    %c0_7 = arith.constant 0 : index
    %7 = vector.load %arg2[%c0_6, %c0_7] : memref<64x16xbf16, #tpu.memory_space<vmem>>, vector<64x16xbf16>
    %c1 = arith.constant 1 : index
    %c0_8 = arith.constant 0 : index
    %c0_9 = arith.constant 0 : index
    %c0_10 = arith.constant 0 : index
    %8 = vector.load %arg5[%c1, %c0_8, %c0_9, %c0_10] : memref<2x1x16x128xbf16, #tpu.memory_space<vmem>>, vector<1x1x16x128xbf16>
    %9 = vector.shape_cast %8 : vector<1x1x16x128xbf16> to vector<16x128xbf16>
    %cst_11 = arith.constant dense<0.000000e+00> : vector<64x128xf32>
    %10 = tpu.matmul %7, %9, %cst_11 {dimension_numbers = #tpu.dot_dimension_numbers<[1], [0], [0], [1], [0, 0, 1, 1], [], []>} : vector<64x16xbf16>, vector<16x128xbf16>, vector<64x128xf32> -> vector<64x128xf32>
    %c0_12 = arith.constant 0 : index
    %c0_13 = arith.constant 0 : index
    %c0_14 = arith.constant 0 : index
    %11 = vector.load %arg7[%c0_12, %c0_13, %c0_14] : memref<2x1x128xf32, #tpu.memory_space<vmem>>, vector<1x1x128xf32>
    %12 = vector.shape_cast %11 : vector<1x1x128xf32> to vector<1x128xf32>
    %13 = vector.broadcast %12 : vector<1x128xf32> to vector<64x128xf32>
    %14 = arith.addf %6, %13 : vector<64x128xf32>
    %c0_15 = arith.constant 0 : index
    %c0_16 = arith.constant 0 : index
    %15 = vector.load %arg10[%c0_15, %c0_16] : memref<64x128xf32, #tpu.memory_space<vmem>>, vector<64x128xf32>
    tpu.vector_store %arg10[%c0_15, %c0_16], %14 {strides = array<i32>} : memref<64x128xf32, #tpu.memory_space<vmem>>, vector<64x128xf32>,
    %c1_17 = arith.constant 1 : index
    %c0_18 = arith.constant 0 : index
    %c0_19 = arith.constant 0 : index
    %16 = vector.load %arg7[%c1_17, %c0_18, %c0_19] : memref<2x1x128xf32, #tpu.memory_space<vmem>>, vector<1x1x128xf32>
    %17 = vector.shape_cast %16 : vector<1x1x128xf32> to vector<1x128xf32>
    %18 = vector.broadcast %17 : vector<1x128xf32> to vector<64x128xf32>
    %19 = arith.addf %10, %18 : vector<64x128xf32>
    %c0_20 = arith.constant 0 : index
    %c0_21 = arith.constant 0 : index
    %20 = vector.load %arg11[%c0_20, %c0_21] : memref<64x128xf32, #tpu.memory_space<vmem>>, vector<64x128xf32>
    tpu.vector_store %arg11[%c0_20, %c0_21], %19 {strides = array<i32>} : memref<64x128xf32, #tpu.memory_space<vmem>>, vector<64x128xf32>,
    %c0_22 = arith.constant 0 : index
    %c0_23 = arith.constant 0 : index
    %c0_24 = arith.constant 0 : index
    %21 = vector.load %arg6[%c0_22, %c0_23, %c0_24] : memref<2x32x128xbf16, #tpu.memory_space<vmem>>, vector<1x32x128xbf16>
    %22 = vector.shape_cast %21 : vector<1x32x128xbf16> to vector<32x128xbf16>
    %c1_25 = arith.constant 1 : index
    %c0_26 = arith.constant 0 : index
    %c0_27 = arith.constant 0 : index
    %23 = vector.load %arg6[%c1_25, %c0_26, %c0_27] : memref<2x32x128xbf16, #tpu.memory_space<vmem>>, vector<1x32x128xbf16>
    %24 = vector.shape_cast %23 : vector<1x32x128xbf16> to vector<32x128xbf16>
    %c0_i32_28 = arith.constant 0 : i32
    %c8_i32 = arith.constant 8 : i32
    %25 = arith.muli %c0_i32_28, %c8_i32 : i32
    %26 = tpu.assume_multiple %25, 8 : i32
    %c7_i32 = arith.constant 7 : i32
    %27 = arith.subi %c7_i32, %c0_i32_28 : i32
    %c8_i32_29 = arith.constant 8 : i32
    %28 = arith.muli %27, %c8_i32_29 : i32
    %29 = tpu.assume_multiple %28, 8 : i32
    %30 = arith.index_cast %26 : i32 to index
    %c0_30 = arith.constant 0 : index
    %31 = vector.load %arg10[%30, %c0_30] : memref<64x128xf32, #tpu.memory_space<vmem>>, vector<8x128xf32>
    %c0_31 = arith.constant 0 : index
    %c0_32 = arith.constant 0 : index
    %32 = vector.load %arg12[%c0_31, %c0_32] : memref<8x32xf32, #tpu.memory_space<vmem>>, vector<8x32xf32>
    %33 = arith.truncf %32 : vector<8x32xf32> to vector<8x32xbf16>
    %cst_33 = arith.constant dense<0.000000e+00> : vector<8x128xf32>
    %34 = tpu.matmul %33, %22, %cst_33 {dimension_numbers = #tpu.dot_dimension_numbers<[1], [0], [0], [1], [0, 0, 1, 1], [], []>} : vector<8x32xbf16>, vector<32x128xbf16>, vector<8x128xf32> -> vector<8x128xf32>
    %35 = arith.addf %31, %34 : vector<8x128xf32>
    %36 = arith.index_cast %29 : i32 to index
    %c0_34 = arith.constant 0 : index
    %37 = vector.load %arg11[%36, %c0_34] : memref<64x128xf32, #tpu.memory_space<vmem>>, vector<8x128xf32>
    %c0_35 = arith.constant 0 : index
    %c0_36 = arith.constant 0 : index
    %38 = vector.load %arg14[%c0_35, %c0_36] : memref<8x32xf32, #tpu.memory_space<vmem>>, vector<8x32xf32>
    %39 = arith.truncf %38 : vector<8x32xf32> to vector<8x32xbf16>
    %cst_37 = arith.constant dense<0.000000e+00> : vector<8x128xf32>
    %40 = tpu.matmul %39, %24, %cst_37 {dimension_numbers = #tpu.dot_dimension_numbers<[1], [0], [0], [1], [0, 0, 1, 1], [], []>} : vector<8x32xbf16>, vector<32x128xbf16>, vector<8x128xf32> -> vector<8x128xf32>
    %41 = arith.addf %37, %40 : vector<8x128xf32>
    %42 = arith.negf %35 : vector<8x128xf32>
    %43 = math.exp %42 : vector<8x128xf32>
    %cst_38 = arith.constant 1.000000e+00 : f32
    %44 = vector.broadcast %cst_38 : f32 to vector<8x128xf32>
    %45 = arith.addf %44, %43 : vector<8x128xf32>
    %46 = arith.divf %44, %45 : vector<8x128xf32>
    %47 = math.tanh %35 : vector<8x128xf32>
    %48 = vector.extract_strided_slice %46 {offsets = [0, 0], sizes = [8, 32], strides = [1, 1]} : vector<8x128xf32> to vector<8x32xf32>
    %49 = vector.extract_strided_slice %46 {offsets = [0, 32], sizes = [8, 32], strides = [1, 1]} : vector<8x128xf32> to vector<8x32xf32>
    %50 = vector.extract_strided_slice %47 {offsets = [0, 64], sizes = [8, 32], strides = [1, 1]} : vector<8x128xf32> to vector<8x32xf32>
    %51 = vector.extract_strided_slice %46 {offsets = [0, 96], sizes = [8, 32], strides = [1, 1]} : vector<8x128xf32> to vector<8x32xf32>
    %52 = arith.negf %41 : vector<8x128xf32>
    %53 = math.exp %52 : vector<8x128xf32>
    %cst_39 = arith.constant 1.000000e+00 : f32
    %54 = vector.broadcast %cst_39 : f32 to vector<8x128xf32>
    %55 = arith.addf %54, %53 : vector<8x128xf32>
    %56 = arith.divf %54, %55 : vector<8x128xf32>
    %57 = math.tanh %41 : vector<8x128xf32>
    %58 = vector.extract_strided_slice %56 {offsets = [0, 0], sizes = [8, 32], strides = [1, 1]} : vector<8x128xf32> to vector<8x32xf32>
    %59 = vector.extract_strided_slice %56 {offsets = [0, 32], sizes = [8, 32], strides = [1, 1]} : vector<8x128xf32> to vector<8x32xf32>
    %60 = vector.extract_strided_slice %57 {offsets = [0, 64], sizes = [8, 32], strides = [1, 1]} : vector<8x128xf32> to vector<8x32xf32>
    %61 = vector.extract_strided_slice %56 {offsets = [0, 96], sizes = [8, 32], strides = [1, 1]} : vector<8x128xf32> to vector<8x32xf32>
    %c0_40 = arith.constant 0 : index
    %c0_41 = arith.constant 0 : index
    %62 = vector.load %arg13[%c0_40, %c0_41] : memref<8x32xf32, #tpu.memory_space<vmem>>, vector<8x32xf32>
    %63 = arith.mulf %49, %62 : vector<8x32xf32>
    %64 = arith.mulf %48, %50 : vector<8x32xf32>
    %65 = arith.addf %63, %64 : vector<8x32xf32>
    %66 = math.tanh %65 : vector<8x32xf32>
    %67 = arith.mulf %51, %66 : vector<8x32xf32>
    %c0_42 = arith.constant 0 : index
    %c0_43 = arith.constant 0 : index
    %68 = vector.load %arg15[%c0_42, %c0_43] : memref<8x32xf32, #tpu.memory_space<vmem>>, vector<8x32xf32>
    %69 = arith.mulf %59, %68 : vector<8x32xf32>
    %70 = arith.mulf %58, %60 : vector<8x32xf32>
    %71 = arith.addf %69, %70 : vector<8x32xf32>
    %72 = math.tanh %71 : vector<8x32xf32>
    %73 = arith.mulf %61, %72 : vector<8x32xf32>
    %74 = arith.index_cast %26 : i32 to index
    %c0_44 = arith.constant 0 : index
    %75 = vector.load %arg3[%74, %c0_44] : memref<64x1xf32, #tpu.memory_space<vmem>>, vector<8x1xf32>
    %76 = arith.index_cast %29 : i32 to index
    %c0_45 = arith.constant 0 : index
    %77 = vector.load %arg4[%76, %c0_45] : memref<64x1xf32, #tpu.memory_space<vmem>>, vector<8x1xf32>
    %cst_46 = arith.constant 0.000000e+00 : f32
    %78 = vector.broadcast %cst_46 : f32 to vector<8x1xf32>
    %79 = arith.cmpf ogt, %75, %78 : vector<8x1xf32>
    %cst_47 = arith.constant 0.000000e+00 : f32
    %80 = vector.broadcast %cst_47 : f32 to vector<8x1xf32>
    %81 = arith.cmpf ogt, %77, %80 : vector<8x1xf32>
    %c0_48 = arith.constant 0 : index
    %c0_49 = arith.constant 0 : index
    %82 = vector.load %arg13[%c0_48, %c0_49] : memref<8x32xf32, #tpu.memory_space<vmem>>, vector<8x32xf32>
    %83 = vector.shape_cast %79 : vector<8x1xi1> to vector<8x1xi1>
    %84 = vector.broadcast %83 : vector<8x1xi1> to vector<8x32xi1>
    %85 = arith.select %84, %65, %82 : vector<8x32xi1>, vector<8x32xf32>
    %c0_50 = arith.constant 0 : index
    %c0_51 = arith.constant 0 : index
    %86 = vector.load %arg13[%c0_50, %c0_51] : memref<8x32xf32, #tpu.memory_space<vmem>>, vector<8x32xf32>
    tpu.vector_store %arg13[%c0_50, %c0_51], %85 {strides = array<i32>} : memref<8x32xf32, #tpu.memory_space<vmem>>, vector<8x32xf32>,
    %c0_52 = arith.constant 0 : index
    %c0_53 = arith.constant 0 : index
    %87 = vector.load %arg12[%c0_52, %c0_53] : memref<8x32xf32, #tpu.memory_space<vmem>>, vector<8x32xf32>
    %88 = vector.shape_cast %79 : vector<8x1xi1> to vector<8x1xi1>
    %89 = vector.broadcast %88 : vector<8x1xi1> to vector<8x32xi1>
    %90 = arith.select %89, %67, %87 : vector<8x32xi1>, vector<8x32xf32>
    %c0_54 = arith.constant 0 : index
    %c0_55 = arith.constant 0 : index
    %91 = vector.load %arg12[%c0_54, %c0_55] : memref<8x32xf32, #tpu.memory_space<vmem>>, vector<8x32xf32>
    tpu.vector_store %arg12[%c0_54, %c0_55], %90 {strides = array<i32>} : memref<8x32xf32, #tpu.memory_space<vmem>>, vector<8x32xf32>,
    %c0_56 = arith.constant 0 : index
    %c0_57 = arith.constant 0 : index
    %92 = vector.load %arg15[%c0_56, %c0_57] : memref<8x32xf32, #tpu.memory_space<vmem>>, vector<8x32xf32>
    %93 = vector.shape_cast %81 : vector<8x1xi1> to vector<8x1xi1>
    %94 = vector.broadcast %93 : vector<8x1xi1> to vector<8x32xi1>
    %95 = arith.select %94, %71, %92 : vector<8x32xi1>, vector<8x32xf32>
    %c0_58 = arith.constant 0 : index
    %c0_59 = arith.constant 0 : index
    %96 = vector.load %arg15[%c0_58, %c0_59] : memref<8x32xf32, #tpu.memory_space<vmem>>, vector<8x32xf32>
    tpu.vector_store %arg15[%c0_58, %c0_59], %95 {strides = array<i32>} : memref<8x32xf32, #tpu.memory_space<vmem>>, vector<8x32xf32>,
    %c0_60 = arith.constant 0 : index
    %c0_61 = arith.constant 0 : index
    %97 = vector.load %arg14[%c0_60, %c0_61] : memref<8x32xf32, #tpu.memory_space<vmem>>, vector<8x32xf32>
    %98 = vector.shape_cast %81 : vector<8x1xi1> to vector<8x1xi1>
    %99 = vector.broadcast %98 : vector<8x1xi1> to vector<8x32xi1>
    %100 = arith.select %99, %73, %97 : vector<8x32xi1>, vector<8x32xf32>
    %c0_62 = arith.constant 0 : index
    %c0_63 = arith.constant 0 : index
    %101 = vector.load %arg14[%c0_62, %c0_63] : memref<8x32xf32, #tpu.memory_space<vmem>>, vector<8x32xf32>
    tpu.vector_store %arg14[%c0_62, %c0_63], %100 {strides = array<i32>} : memref<8x32xf32, #tpu.memory_space<vmem>>, vector<8x32xf32>,
    %102 = vector.broadcast %75 : vector<8x1xf32> to vector<8x32xf32>
    %103 = arith.mulf %67, %102 : vector<8x32xf32>
    %104 = arith.truncf %103 : vector<8x32xf32> to vector<8x32xbf16>
    %105 = arith.index_cast %26 : i32 to index
    %c0_64 = arith.constant 0 : index
    %106 = vector.load %arg8[%105, %c0_64] : memref<64x32xbf16, #tpu.memory_space<vmem>>, vector<8x32xbf16>
    tpu.vector_store %arg8[%105, %c0_64], %104 {strides = array<i32>} : memref<64x32xbf16, #tpu.memory_space<vmem>>, vector<8x32xbf16>,
    %107 = vector.broadcast %77 : vector<8x1xf32> to vector<8x32xf32>
    %108 = arith.mulf %73, %107 : vector<8x32xf32>
    %109 = arith.truncf %108 : vector<8x32xf32> to vector<8x32xbf16>
    %110 = arith.index_cast %29 : i32 to index
    %c0_65 = arith.constant 0 : index
    %111 = vector.load %arg9[%110, %c0_65] : memref<64x32xbf16, #tpu.memory_space<vmem>>, vector<8x32xbf16>
    tpu.vector_store %arg9[%110, %c0_65], %109 {strides = array<i32>} : memref<64x32xbf16, #tpu.memory_space<vmem>>, vector<8x32xbf16>,
    %c1_i32 = arith.constant 1 : i32
    %c8_i32_66 = arith.constant 8 : i32
    %112 = arith.muli %c1_i32, %c8_i32_66 : i32
    %113 = tpu.assume_multiple %112, 8 : i32
    %c7_i32_67 = arith.constant 7 : i32
    %114 = arith.subi %c7_i32_67, %c1_i32 : i32
    %c8_i32_68 = arith.constant 8 : i32
    %115 = arith.muli %114, %c8_i32_68 : i32
    %116 = tpu.assume_multiple %115, 8 : i32
    %117 = arith.index_cast %113 : i32 to index
    %c0_69 = arith.constant 0 : index
    %118 = vector.load %arg10[%117, %c0_69] : memref<64x128xf32, #tpu.memory_space<vmem>>, vector<8x128xf32>
    %c0_70 = arith.constant 0 : index
    %c0_71 = arith.constant 0 : index
    %119 = vector.load %arg12[%c0_70, %c0_71] : memref<8x32xf32, #tpu.memory_space<vmem>>, vector<8x32xf32>
    %120 = arith.truncf %119 : vector<8x32xf32> to vector<8x32xbf16>
    %cst_72 = arith.constant dense<0.000000e+00> : vector<8x128xf32>
    %121 = tpu.matmul %120, %22, %cst_72 {dimension_numbers = #tpu.dot_dimension_numbers<[1], [0], [0], [1], [0, 0, 1, 1], [], []>} : vector<8x32xbf16>, vector<32x128xbf16>, vector<8x128xf32> -> vector<8x128xf32>
    %122 = arith.addf %118, %121 : vector<8x128xf32>
    %123 = arith.index_cast %116 : i32 to index
    %c0_73 = arith.constant 0 : index
    %124 = vector.load %arg11[%123, %c0_73] : memref<64x128xf32, #tpu.memory_space<vmem>>, vector<8x128xf32>
    %c0_74 = arith.constant 0 : index
    %c0_75 = arith.constant 0 : index
    %125 = vector.load %arg14[%c0_74, %c0_75] : memref<8x32xf32, #tpu.memory_space<vmem>>, vector<8x32xf32>
    %126 = arith.truncf %125 : vector<8x32xf32> to vector<8x32xbf16>
    %cst_76 = arith.constant dense<0.000000e+00> : vector<8x128xf32>
    %127 = tpu.matmul %126, %24, %cst_76 {dimension_numbers = #tpu.dot_dimension_numbers<[1], [0], [0], [1], [0, 0, 1, 1], [], []>} : vector<8x32xbf16>, vector<32x128xbf16>, vector<8x128xf32> -> vector<8x128xf32>
    %128 = arith.addf %124, %127 : vector<8x128xf32>
    %129 = arith.negf %122 : vector<8x128xf32>
    %130 = math.exp %129 : vector<8x128xf32>
    %cst_77 = arith.constant 1.000000e+00 : f32
    %131 = vector.broadcast %cst_77 : f32 to vector<8x128xf32>
    %132 = arith.addf %131, %130 : vector<8x128xf32>
    %133 = arith.divf %131, %132 : vector<8x128xf32>
    %134 = math.tanh %122 : vector<8x128xf32>
    %135 = vector.extract_strided_slice %133 {offsets = [0, 0], sizes = [8, 32], strides = [1, 1]} : vector<8x128xf32> to vector<8x32xf32>
    %136 = vector.extract_strided_slice %133 {offsets = [0, 32], sizes = [8, 32], strides = [1, 1]} : vector<8x128xf32> to vector<8x32xf32>
    %137 = vector.extract_strided_slice %134 {offsets = [0, 64], sizes = [8, 32], strides = [1, 1]} : vector<8x128xf32> to vector<8x32xf32>
    %138 = vector.extract_strided_slice %133 {offsets = [0, 96], sizes = [8, 32], strides = [1, 1]} : vector<8x128xf32> to vector<8x32xf32>
    %139 = arith.negf %128 : vector<8x128xf32>
    %140 = math.exp %139 : vector<8x128xf32>
    %cst_78 = arith.constant 1.000000e+00 : f32
    %141 = vector.broadcast %cst_78 : f32 to vector<8x128xf32>
    %142 = arith.addf %141, %140 : vector<8x128xf32>
    %143 = arith.divf %141, %142 : vector<8x128xf32>
    %144 = math.tanh %128 : vector<8x128xf32>
    %145 = vector.extract_strided_slice %143 {offsets = [0, 0], sizes = [8, 32], strides = [1, 1]} : vector<8x128xf32> to vector<8x32xf32>
    %146 = vector.extract_strided_slice %143 {offsets = [0, 32], sizes = [8, 32], strides = [1, 1]} : vector<8x128xf32> to vector<8x32xf32>
    %147 = vector.extract_strided_slice %144 {offsets = [0, 64], sizes = [8, 32], strides = [1, 1]} : vector<8x128xf32> to vector<8x32xf32>
    %148 = vector.extract_strided_slice %143 {offsets = [0, 96], sizes = [8, 32], strides = [1, 1]} : vector<8x128xf32> to vector<8x32xf32>
    %c0_79 = arith.constant 0 : index
    %c0_80 = arith.constant 0 : index
    %149 = vector.load %arg13[%c0_79, %c0_80] : memref<8x32xf32, #tpu.memory_space<vmem>>, vector<8x32xf32>
    %150 = arith.mulf %136, %149 : vector<8x32xf32>
    %151 = arith.mulf %135, %137 : vector<8x32xf32>
    %152 = arith.addf %150, %151 : vector<8x32xf32>
    %153 = math.tanh %152 : vector<8x32xf32>
    %154 = arith.mulf %138, %153 : vector<8x32xf32>
    %c0_81 = arith.constant 0 : index
    %c0_82 = arith.constant 0 : index
    %155 = vector.load %arg15[%c0_81, %c0_82] : memref<8x32xf32, #tpu.memory_space<vmem>>, vector<8x32xf32>
    %156 = arith.mulf %146, %155 : vector<8x32xf32>
    %157 = arith.mulf %145, %147 : vector<8x32xf32>
    %158 = arith.addf %156, %157 : vector<8x32xf32>
    %159 = math.tanh %158 : vector<8x32xf32>
    %160 = arith.mulf %148, %159 : vector<8x32xf32>
    %161 = arith.index_cast %113 : i32 to index
    %c0_83 = arith.constant 0 : index
    %162 = vector.load %arg3[%161, %c0_83] : memref<64x1xf32, #tpu.memory_space<vmem>>, vector<8x1xf32>
    %163 = arith.index_cast %116 : i32 to index
    %c0_84 = arith.constant 0 : index
    %164 = vector.load %arg4[%163, %c0_84] : memref<64x1xf32, #tpu.memory_space<vmem>>, vector<8x1xf32>
    %cst_85 = arith.constant 0.000000e+00 : f32
    %165 = vector.broadcast %cst_85 : f32 to vector<8x1xf32>
    %166 = arith.cmpf ogt, %162, %165 : vector<8x1xf32>
    %cst_86 = arith.constant 0.000000e+00 : f32
    %167 = vector.broadcast %cst_86 : f32 to vector<8x1xf32>
    %168 = arith.cmpf ogt, %164, %167 : vector<8x1xf32>
    %c0_87 = arith.constant 0 : index
    %c0_88 = arith.constant 0 : index
    %169 = vector.load %arg13[%c0_87, %c0_88] : memref<8x32xf32, #tpu.memory_space<vmem>>, vector<8x32xf32>
    %170 = vector.shape_cast %166 : vector<8x1xi1> to vector<8x1xi1>
    %171 = vector.broadcast %170 : vector<8x1xi1> to vector<8x32xi1>
    %172 = arith.select %171, %152, %169 : vector<8x32xi1>, vector<8x32xf32>
    %c0_89 = arith.constant 0 : index
    %c0_90 = arith.constant 0 : index
    %173 = vector.load %arg13[%c0_89, %c0_90] : memref<8x32xf32, #tpu.memory_space<vmem>>, vector<8x32xf32>
    tpu.vector_store %arg13[%c0_89, %c0_90], %172 {strides = array<i32>} : memref<8x32xf32, #tpu.memory_space<vmem>>, vector<8x32xf32>,
    %c0_91 = arith.constant 0 : index
    %c0_92 = arith.constant 0 : index
    %174 = vector.load %arg12[%c0_91, %c0_92] : memref<8x32xf32, #tpu.memory_space<vmem>>, vector<8x32xf32>
    %175 = vector.shape_cast %166 : vector<8x1xi1> to vector<8x1xi1>
    %176 = vector.broadcast %175 : vector<8x1xi1> to vector<8x32xi1>
    %177 = arith.select %176, %154, %174 : vector<8x32xi1>, vector<8x32xf32>
    %c0_93 = arith.constant 0 : index
    %c0_94 = arith.constant 0 : index
    %178 = vector.load %arg12[%c0_93, %c0_94] : memref<8x32xf32, #tpu.memory_space<vmem>>, vector<8x32xf32>
    tpu.vector_store %arg12[%c0_93, %c0_94], %177 {strides = array<i32>} : memref<8x32xf32, #tpu.memory_space<vmem>>, vector<8x32xf32>,
    %c0_95 = arith.constant 0 : index
    %c0_96 = arith.constant 0 : index
    %179 = vector.load %arg15[%c0_95, %c0_96] : memref<8x32xf32, #tpu.memory_space<vmem>>, vector<8x32xf32>
    %180 = vector.shape_cast %168 : vector<8x1xi1> to vector<8x1xi1>
    %181 = vector.broadcast %180 : vector<8x1xi1> to vector<8x32xi1>
    %182 = arith.select %181, %158, %179 : vector<8x32xi1>, vector<8x32xf32>
    %c0_97 = arith.constant 0 : index
    %c0_98 = arith.constant 0 : index
    %183 = vector.load %arg15[%c0_97, %c0_98] : memref<8x32xf32, #tpu.memory_space<vmem>>, vector<8x32xf32>
    tpu.vector_store %arg15[%c0_97, %c0_98], %182 {strides = array<i32>} : memref<8x32xf32, #tpu.memory_space<vmem>>, vector<8x32xf32>,
    %c0_99 = arith.constant 0 : index
    %c0_100 = arith.constant 0 : index
    %184 = vector.load %arg14[%c0_99, %c0_100] : memref<8x32xf32, #tpu.memory_space<vmem>>, vector<8x32xf32>
    %185 = vector.shape_cast %168 : vector<8x1xi1> to vector<8x1xi1>
    %186 = vector.broadcast %185 : vector<8x1xi1> to vector<8x32xi1>
    %187 = arith.select %186, %160, %184 : vector<8x32xi1>, vector<8x32xf32>
    %c0_101 = arith.constant 0 : index
    %c0_102 = arith.constant 0 : index
    %188 = vector.load %arg14[%c0_101, %c0_102] : memref<8x32xf32, #tpu.memory_space<vmem>>, vector<8x32xf32>
    tpu.vector_store %arg14[%c0_101, %c0_102], %187 {strides = array<i32>} : memref<8x32xf32, #tpu.memory_space<vmem>>, vector<8x32xf32>,
    %189 = vector.broadcast %162 : vector<8x1xf32> to vector<8x32xf32>
    %190 = arith.mulf %154, %189 : vector<8x32xf32>
    %191 = arith.truncf %190 : vector<8x32xf32> to vector<8x32xbf16>
    %192 = arith.index_cast %113 : i32 to index
    %c0_103 = arith.constant 0 : index
    %193 = vector.load %arg8[%192, %c0_103] : memref<64x32xbf16, #tpu.memory_space<vmem>>, vector<8x32xbf16>
    tpu.vector_store %arg8[%192, %c0_103], %191 {strides = array<i32>} : memref<64x32xbf16, #tpu.memory_space<vmem>>, vector<8x32xbf16>,
    %194 = vector.broadcast %164 : vector<8x1xf32> to vector<8x32xf32>
    %195 = arith.mulf %160, %194 : vector<8x32xf32>
    %196 = arith.truncf %195 : vector<8x32xf32> to vector<8x32xbf16>
    %197 = arith.index_cast %116 : i32 to index
    %c0_104 = arith.constant 0 : index
    %198 = vector.load %arg9[%197, %c0_104] : memref<64x32xbf16, #tpu.memory_space<vmem>>, vector<8x32xbf16>
    tpu.vector_store %arg9[%197, %c0_104], %196 {strides = array<i32>} : memref<64x32xbf16, #tpu.memory_space<vmem>>, vector<8x32xbf16>,
    %c2_i32 = arith.constant 2 : i32
    %c8_i32_105 = arith.constant 8 : i32
    %199 = arith.muli %c2_i32, %c8_i32_105 : i32
    %200 = tpu.assume_multiple %199, 8 : i32
    %c7_i32_106 = arith.constant 7 : i32
    %201 = arith.subi %c7_i32_106, %c2_i32 : i32
    %c8_i32_107 = arith.constant 8 : i32
    %202 = arith.muli %201, %c8_i32_107 : i32
    %203 = tpu.assume_multiple %202, 8 : i32
    %204 = arith.index_cast %200 : i32 to index
    %c0_108 = arith.constant 0 : index
    %205 = vector.load %arg10[%204, %c0_108] : memref<64x128xf32, #tpu.memory_space<vmem>>, vector<8x128xf32>
    %c0_109 = arith.constant 0 : index
    %c0_110 = arith.constant 0 : index
    %206 = vector.load %arg12[%c0_109, %c0_110] : memref<8x32xf32, #tpu.memory_space<vmem>>, vector<8x32xf32>
    %207 = arith.truncf %206 : vector<8x32xf32> to vector<8x32xbf16>
    %cst_111 = arith.constant dense<0.000000e+00> : vector<8x128xf32>
    %208 = tpu.matmul %207, %22, %cst_111 {dimension_numbers = #tpu.dot_dimension_numbers<[1], [0], [0], [1], [0, 0, 1, 1], [], []>} : vector<8x32xbf16>, vector<32x128xbf16>, vector<8x128xf32> -> vector<8x128xf32>
    %209 = arith.addf %205, %208 : vector<8x128xf32>
    %210 = arith.index_cast %203 : i32 to index
    %c0_112 = arith.constant 0 : index
    %211 = vector.load %arg11[%210, %c0_112] : memref<64x128xf32, #tpu.memory_space<vmem>>, vector<8x128xf32>
    %c0_113 = arith.constant 0 : index
    %c0_114 = arith.constant 0 : index
    %212 = vector.load %arg14[%c0_113, %c0_114] : memref<8x32xf32, #tpu.memory_space<vmem>>, vector<8x32xf32>
    %213 = arith.truncf %212 : vector<8x32xf32> to vector<8x32xbf16>
    %cst_115 = arith.constant dense<0.000000e+00> : vector<8x128xf32>
    %214 = tpu.matmul %213, %24, %cst_115 {dimension_numbers = #tpu.dot_dimension_numbers<[1], [0], [0], [1], [0, 0, 1, 1], [], []>} : vector<8x32xbf16>, vector<32x128xbf16>, vector<8x128xf32> -> vector<8x128xf32>
    %215 = arith.addf %211, %214 : vector<8x128xf32>
    %216 = arith.negf %209 : vector<8x128xf32>
    %217 = math.exp %216 : vector<8x128xf32>
    %cst_116 = arith.constant 1.000000e+00 : f32
    %218 = vector.broadcast %cst_116 : f32 to vector<8x128xf32>
    %219 = arith.addf %218, %217 : vector<8x128xf32>
    %220 = arith.divf %218, %219 : vector<8x128xf32>
    %221 = math.tanh %209 : vector<8x128xf32>
    %222 = vector.extract_strided_slice %220 {offsets = [0, 0], sizes = [8, 32], strides = [1, 1]} : vector<8x128xf32> to vector<8x32xf32>
    %223 = vector.extract_strided_slice %220 {offsets = [0, 32], sizes = [8, 32], strides = [1, 1]} : vector<8x128xf32> to vector<8x32xf32>
    %224 = vector.extract_strided_slice %221 {offsets = [0, 64], sizes = [8, 32], strides = [1, 1]} : vector<8x128xf32> to vector<8x32xf32>
    %225 = vector.extract_strided_slice %220 {offsets = [0, 96], sizes = [8, 32], strides = [1, 1]} : vector<8x128xf32> to vector<8x32xf32>
    %226 = arith.negf %215 : vector<8x128xf32>
    %227 = math.exp %226 : vector<8x128xf32>
    %cst_117 = arith.constant 1.000000e+00 : f32
    %228 = vector.broadcast %cst_117 : f32 to vector<8x128xf32>
    %229 = arith.addf %228, %227 : vector<8x128xf32>
    %230 = arith.divf %228, %229 : vector<8x128xf32>
    %231 = math.tanh %215 : vector<8x128xf32>
    %232 = vector.extract_strided_slice %230 {offsets = [0, 0], sizes = [8, 32], strides = [1, 1]} : vector<8x128xf32> to vector<8x32xf32>
    %233 = vector.extract_strided_slice %230 {offsets = [0, 32], sizes = [8, 32], strides = [1, 1]} : vector<8x128xf32> to vector<8x32xf32>
    %234 = vector.extract_strided_slice %231 {offsets = [0, 64], sizes = [8, 32], strides = [1, 1]} : vector<8x128xf32> to vector<8x32xf32>
    %235 = vector.extract_strided_slice %230 {offsets = [0, 96], sizes = [8, 32], strides = [1, 1]} : vector<8x128xf32> to vector<8x32xf32>
    %c0_118 = arith.constant 0 : index
    %c0_119 = arith.constant 0 : index
    %236 = vector.load %arg13[%c0_118, %c0_119] : memref<8x32xf32, #tpu.memory_space<vmem>>, vector<8x32xf32>
    %237 = arith.mulf %223, %236 : vector<8x32xf32>
    %238 = arith.mulf %222, %224 : vector<8x32xf32>
    %239 = arith.addf %237, %238 : vector<8x32xf32>
    %240 = math.tanh %239 : vector<8x32xf32>
    %241 = arith.mulf %225, %240 : vector<8x32xf32>
    %c0_120 = arith.constant 0 : index
    %c0_121 = arith.constant 0 : index
    %242 = vector.load %arg15[%c0_120, %c0_121] : memref<8x32xf32, #tpu.memory_space<vmem>>, vector<8x32xf32>
    %243 = arith.mulf %233, %242 : vector<8x32xf32>
    %244 = arith.mulf %232, %234 : vector<8x32xf32>
    %245 = arith.addf %243, %244 : vector<8x32xf32>
    %246 = math.tanh %245 : vector<8x32xf32>
    %247 = arith.mulf %235, %246 : vector<8x32xf32>
    %248 = arith.index_cast %200 : i32 to index
    %c0_122 = arith.constant 0 : index
    %249 = vector.load %arg3[%248, %c0_122] : memref<64x1xf32, #tpu.memory_space<vmem>>, vector<8x1xf32>
    %250 = arith.index_cast %203 : i32 to index
    %c0_123 = arith.constant 0 : index
    %251 = vector.load %arg4[%250, %c0_123] : memref<64x1xf32, #tpu.memory_space<vmem>>, vector<8x1xf32>
    %cst_124 = arith.constant 0.000000e+00 : f32
    %252 = vector.broadcast %cst_124 : f32 to vector<8x1xf32>
    %253 = arith.cmpf ogt, %249, %252 : vector<8x1xf32>
    %cst_125 = arith.constant 0.000000e+00 : f32
    %254 = vector.broadcast %cst_125 : f32 to vector<8x1xf32>
    %255 = arith.cmpf ogt, %251, %254 : vector<8x1xf32>
    %c0_126 = arith.constant 0 : index
    %c0_127 = arith.constant 0 : index
    %256 = vector.load %arg13[%c0_126, %c0_127] : memref<8x32xf32, #tpu.memory_space<vmem>>, vector<8x32xf32>
    %257 = vector.shape_cast %253 : vector<8x1xi1> to vector<8x1xi1>
    %258 = vector.broadcast %257 : vector<8x1xi1> to vector<8x32xi1>
    %259 = arith.select %258, %239, %256 : vector<8x32xi1>, vector<8x32xf32>
    %c0_128 = arith.constant 0 : index
    %c0_129 = arith.constant 0 : index
    %260 = vector.load %arg13[%c0_128, %c0_129] : memref<8x32xf32, #tpu.memory_space<vmem>>, vector<8x32xf32>
    tpu.vector_store %arg13[%c0_128, %c0_129], %259 {strides = array<i32>} : memref<8x32xf32, #tpu.memory_space<vmem>>, vector<8x32xf32>,
    %c0_130 = arith.constant 0 : index
    %c0_131 = arith.constant 0 : index
    %261 = vector.load %arg12[%c0_130, %c0_131] : memref<8x32xf32, #tpu.memory_space<vmem>>, vector<8x32xf32>
    %262 = vector.shape_cast %253 : vector<8x1xi1> to vector<8x1xi1>
    %263 = vector.broadcast %262 : vector<8x1xi1> to vector<8x32xi1>
    %264 = arith.select %263, %241, %261 : vector<8x32xi1>, vector<8x32xf32>
    %c0_132 = arith.constant 0 : index
    %c0_133 = arith.constant 0 : index
    %265 = vector.load %arg12[%c0_132, %c0_133] : memref<8x32xf32, #tpu.memory_space<vmem>>, vector<8x32xf32>
    tpu.vector_store %arg12[%c0_132, %c0_133], %264 {strides = array<i32>} : memref<8x32xf32, #tpu.memory_space<vmem>>, vector<8x32xf32>,
    %c0_134 = arith.constant 0 : index
    %c0_135 = arith.constant 0 : index
    %266 = vector.load %arg15[%c0_134, %c0_135] : memref<8x32xf32, #tpu.memory_space<vmem>>, vector<8x32xf32>
    %267 = vector.shape_cast %255 : vector<8x1xi1> to vector<8x1xi1>
    %268 = vector.broadcast %267 : vector<8x1xi1> to vector<8x32xi1>
    %269 = arith.select %268, %245, %266 : vector<8x32xi1>, vector<8x32xf32>
    %c0_136 = arith.constant 0 : index
    %c0_137 = arith.constant 0 : index
    %270 = vector.load %arg15[%c0_136, %c0_137] : memref<8x32xf32, #tpu.memory_space<vmem>>, vector<8x32xf32>
    tpu.vector_store %arg15[%c0_136, %c0_137], %269 {strides = array<i32>} : memref<8x32xf32, #tpu.memory_space<vmem>>, vector<8x32xf32>,
    %c0_138 = arith.constant 0 : index
    %c0_139 = arith.constant 0 : index
    %271 = vector.load %arg14[%c0_138, %c0_139] : memref<8x32xf32, #tpu.memory_space<vmem>>, vector<8x32xf32>
    %272 = vector.shape_cast %255 : vector<8x1xi1> to vector<8x1xi1>
    %273 = vector.broadcast %272 : vector<8x1xi1> to vector<8x32xi1>
    %274 = arith.select %273, %247, %271 : vector<8x32xi1>, vector<8x32xf32>
    %c0_140 = arith.constant 0 : index
    %c0_141 = arith.constant 0 : index
    %275 = vector.load %arg14[%c0_140, %c0_141] : memref<8x32xf32, #tpu.memory_space<vmem>>, vector<8x32xf32>
    tpu.vector_store %arg14[%c0_140, %c0_141], %274 {strides = array<i32>} : memref<8x32xf32, #tpu.memory_space<vmem>>, vector<8x32xf32>,
    %276 = vector.broadcast %249 : vector<8x1xf32> to vector<8x32xf32>
    %277 = arith.mulf %241, %276 : vector<8x32xf32>
    %278 = arith.truncf %277 : vector<8x32xf32> to vector<8x32xbf16>
    %279 = arith.index_cast %200 : i32 to index
    %c0_142 = arith.constant 0 : index
    %280 = vector.load %arg8[%279, %c0_142] : memref<64x32xbf16, #tpu.memory_space<vmem>>, vector<8x32xbf16>
    tpu.vector_store %arg8[%279, %c0_142], %278 {strides = array<i32>} : memref<64x32xbf16, #tpu.memory_space<vmem>>, vector<8x32xbf16>,
    %281 = vector.broadcast %251 : vector<8x1xf32> to vector<8x32xf32>
    %282 = arith.mulf %247, %281 : vector<8x32xf32>
    %283 = arith.truncf %282 : vector<8x32xf32> to vector<8x32xbf16>
    %284 = arith.index_cast %203 : i32 to index
    %c0_143 = arith.constant 0 : index
    %285 = vector.load %arg9[%284, %c0_143] : memref<64x32xbf16, #tpu.memory_space<vmem>>, vector<8x32xbf16>
    tpu.vector_store %arg9[%284, %c0_143], %283 {strides = array<i32>} : memref<64x32xbf16, #tpu.memory_space<vmem>>, vector<8x32xbf16>,
    %c3_i32 = arith.constant 3 : i32
    %c8_i32_144 = arith.constant 8 : i32
    %286 = arith.muli %c3_i32, %c8_i32_144 : i32
    %287 = tpu.assume_multiple %286, 8 : i32
    %c7_i32_145 = arith.constant 7 : i32
    %288 = arith.subi %c7_i32_145, %c3_i32 : i32
    %c8_i32_146 = arith.constant 8 : i32
    %289 = arith.muli %288, %c8_i32_146 : i32
    %290 = tpu.assume_multiple %289, 8 : i32
    %291 = arith.index_cast %287 : i32 to index
    %c0_147 = arith.constant 0 : index
    %292 = vector.load %arg10[%291, %c0_147] : memref<64x128xf32, #tpu.memory_space<vmem>>, vector<8x128xf32>
    %c0_148 = arith.constant 0 : index
    %c0_149 = arith.constant 0 : index
    %293 = vector.load %arg12[%c0_148, %c0_149] : memref<8x32xf32, #tpu.memory_space<vmem>>, vector<8x32xf32>
    %294 = arith.truncf %293 : vector<8x32xf32> to vector<8x32xbf16>
    %cst_150 = arith.constant dense<0.000000e+00> : vector<8x128xf32>
    %295 = tpu.matmul %294, %22, %cst_150 {dimension_numbers = #tpu.dot_dimension_numbers<[1], [0], [0], [1], [0, 0, 1, 1], [], []>} : vector<8x32xbf16>, vector<32x128xbf16>, vector<8x128xf32> -> vector<8x128xf32>
    %296 = arith.addf %292, %295 : vector<8x128xf32>
    %297 = arith.index_cast %290 : i32 to index
    %c0_151 = arith.constant 0 : index
    %298 = vector.load %arg11[%297, %c0_151] : memref<64x128xf32, #tpu.memory_space<vmem>>, vector<8x128xf32>
    %c0_152 = arith.constant 0 : index
    %c0_153 = arith.constant 0 : index
    %299 = vector.load %arg14[%c0_152, %c0_153] : memref<8x32xf32, #tpu.memory_space<vmem>>, vector<8x32xf32>
    %300 = arith.truncf %299 : vector<8x32xf32> to vector<8x32xbf16>
    %cst_154 = arith.constant dense<0.000000e+00> : vector<8x128xf32>
    %301 = tpu.matmul %300, %24, %cst_154 {dimension_numbers = #tpu.dot_dimension_numbers<[1], [0], [0], [1], [0, 0, 1, 1], [], []>} : vector<8x32xbf16>, vector<32x128xbf16>, vector<8x128xf32> -> vector<8x128xf32>
    %302 = arith.addf %298, %301 : vector<8x128xf32>
    %303 = arith.negf %296 : vector<8x128xf32>
    %304 = math.exp %303 : vector<8x128xf32>
    %cst_155 = arith.constant 1.000000e+00 : f32
    %305 = vector.broadcast %cst_155 : f32 to vector<8x128xf32>
    %306 = arith.addf %305, %304 : vector<8x128xf32>
    %307 = arith.divf %305, %306 : vector<8x128xf32>
    %308 = math.tanh %296 : vector<8x128xf32>
    %309 = vector.extract_strided_slice %307 {offsets = [0, 0], sizes = [8, 32], strides = [1, 1]} : vector<8x128xf32> to vector<8x32xf32>
    %310 = vector.extract_strided_slice %307 {offsets = [0, 32], sizes = [8, 32], strides = [1, 1]} : vector<8x128xf32> to vector<8x32xf32>
    %311 = vector.extract_strided_slice %308 {offsets = [0, 64], sizes = [8, 32], strides = [1, 1]} : vector<8x128xf32> to vector<8x32xf32>
    %312 = vector.extract_strided_slice %307 {offsets = [0, 96], sizes = [8, 32], strides = [1, 1]} : vector<8x128xf32> to vector<8x32xf32>
    %313 = arith.negf %302 : vector<8x128xf32>
    %314 = math.exp %313 : vector<8x128xf32>
    %cst_156 = arith.constant 1.000000e+00 : f32
    %315 = vector.broadcast %cst_156 : f32 to vector<8x128xf32>
    %316 = arith.addf %315, %314 : vector<8x128xf32>
    %317 = arith.divf %315, %316 : vector<8x128xf32>
    %318 = math.tanh %302 : vector<8x128xf32>
    %319 = vector.extract_strided_slice %317 {offsets = [0, 0], sizes = [8, 32], strides = [1, 1]} : vector<8x128xf32> to vector<8x32xf32>
    %320 = vector.extract_strided_slice %317 {offsets = [0, 32], sizes = [8, 32], strides = [1, 1]} : vector<8x128xf32> to vector<8x32xf32>
    %321 = vector.extract_strided_slice %318 {offsets = [0, 64], sizes = [8, 32], strides = [1, 1]} : vector<8x128xf32> to vector<8x32xf32>
    %322 = vector.extract_strided_slice %317 {offsets = [0, 96], sizes = [8, 32], strides = [1, 1]} : vector<8x128xf32> to vector<8x32xf32>
    %c0_157 = arith.constant 0 : index
    %c0_158 = arith.constant 0 : index
    %323 = vector.load %arg13[%c0_157, %c0_158] : memref<8x32xf32, #tpu.memory_space<vmem>>, vector<8x32xf32>
    %324 = arith.mulf %310, %323 : vector<8x32xf32>
    %325 = arith.mulf %309, %311 : vector<8x32xf32>
    %326 = arith.addf %324, %325 : vector<8x32xf32>
    %327 = math.tanh %326 : vector<8x32xf32>
    %328 = arith.mulf %312, %327 : vector<8x32xf32>
    %c0_159 = arith.constant 0 : index
    %c0_160 = arith.constant 0 : index
    %329 = vector.load %arg15[%c0_159, %c0_160] : memref<8x32xf32, #tpu.memory_space<vmem>>, vector<8x32xf32>
    %330 = arith.mulf %320, %329 : vector<8x32xf32>
    %331 = arith.mulf %319, %321 : vector<8x32xf32>
    %332 = arith.addf %330, %331 : vector<8x32xf32>
    %333 = math.tanh %332 : vector<8x32xf32>
    %334 = arith.mulf %322, %333 : vector<8x32xf32>
    %335 = arith.index_cast %287 : i32 to index
    %c0_161 = arith.constant 0 : index
    %336 = vector.load %arg3[%335, %c0_161] : memref<64x1xf32, #tpu.memory_space<vmem>>, vector<8x1xf32>
    %337 = arith.index_cast %290 : i32 to index
    %c0_162 = arith.constant 0 : index
    %338 = vector.load %arg4[%337, %c0_162] : memref<64x1xf32, #tpu.memory_space<vmem>>, vector<8x1xf32>
    %cst_163 = arith.constant 0.000000e+00 : f32
    %339 = vector.broadcast %cst_163 : f32 to vector<8x1xf32>
    %340 = arith.cmpf ogt, %336, %339 : vector<8x1xf32>
    %cst_164 = arith.constant 0.000000e+00 : f32
    %341 = vector.broadcast %cst_164 : f32 to vector<8x1xf32>
    %342 = arith.cmpf ogt, %338, %341 : vector<8x1xf32>
    %c0_165 = arith.constant 0 : index
    %c0_166 = arith.constant 0 : index
    %343 = vector.load %arg13[%c0_165, %c0_166] : memref<8x32xf32, #tpu.memory_space<vmem>>, vector<8x32xf32>
    %344 = vector.shape_cast %340 : vector<8x1xi1> to vector<8x1xi1>
    %345 = vector.broadcast %344 : vector<8x1xi1> to vector<8x32xi1>
    %346 = arith.select %345, %326, %343 : vector<8x32xi1>, vector<8x32xf32>
    %c0_167 = arith.constant 0 : index
    %c0_168 = arith.constant 0 : index
    %347 = vector.load %arg13[%c0_167, %c0_168] : memref<8x32xf32, #tpu.memory_space<vmem>>, vector<8x32xf32>
    tpu.vector_store %arg13[%c0_167, %c0_168], %346 {strides = array<i32>} : memref<8x32xf32, #tpu.memory_space<vmem>>, vector<8x32xf32>,
    %c0_169 = arith.constant 0 : index
    %c0_170 = arith.constant 0 : index
    %348 = vector.load %arg12[%c0_169, %c0_170] : memref<8x32xf32, #tpu.memory_space<vmem>>, vector<8x32xf32>
    %349 = vector.shape_cast %340 : vector<8x1xi1> to vector<8x1xi1>
    %350 = vector.broadcast %349 : vector<8x1xi1> to vector<8x32xi1>
    %351 = arith.select %350, %328, %348 : vector<8x32xi1>, vector<8x32xf32>
    %c0_171 = arith.constant 0 : index
    %c0_172 = arith.constant 0 : index
    %352 = vector.load %arg12[%c0_171, %c0_172] : memref<8x32xf32, #tpu.memory_space<vmem>>, vector<8x32xf32>
    tpu.vector_store %arg12[%c0_171, %c0_172], %351 {strides = array<i32>} : memref<8x32xf32, #tpu.memory_space<vmem>>, vector<8x32xf32>,
    %c0_173 = arith.constant 0 : index
    %c0_174 = arith.constant 0 : index
    %353 = vector.load %arg15[%c0_173, %c0_174] : memref<8x32xf32, #tpu.memory_space<vmem>>, vector<8x32xf32>
    %354 = vector.shape_cast %342 : vector<8x1xi1> to vector<8x1xi1>
    %355 = vector.broadcast %354 : vector<8x1xi1> to vector<8x32xi1>
    %356 = arith.select %355, %332, %353 : vector<8x32xi1>, vector<8x32xf32>
    %c0_175 = arith.constant 0 : index
    %c0_176 = arith.constant 0 : index
    %357 = vector.load %arg15[%c0_175, %c0_176] : memref<8x32xf32, #tpu.memory_space<vmem>>, vector<8x32xf32>
    tpu.vector_store %arg15[%c0_175, %c0_176], %356 {strides = array<i32>} : memref<8x32xf32, #tpu.memory_space<vmem>>, vector<8x32xf32>,
    %c0_177 = arith.constant 0 : index
    %c0_178 = arith.constant 0 : index
    %358 = vector.load %arg14[%c0_177, %c0_178] : memref<8x32xf32, #tpu.memory_space<vmem>>, vector<8x32xf32>
    %359 = vector.shape_cast %342 : vector<8x1xi1> to vector<8x1xi1>
    %360 = vector.broadcast %359 : vector<8x1xi1> to vector<8x32xi1>
    %361 = arith.select %360, %334, %358 : vector<8x32xi1>, vector<8x32xf32>
    %c0_179 = arith.constant 0 : index
    %c0_180 = arith.constant 0 : index
    %362 = vector.load %arg14[%c0_179, %c0_180] : memref<8x32xf32, #tpu.memory_space<vmem>>, vector<8x32xf32>
    tpu.vector_store %arg14[%c0_179, %c0_180], %361 {strides = array<i32>} : memref<8x32xf32, #tpu.memory_space<vmem>>, vector<8x32xf32>,
    %363 = vector.broadcast %336 : vector<8x1xf32> to vector<8x32xf32>
    %364 = arith.mulf %328, %363 : vector<8x32xf32>
    %365 = arith.truncf %364 : vector<8x32xf32> to vector<8x32xbf16>
    %366 = arith.index_cast %287 : i32 to index
    %c0_181 = arith.constant 0 : index
    %367 = vector.load %arg8[%366, %c0_181] : memref<64x32xbf16, #tpu.memory_space<vmem>>, vector<8x32xbf16>
    tpu.vector_store %arg8[%366, %c0_181], %365 {strides = array<i32>} : memref<64x32xbf16, #tpu.memory_space<vmem>>, vector<8x32xbf16>,
    %368 = vector.broadcast %338 : vector<8x1xf32> to vector<8x32xf32>
    %369 = arith.mulf %334, %368 : vector<8x32xf32>
    %370 = arith.truncf %369 : vector<8x32xf32> to vector<8x32xbf16>
    %371 = arith.index_cast %290 : i32 to index
    %c0_182 = arith.constant 0 : index
    %372 = vector.load %arg9[%371, %c0_182] : memref<64x32xbf16, #tpu.memory_space<vmem>>, vector<8x32xbf16>
    tpu.vector_store %arg9[%371, %c0_182], %370 {strides = array<i32>} : memref<64x32xbf16, #tpu.memory_space<vmem>>, vector<8x32xbf16>,
    %c4_i32 = arith.constant 4 : i32
    %c8_i32_183 = arith.constant 8 : i32
    %373 = arith.muli %c4_i32, %c8_i32_183 : i32
    %374 = tpu.assume_multiple %373, 8 : i32
    %c7_i32_184 = arith.constant 7 : i32
    %375 = arith.subi %c7_i32_184, %c4_i32 : i32
    %c8_i32_185 = arith.constant 8 : i32
    %376 = arith.muli %375, %c8_i32_185 : i32
    %377 = tpu.assume_multiple %376, 8 : i32
    %378 = arith.index_cast %374 : i32 to index
    %c0_186 = arith.constant 0 : index
    %379 = vector.load %arg10[%378, %c0_186] : memref<64x128xf32, #tpu.memory_space<vmem>>, vector<8x128xf32>
    %c0_187 = arith.constant 0 : index
    %c0_188 = arith.constant 0 : index
    %380 = vector.load %arg12[%c0_187, %c0_188] : memref<8x32xf32, #tpu.memory_space<vmem>>, vector<8x32xf32>
    %381 = arith.truncf %380 : vector<8x32xf32> to vector<8x32xbf16>
    %cst_189 = arith.constant dense<0.000000e+00> : vector<8x128xf32>
    %382 = tpu.matmul %381, %22, %cst_189 {dimension_numbers = #tpu.dot_dimension_numbers<[1], [0], [0], [1], [0, 0, 1, 1], [], []>} : vector<8x32xbf16>, vector<32x128xbf16>, vector<8x128xf32> -> vector<8x128xf32>
    %383 = arith.addf %379, %382 : vector<8x128xf32>
    %384 = arith.index_cast %377 : i32 to index
    %c0_190 = arith.constant 0 : index
    %385 = vector.load %arg11[%384, %c0_190] : memref<64x128xf32, #tpu.memory_space<vmem>>, vector<8x128xf32>
    %c0_191 = arith.constant 0 : index
    %c0_192 = arith.constant 0 : index
    %386 = vector.load %arg14[%c0_191, %c0_192] : memref<8x32xf32, #tpu.memory_space<vmem>>, vector<8x32xf32>
    %387 = arith.truncf %386 : vector<8x32xf32> to vector<8x32xbf16>
    %cst_193 = arith.constant dense<0.000000e+00> : vector<8x128xf32>
    %388 = tpu.matmul %387, %24, %cst_193 {dimension_numbers = #tpu.dot_dimension_numbers<[1], [0], [0], [1], [0, 0, 1, 1], [], []>} : vector<8x32xbf16>, vector<32x128xbf16>, vector<8x128xf32> -> vector<8x128xf32>
    %389 = arith.addf %385, %388 : vector<8x128xf32>
    %390 = arith.negf %383 : vector<8x128xf32>
    %391 = math.exp %390 : vector<8x128xf32>
    %cst_194 = arith.constant 1.000000e+00 : f32
    %392 = vector.broadcast %cst_194 : f32 to vector<8x128xf32>
    %393 = arith.addf %392, %391 : vector<8x128xf32>
    %394 = arith.divf %392, %393 : vector<8x128xf32>
    %395 = math.tanh %383 : vector<8x128xf32>
    %396 = vector.extract_strided_slice %394 {offsets = [0, 0], sizes = [8, 32], strides = [1, 1]} : vector<8x128xf32> to vector<8x32xf32>
    %397 = vector.extract_strided_slice %394 {offsets = [0, 32], sizes = [8, 32], strides = [1, 1]} : vector<8x128xf32> to vector<8x32xf32>
    %398 = vector.extract_strided_slice %395 {offsets = [0, 64], sizes = [8, 32], strides = [1, 1]} : vector<8x128xf32> to vector<8x32xf32>
    %399 = vector.extract_strided_slice %394 {offsets = [0, 96], sizes = [8, 32], strides = [1, 1]} : vector<8x128xf32> to vector<8x32xf32>
    %400 = arith.negf %389 : vector<8x128xf32>
    %401 = math.exp %400 : vector<8x128xf32>
    %cst_195 = arith.constant 1.000000e+00 : f32
    %402 = vector.broadcast %cst_195 : f32 to vector<8x128xf32>
    %403 = arith.addf %402, %401 : vector<8x128xf32>
    %404 = arith.divf %402, %403 : vector<8x128xf32>
    %405 = math.tanh %389 : vector<8x128xf32>
    %406 = vector.extract_strided_slice %404 {offsets = [0, 0], sizes = [8, 32], strides = [1, 1]} : vector<8x128xf32> to vector<8x32xf32>
    %407 = vector.extract_strided_slice %404 {offsets = [0, 32], sizes = [8, 32], strides = [1, 1]} : vector<8x128xf32> to vector<8x32xf32>
    %408 = vector.extract_strided_slice %405 {offsets = [0, 64], sizes = [8, 32], strides = [1, 1]} : vector<8x128xf32> to vector<8x32xf32>
    %409 = vector.extract_strided_slice %404 {offsets = [0, 96], sizes = [8, 32], strides = [1, 1]} : vector<8x128xf32> to vector<8x32xf32>
    %c0_196 = arith.constant 0 : index
    %c0_197 = arith.constant 0 : index
    %410 = vector.load %arg13[%c0_196, %c0_197] : memref<8x32xf32, #tpu.memory_space<vmem>>, vector<8x32xf32>
    %411 = arith.mulf %397, %410 : vector<8x32xf32>
    %412 = arith.mulf %396, %398 : vector<8x32xf32>
    %413 = arith.addf %411, %412 : vector<8x32xf32>
    %414 = math.tanh %413 : vector<8x32xf32>
    %415 = arith.mulf %399, %414 : vector<8x32xf32>
    %c0_198 = arith.constant 0 : index
    %c0_199 = arith.constant 0 : index
    %416 = vector.load %arg15[%c0_198, %c0_199] : memref<8x32xf32, #tpu.memory_space<vmem>>, vector<8x32xf32>
    %417 = arith.mulf %407, %416 : vector<8x32xf32>
    %418 = arith.mulf %406, %408 : vector<8x32xf32>
    %419 = arith.addf %417, %418 : vector<8x32xf32>
    %420 = math.tanh %419 : vector<8x32xf32>
    %421 = arith.mulf %409, %420 : vector<8x32xf32>
    %422 = arith.index_cast %374 : i32 to index
    %c0_200 = arith.constant 0 : index
    %423 = vector.load %arg3[%422, %c0_200] : memref<64x1xf32, #tpu.memory_space<vmem>>, vector<8x1xf32>
    %424 = arith.index_cast %377 : i32 to index
    %c0_201 = arith.constant 0 : index
    %425 = vector.load %arg4[%424, %c0_201] : memref<64x1xf32, #tpu.memory_space<vmem>>, vector<8x1xf32>
    %cst_202 = arith.constant 0.000000e+00 : f32
    %426 = vector.broadcast %cst_202 : f32 to vector<8x1xf32>
    %427 = arith.cmpf ogt, %423, %426 : vector<8x1xf32>
    %cst_203 = arith.constant 0.000000e+00 : f32
    %428 = vector.broadcast %cst_203 : f32 to vector<8x1xf32>
    %429 = arith.cmpf ogt, %425, %428 : vector<8x1xf32>
    %c0_204 = arith.constant 0 : index
    %c0_205 = arith.constant 0 : index
    %430 = vector.load %arg13[%c0_204, %c0_205] : memref<8x32xf32, #tpu.memory_space<vmem>>, vector<8x32xf32>
    %431 = vector.shape_cast %427 : vector<8x1xi1> to vector<8x1xi1>
    %432 = vector.broadcast %431 : vector<8x1xi1> to vector<8x32xi1>
    %433 = arith.select %432, %413, %430 : vector<8x32xi1>, vector<8x32xf32>
    %c0_206 = arith.constant 0 : index
    %c0_207 = arith.constant 0 : index
    %434 = vector.load %arg13[%c0_206, %c0_207] : memref<8x32xf32, #tpu.memory_space<vmem>>, vector<8x32xf32>
    tpu.vector_store %arg13[%c0_206, %c0_207], %433 {strides = array<i32>} : memref<8x32xf32, #tpu.memory_space<vmem>>, vector<8x32xf32>,
    %c0_208 = arith.constant 0 : index
    %c0_209 = arith.constant 0 : index
    %435 = vector.load %arg12[%c0_208, %c0_209] : memref<8x32xf32, #tpu.memory_space<vmem>>, vector<8x32xf32>
    %436 = vector.shape_cast %427 : vector<8x1xi1> to vector<8x1xi1>
    %437 = vector.broadcast %436 : vector<8x1xi1> to vector<8x32xi1>
    %438 = arith.select %437, %415, %435 : vector<8x32xi1>, vector<8x32xf32>
    %c0_210 = arith.constant 0 : index
    %c0_211 = arith.constant 0 : index
    %439 = vector.load %arg12[%c0_210, %c0_211] : memref<8x32xf32, #tpu.memory_space<vmem>>, vector<8x32xf32>
    tpu.vector_store %arg12[%c0_210, %c0_211], %438 {strides = array<i32>} : memref<8x32xf32, #tpu.memory_space<vmem>>, vector<8x32xf32>,
    %c0_212 = arith.constant 0 : index
    %c0_213 = arith.constant 0 : index
    %440 = vector.load %arg15[%c0_212, %c0_213] : memref<8x32xf32, #tpu.memory_space<vmem>>, vector<8x32xf32>
    %441 = vector.shape_cast %429 : vector<8x1xi1> to vector<8x1xi1>
    %442 = vector.broadcast %441 : vector<8x1xi1> to vector<8x32xi1>
    %443 = arith.select %442, %419, %440 : vector<8x32xi1>, vector<8x32xf32>
    %c0_214 = arith.constant 0 : index
    %c0_215 = arith.constant 0 : index
    %444 = vector.load %arg15[%c0_214, %c0_215] : memref<8x32xf32, #tpu.memory_space<vmem>>, vector<8x32xf32>
    tpu.vector_store %arg15[%c0_214, %c0_215], %443 {strides = array<i32>} : memref<8x32xf32, #tpu.memory_space<vmem>>, vector<8x32xf32>,
    %c0_216 = arith.constant 0 : index
    %c0_217 = arith.constant 0 : index
    %445 = vector.load %arg14[%c0_216, %c0_217] : memref<8x32xf32, #tpu.memory_space<vmem>>, vector<8x32xf32>
    %446 = vector.shape_cast %429 : vector<8x1xi1> to vector<8x1xi1>
    %447 = vector.broadcast %446 : vector<8x1xi1> to vector<8x32xi1>
    %448 = arith.select %447, %421, %445 : vector<8x32xi1>, vector<8x32xf32>
    %c0_218 = arith.constant 0 : index
    %c0_219 = arith.constant 0 : index
    %449 = vector.load %arg14[%c0_218, %c0_219] : memref<8x32xf32, #tpu.memory_space<vmem>>, vector<8x32xf32>
    tpu.vector_store %arg14[%c0_218, %c0_219], %448 {strides = array<i32>} : memref<8x32xf32, #tpu.memory_space<vmem>>, vector<8x32xf32>,
    %450 = vector.broadcast %423 : vector<8x1xf32> to vector<8x32xf32>
    %451 = arith.mulf %415, %450 : vector<8x32xf32>
    %452 = arith.truncf %451 : vector<8x32xf32> to vector<8x32xbf16>
    %453 = arith.index_cast %374 : i32 to index
    %c0_220 = arith.constant 0 : index
    %454 = vector.load %arg8[%453, %c0_220] : memref<64x32xbf16, #tpu.memory_space<vmem>>, vector<8x32xbf16>
    tpu.vector_store %arg8[%453, %c0_220], %452 {strides = array<i32>} : memref<64x32xbf16, #tpu.memory_space<vmem>>, vector<8x32xbf16>,
    %455 = vector.broadcast %425 : vector<8x1xf32> to vector<8x32xf32>
    %456 = arith.mulf %421, %455 : vector<8x32xf32>
    %457 = arith.truncf %456 : vector<8x32xf32> to vector<8x32xbf16>
    %458 = arith.index_cast %377 : i32 to index
    %c0_221 = arith.constant 0 : index
    %459 = vector.load %arg9[%458, %c0_221] : memref<64x32xbf16, #tpu.memory_space<vmem>>, vector<8x32xbf16>
    tpu.vector_store %arg9[%458, %c0_221], %457 {strides = array<i32>} : memref<64x32xbf16, #tpu.memory_space<vmem>>, vector<8x32xbf16>,
    %c5_i32 = arith.constant 5 : i32
    %c8_i32_222 = arith.constant 8 : i32
    %460 = arith.muli %c5_i32, %c8_i32_222 : i32
    %461 = tpu.assume_multiple %460, 8 : i32
    %c7_i32_223 = arith.constant 7 : i32
    %462 = arith.subi %c7_i32_223, %c5_i32 : i32
    %c8_i32_224 = arith.constant 8 : i32
    %463 = arith.muli %462, %c8_i32_224 : i32
    %464 = tpu.assume_multiple %463, 8 : i32
    %465 = arith.index_cast %461 : i32 to index
    %c0_225 = arith.constant 0 : index
    %466 = vector.load %arg10[%465, %c0_225] : memref<64x128xf32, #tpu.memory_space<vmem>>, vector<8x128xf32>
    %c0_226 = arith.constant 0 : index
    %c0_227 = arith.constant 0 : index
    %467 = vector.load %arg12[%c0_226, %c0_227] : memref<8x32xf32, #tpu.memory_space<vmem>>, vector<8x32xf32>
    %468 = arith.truncf %467 : vector<8x32xf32> to vector<8x32xbf16>
    %cst_228 = arith.constant dense<0.000000e+00> : vector<8x128xf32>
    %469 = tpu.matmul %468, %22, %cst_228 {dimension_numbers = #tpu.dot_dimension_numbers<[1], [0], [0], [1], [0, 0, 1, 1], [], []>} : vector<8x32xbf16>, vector<32x128xbf16>, vector<8x128xf32> -> vector<8x128xf32>
    %470 = arith.addf %466, %469 : vector<8x128xf32>
    %471 = arith.index_cast %464 : i32 to index
    %c0_229 = arith.constant 0 : index
    %472 = vector.load %arg11[%471, %c0_229] : memref<64x128xf32, #tpu.memory_space<vmem>>, vector<8x128xf32>
    %c0_230 = arith.constant 0 : index
    %c0_231 = arith.constant 0 : index
    %473 = vector.load %arg14[%c0_230, %c0_231] : memref<8x32xf32, #tpu.memory_space<vmem>>, vector<8x32xf32>
    %474 = arith.truncf %473 : vector<8x32xf32> to vector<8x32xbf16>
    %cst_232 = arith.constant dense<0.000000e+00> : vector<8x128xf32>
    %475 = tpu.matmul %474, %24, %cst_232 {dimension_numbers = #tpu.dot_dimension_numbers<[1], [0], [0], [1], [0, 0, 1, 1], [], []>} : vector<8x32xbf16>, vector<32x128xbf16>, vector<8x128xf32> -> vector<8x128xf32>
    %476 = arith.addf %472, %475 : vector<8x128xf32>
    %477 = arith.negf %470 : vector<8x128xf32>
    %478 = math.exp %477 : vector<8x128xf32>
    %cst_233 = arith.constant 1.000000e+00 : f32
    %479 = vector.broadcast %cst_233 : f32 to vector<8x128xf32>
    %480 = arith.addf %479, %478 : vector<8x128xf32>
    %481 = arith.divf %479, %480 : vector<8x128xf32>
    %482 = math.tanh %470 : vector<8x128xf32>
    %483 = vector.extract_strided_slice %481 {offsets = [0, 0], sizes = [8, 32], strides = [1, 1]} : vector<8x128xf32> to vector<8x32xf32>
    %484 = vector.extract_strided_slice %481 {offsets = [0, 32], sizes = [8, 32], strides = [1, 1]} : vector<8x128xf32> to vector<8x32xf32>
    %485 = vector.extract_strided_slice %482 {offsets = [0, 64], sizes = [8, 32], strides = [1, 1]} : vector<8x128xf32> to vector<8x32xf32>
    %486 = vector.extract_strided_slice %481 {offsets = [0, 96], sizes = [8, 32], strides = [1, 1]} : vector<8x128xf32> to vector<8x32xf32>
    %487 = arith.negf %476 : vector<8x128xf32>
    %488 = math.exp %487 : vector<8x128xf32>
    %cst_234 = arith.constant 1.000000e+00 : f32
    %489 = vector.broadcast %cst_234 : f32 to vector<8x128xf32>
    %490 = arith.addf %489, %488 : vector<8x128xf32>
    %491 = arith.divf %489, %490 : vector<8x128xf32>
    %492 = math.tanh %476 : vector<8x128xf32>
    %493 = vector.extract_strided_slice %491 {offsets = [0, 0], sizes = [8, 32], strides = [1, 1]} : vector<8x128xf32> to vector<8x32xf32>
    %494 = vector.extract_strided_slice %491 {offsets = [0, 32], sizes = [8, 32], strides = [1, 1]} : vector<8x128xf32> to vector<8x32xf32>
    %495 = vector.extract_strided_slice %492 {offsets = [0, 64], sizes = [8, 32], strides = [1, 1]} : vector<8x128xf32> to vector<8x32xf32>
    %496 = vector.extract_strided_slice %491 {offsets = [0, 96], sizes = [8, 32], strides = [1, 1]} : vector<8x128xf32> to vector<8x32xf32>
    %c0_235 = arith.constant 0 : index
    %c0_236 = arith.constant 0 : index
    %497 = vector.load %arg13[%c0_235, %c0_236] : memref<8x32xf32, #tpu.memory_space<vmem>>, vector<8x32xf32>
    %498 = arith.mulf %484, %497 : vector<8x32xf32>
    %499 = arith.mulf %483, %485 : vector<8x32xf32>
    %500 = arith.addf %498, %499 : vector<8x32xf32>
    %501 = math.tanh %500 : vector<8x32xf32>
    %502 = arith.mulf %486, %501 : vector<8x32xf32>
    %c0_237 = arith.constant 0 : index
    %c0_238 = arith.constant 0 : index
    %503 = vector.load %arg15[%c0_237, %c0_238] : memref<8x32xf32, #tpu.memory_space<vmem>>, vector<8x32xf32>
    %504 = arith.mulf %494, %503 : vector<8x32xf32>
    %505 = arith.mulf %493, %495 : vector<8x32xf32>
    %506 = arith.addf %504, %505 : vector<8x32xf32>
    %507 = math.tanh %506 : vector<8x32xf32>
    %508 = arith.mulf %496, %507 : vector<8x32xf32>
    %509 = arith.index_cast %461 : i32 to index
    %c0_239 = arith.constant 0 : index
    %510 = vector.load %arg3[%509, %c0_239] : memref<64x1xf32, #tpu.memory_space<vmem>>, vector<8x1xf32>
    %511 = arith.index_cast %464 : i32 to index
    %c0_240 = arith.constant 0 : index
    %512 = vector.load %arg4[%511, %c0_240] : memref<64x1xf32, #tpu.memory_space<vmem>>, vector<8x1xf32>
    %cst_241 = arith.constant 0.000000e+00 : f32
    %513 = vector.broadcast %cst_241 : f32 to vector<8x1xf32>
    %514 = arith.cmpf ogt, %510, %513 : vector<8x1xf32>
    %cst_242 = arith.constant 0.000000e+00 : f32
    %515 = vector.broadcast %cst_242 : f32 to vector<8x1xf32>
    %516 = arith.cmpf ogt, %512, %515 : vector<8x1xf32>
    %c0_243 = arith.constant 0 : index
    %c0_244 = arith.constant 0 : index
    %517 = vector.load %arg13[%c0_243, %c0_244] : memref<8x32xf32, #tpu.memory_space<vmem>>, vector<8x32xf32>
    %518 = vector.shape_cast %514 : vector<8x1xi1> to vector<8x1xi1>
    %519 = vector.broadcast %518 : vector<8x1xi1> to vector<8x32xi1>
    %520 = arith.select %519, %500, %517 : vector<8x32xi1>, vector<8x32xf32>
    %c0_245 = arith.constant 0 : index
    %c0_246 = arith.constant 0 : index
    %521 = vector.load %arg13[%c0_245, %c0_246] : memref<8x32xf32, #tpu.memory_space<vmem>>, vector<8x32xf32>
    tpu.vector_store %arg13[%c0_245, %c0_246], %520 {strides = array<i32>} : memref<8x32xf32, #tpu.memory_space<vmem>>, vector<8x32xf32>,
    %c0_247 = arith.constant 0 : index
    %c0_248 = arith.constant 0 : index
    %522 = vector.load %arg12[%c0_247, %c0_248] : memref<8x32xf32, #tpu.memory_space<vmem>>, vector<8x32xf32>
    %523 = vector.shape_cast %514 : vector<8x1xi1> to vector<8x1xi1>
    %524 = vector.broadcast %523 : vector<8x1xi1> to vector<8x32xi1>
    %525 = arith.select %524, %502, %522 : vector<8x32xi1>, vector<8x32xf32>
    %c0_249 = arith.constant 0 : index
    %c0_250 = arith.constant 0 : index
    %526 = vector.load %arg12[%c0_249, %c0_250] : memref<8x32xf32, #tpu.memory_space<vmem>>, vector<8x32xf32>
    tpu.vector_store %arg12[%c0_249, %c0_250], %525 {strides = array<i32>} : memref<8x32xf32, #tpu.memory_space<vmem>>, vector<8x32xf32>,
    %c0_251 = arith.constant 0 : index
    %c0_252 = arith.constant 0 : index
    %527 = vector.load %arg15[%c0_251, %c0_252] : memref<8x32xf32, #tpu.memory_space<vmem>>, vector<8x32xf32>
    %528 = vector.shape_cast %516 : vector<8x1xi1> to vector<8x1xi1>
    %529 = vector.broadcast %528 : vector<8x1xi1> to vector<8x32xi1>
    %530 = arith.select %529, %506, %527 : vector<8x32xi1>, vector<8x32xf32>
    %c0_253 = arith.constant 0 : index
    %c0_254 = arith.constant 0 : index
    %531 = vector.load %arg15[%c0_253, %c0_254] : memref<8x32xf32, #tpu.memory_space<vmem>>, vector<8x32xf32>
    tpu.vector_store %arg15[%c0_253, %c0_254], %530 {strides = array<i32>} : memref<8x32xf32, #tpu.memory_space<vmem>>, vector<8x32xf32>,
    %c0_255 = arith.constant 0 : index
    %c0_256 = arith.constant 0 : index
    %532 = vector.load %arg14[%c0_255, %c0_256] : memref<8x32xf32, #tpu.memory_space<vmem>>, vector<8x32xf32>
    %533 = vector.shape_cast %516 : vector<8x1xi1> to vector<8x1xi1>
    %534 = vector.broadcast %533 : vector<8x1xi1> to vector<8x32xi1>
    %535 = arith.select %534, %508, %532 : vector<8x32xi1>, vector<8x32xf32>
    %c0_257 = arith.constant 0 : index
    %c0_258 = arith.constant 0 : index
    %536 = vector.load %arg14[%c0_257, %c0_258] : memref<8x32xf32, #tpu.memory_space<vmem>>, vector<8x32xf32>
    tpu.vector_store %arg14[%c0_257, %c0_258], %535 {strides = array<i32>} : memref<8x32xf32, #tpu.memory_space<vmem>>, vector<8x32xf32>,
    %537 = vector.broadcast %510 : vector<8x1xf32> to vector<8x32xf32>
    %538 = arith.mulf %502, %537 : vector<8x32xf32>
    %539 = arith.truncf %538 : vector<8x32xf32> to vector<8x32xbf16>
    %540 = arith.index_cast %461 : i32 to index
    %c0_259 = arith.constant 0 : index
    %541 = vector.load %arg8[%540, %c0_259] : memref<64x32xbf16, #tpu.memory_space<vmem>>, vector<8x32xbf16>
    tpu.vector_store %arg8[%540, %c0_259], %539 {strides = array<i32>} : memref<64x32xbf16, #tpu.memory_space<vmem>>, vector<8x32xbf16>,
    %542 = vector.broadcast %512 : vector<8x1xf32> to vector<8x32xf32>
    %543 = arith.mulf %508, %542 : vector<8x32xf32>
    %544 = arith.truncf %543 : vector<8x32xf32> to vector<8x32xbf16>
    %545 = arith.index_cast %464 : i32 to index
    %c0_260 = arith.constant 0 : index
    %546 = vector.load %arg9[%545, %c0_260] : memref<64x32xbf16, #tpu.memory_space<vmem>>, vector<8x32xbf16>
    tpu.vector_store %arg9[%545, %c0_260], %544 {strides = array<i32>} : memref<64x32xbf16, #tpu.memory_space<vmem>>, vector<8x32xbf16>,
    %c6_i32 = arith.constant 6 : i32
    %c8_i32_261 = arith.constant 8 : i32
    %547 = arith.muli %c6_i32, %c8_i32_261 : i32
    %548 = tpu.assume_multiple %547, 8 : i32
    %c7_i32_262 = arith.constant 7 : i32
    %549 = arith.subi %c7_i32_262, %c6_i32 : i32
    %c8_i32_263 = arith.constant 8 : i32
    %550 = arith.muli %549, %c8_i32_263 : i32
    %551 = tpu.assume_multiple %550, 8 : i32
    %552 = arith.index_cast %548 : i32 to index
    %c0_264 = arith.constant 0 : index
    %553 = vector.load %arg10[%552, %c0_264] : memref<64x128xf32, #tpu.memory_space<vmem>>, vector<8x128xf32>
    %c0_265 = arith.constant 0 : index
    %c0_266 = arith.constant 0 : index
    %554 = vector.load %arg12[%c0_265, %c0_266] : memref<8x32xf32, #tpu.memory_space<vmem>>, vector<8x32xf32>
    %555 = arith.truncf %554 : vector<8x32xf32> to vector<8x32xbf16>
    %cst_267 = arith.constant dense<0.000000e+00> : vector<8x128xf32>
    %556 = tpu.matmul %555, %22, %cst_267 {dimension_numbers = #tpu.dot_dimension_numbers<[1], [0], [0], [1], [0, 0, 1, 1], [], []>} : vector<8x32xbf16>, vector<32x128xbf16>, vector<8x128xf32> -> vector<8x128xf32>
    %557 = arith.addf %553, %556 : vector<8x128xf32>
    %558 = arith.index_cast %551 : i32 to index
    %c0_268 = arith.constant 0 : index
    %559 = vector.load %arg11[%558, %c0_268] : memref<64x128xf32, #tpu.memory_space<vmem>>, vector<8x128xf32>
    %c0_269 = arith.constant 0 : index
    %c0_270 = arith.constant 0 : index
    %560 = vector.load %arg14[%c0_269, %c0_270] : memref<8x32xf32, #tpu.memory_space<vmem>>, vector<8x32xf32>
    %561 = arith.truncf %560 : vector<8x32xf32> to vector<8x32xbf16>
    %cst_271 = arith.constant dense<0.000000e+00> : vector<8x128xf32>
    %562 = tpu.matmul %561, %24, %cst_271 {dimension_numbers = #tpu.dot_dimension_numbers<[1], [0], [0], [1], [0, 0, 1, 1], [], []>} : vector<8x32xbf16>, vector<32x128xbf16>, vector<8x128xf32> -> vector<8x128xf32>
    %563 = arith.addf %559, %562 : vector<8x128xf32>
    %564 = arith.negf %557 : vector<8x128xf32>
    %565 = math.exp %564 : vector<8x128xf32>
    %cst_272 = arith.constant 1.000000e+00 : f32
    %566 = vector.broadcast %cst_272 : f32 to vector<8x128xf32>
    %567 = arith.addf %566, %565 : vector<8x128xf32>
    %568 = arith.divf %566, %567 : vector<8x128xf32>
    %569 = math.tanh %557 : vector<8x128xf32>
    %570 = vector.extract_strided_slice %568 {offsets = [0, 0], sizes = [8, 32], strides = [1, 1]} : vector<8x128xf32> to vector<8x32xf32>
    %571 = vector.extract_strided_slice %568 {offsets = [0, 32], sizes = [8, 32], strides = [1, 1]} : vector<8x128xf32> to vector<8x32xf32>
    %572 = vector.extract_strided_slice %569 {offsets = [0, 64], sizes = [8, 32], strides = [1, 1]} : vector<8x128xf32> to vector<8x32xf32>
    %573 = vector.extract_strided_slice %568 {offsets = [0, 96], sizes = [8, 32], strides = [1, 1]} : vector<8x128xf32> to vector<8x32xf32>
    %574 = arith.negf %563 : vector<8x128xf32>
    %575 = math.exp %574 : vector<8x128xf32>
    %cst_273 = arith.constant 1.000000e+00 : f32
    %576 = vector.broadcast %cst_273 : f32 to vector<8x128xf32>
    %577 = arith.addf %576, %575 : vector<8x128xf32>
    %578 = arith.divf %576, %577 : vector<8x128xf32>
    %579 = math.tanh %563 : vector<8x128xf32>
    %580 = vector.extract_strided_slice %578 {offsets = [0, 0], sizes = [8, 32], strides = [1, 1]} : vector<8x128xf32> to vector<8x32xf32>
    %581 = vector.extract_strided_slice %578 {offsets = [0, 32], sizes = [8, 32], strides = [1, 1]} : vector<8x128xf32> to vector<8x32xf32>
    %582 = vector.extract_strided_slice %579 {offsets = [0, 64], sizes = [8, 32], strides = [1, 1]} : vector<8x128xf32> to vector<8x32xf32>
    %583 = vector.extract_strided_slice %578 {offsets = [0, 96], sizes = [8, 32], strides = [1, 1]} : vector<8x128xf32> to vector<8x32xf32>
    %c0_274 = arith.constant 0 : index
    %c0_275 = arith.constant 0 : index
    %584 = vector.load %arg13[%c0_274, %c0_275] : memref<8x32xf32, #tpu.memory_space<vmem>>, vector<8x32xf32>
    %585 = arith.mulf %571, %584 : vector<8x32xf32>
    %586 = arith.mulf %570, %572 : vector<8x32xf32>
    %587 = arith.addf %585, %586 : vector<8x32xf32>
    %588 = math.tanh %587 : vector<8x32xf32>
    %589 = arith.mulf %573, %588 : vector<8x32xf32>
    %c0_276 = arith.constant 0 : index
    %c0_277 = arith.constant 0 : index
    %590 = vector.load %arg15[%c0_276, %c0_277] : memref<8x32xf32, #tpu.memory_space<vmem>>, vector<8x32xf32>
    %591 = arith.mulf %581, %590 : vector<8x32xf32>
    %592 = arith.mulf %580, %582 : vector<8x32xf32>
    %593 = arith.addf %591, %592 : vector<8x32xf32>
    %594 = math.tanh %593 : vector<8x32xf32>
    %595 = arith.mulf %583, %594 : vector<8x32xf32>
    %596 = arith.index_cast %548 : i32 to index
    %c0_278 = arith.constant 0 : index
    %597 = vector.load %arg3[%596, %c0_278] : memref<64x1xf32, #tpu.memory_space<vmem>>, vector<8x1xf32>
    %598 = arith.index_cast %551 : i32 to index
    %c0_279 = arith.constant 0 : index
    %599 = vector.load %arg4[%598, %c0_279] : memref<64x1xf32, #tpu.memory_space<vmem>>, vector<8x1xf32>
    %cst_280 = arith.constant 0.000000e+00 : f32
    %600 = vector.broadcast %cst_280 : f32 to vector<8x1xf32>
    %601 = arith.cmpf ogt, %597, %600 : vector<8x1xf32>
    %cst_281 = arith.constant 0.000000e+00 : f32
    %602 = vector.broadcast %cst_281 : f32 to vector<8x1xf32>
    %603 = arith.cmpf ogt, %599, %602 : vector<8x1xf32>
    %c0_282 = arith.constant 0 : index
    %c0_283 = arith.constant 0 : index
    %604 = vector.load %arg13[%c0_282, %c0_283] : memref<8x32xf32, #tpu.memory_space<vmem>>, vector<8x32xf32>
    %605 = vector.shape_cast %601 : vector<8x1xi1> to vector<8x1xi1>
    %606 = vector.broadcast %605 : vector<8x1xi1> to vector<8x32xi1>
    %607 = arith.select %606, %587, %604 : vector<8x32xi1>, vector<8x32xf32>
    %c0_284 = arith.constant 0 : index
    %c0_285 = arith.constant 0 : index
    %608 = vector.load %arg13[%c0_284, %c0_285] : memref<8x32xf32, #tpu.memory_space<vmem>>, vector<8x32xf32>
    tpu.vector_store %arg13[%c0_284, %c0_285], %607 {strides = array<i32>} : memref<8x32xf32, #tpu.memory_space<vmem>>, vector<8x32xf32>,
    %c0_286 = arith.constant 0 : index
    %c0_287 = arith.constant 0 : index
    %609 = vector.load %arg12[%c0_286, %c0_287] : memref<8x32xf32, #tpu.memory_space<vmem>>, vector<8x32xf32>
    %610 = vector.shape_cast %601 : vector<8x1xi1> to vector<8x1xi1>
    %611 = vector.broadcast %610 : vector<8x1xi1> to vector<8x32xi1>
    %612 = arith.select %611, %589, %609 : vector<8x32xi1>, vector<8x32xf32>
    %c0_288 = arith.constant 0 : index
    %c0_289 = arith.constant 0 : index
    %613 = vector.load %arg12[%c0_288, %c0_289] : memref<8x32xf32, #tpu.memory_space<vmem>>, vector<8x32xf32>
    tpu.vector_store %arg12[%c0_288, %c0_289], %612 {strides = array<i32>} : memref<8x32xf32, #tpu.memory_space<vmem>>, vector<8x32xf32>,
    %c0_290 = arith.constant 0 : index
    %c0_291 = arith.constant 0 : index
    %614 = vector.load %arg15[%c0_290, %c0_291] : memref<8x32xf32, #tpu.memory_space<vmem>>, vector<8x32xf32>
    %615 = vector.shape_cast %603 : vector<8x1xi1> to vector<8x1xi1>
    %616 = vector.broadcast %615 : vector<8x1xi1> to vector<8x32xi1>
    %617 = arith.select %616, %593, %614 : vector<8x32xi1>, vector<8x32xf32>
    %c0_292 = arith.constant 0 : index
    %c0_293 = arith.constant 0 : index
    %618 = vector.load %arg15[%c0_292, %c0_293] : memref<8x32xf32, #tpu.memory_space<vmem>>, vector<8x32xf32>
    tpu.vector_store %arg15[%c0_292, %c0_293], %617 {strides = array<i32>} : memref<8x32xf32, #tpu.memory_space<vmem>>, vector<8x32xf32>,
    %c0_294 = arith.constant 0 : index
    %c0_295 = arith.constant 0 : index
    %619 = vector.load %arg14[%c0_294, %c0_295] : memref<8x32xf32, #tpu.memory_space<vmem>>, vector<8x32xf32>
    %620 = vector.shape_cast %603 : vector<8x1xi1> to vector<8x1xi1>
    %621 = vector.broadcast %620 : vector<8x1xi1> to vector<8x32xi1>
    %622 = arith.select %621, %595, %619 : vector<8x32xi1>, vector<8x32xf32>
    %c0_296 = arith.constant 0 : index
    %c0_297 = arith.constant 0 : index
    %623 = vector.load %arg14[%c0_296, %c0_297] : memref<8x32xf32, #tpu.memory_space<vmem>>, vector<8x32xf32>
    tpu.vector_store %arg14[%c0_296, %c0_297], %622 {strides = array<i32>} : memref<8x32xf32, #tpu.memory_space<vmem>>, vector<8x32xf32>,
    %624 = vector.broadcast %597 : vector<8x1xf32> to vector<8x32xf32>
    %625 = arith.mulf %589, %624 : vector<8x32xf32>
    %626 = arith.truncf %625 : vector<8x32xf32> to vector<8x32xbf16>
    %627 = arith.index_cast %548 : i32 to index
    %c0_298 = arith.constant 0 : index
    %628 = vector.load %arg8[%627, %c0_298] : memref<64x32xbf16, #tpu.memory_space<vmem>>, vector<8x32xbf16>
    tpu.vector_store %arg8[%627, %c0_298], %626 {strides = array<i32>} : memref<64x32xbf16, #tpu.memory_space<vmem>>, vector<8x32xbf16>,
    %629 = vector.broadcast %599 : vector<8x1xf32> to vector<8x32xf32>
    %630 = arith.mulf %595, %629 : vector<8x32xf32>
    %631 = arith.truncf %630 : vector<8x32xf32> to vector<8x32xbf16>
    %632 = arith.index_cast %551 : i32 to index
    %c0_299 = arith.constant 0 : index
    %633 = vector.load %arg9[%632, %c0_299] : memref<64x32xbf16, #tpu.memory_space<vmem>>, vector<8x32xbf16>
    tpu.vector_store %arg9[%632, %c0_299], %631 {strides = array<i32>} : memref<64x32xbf16, #tpu.memory_space<vmem>>, vector<8x32xbf16>,
    %c7_i32_300 = arith.constant 7 : i32
    %c8_i32_301 = arith.constant 8 : i32
    %634 = arith.muli %c7_i32_300, %c8_i32_301 : i32
    %635 = tpu.assume_multiple %634, 8 : i32
    %c7_i32_302 = arith.constant 7 : i32
    %636 = arith.subi %c7_i32_302, %c7_i32_300 : i32
    %c8_i32_303 = arith.constant 8 : i32
    %637 = arith.muli %636, %c8_i32_303 : i32
    %638 = tpu.assume_multiple %637, 8 : i32
    %639 = arith.index_cast %635 : i32 to index
    %c0_304 = arith.constant 0 : index
    %640 = vector.load %arg10[%639, %c0_304] : memref<64x128xf32, #tpu.memory_space<vmem>>, vector<8x128xf32>
    %c0_305 = arith.constant 0 : index
    %c0_306 = arith.constant 0 : index
    %641 = vector.load %arg12[%c0_305, %c0_306] : memref<8x32xf32, #tpu.memory_space<vmem>>, vector<8x32xf32>
    %642 = arith.truncf %641 : vector<8x32xf32> to vector<8x32xbf16>
    %cst_307 = arith.constant dense<0.000000e+00> : vector<8x128xf32>
    %643 = tpu.matmul %642, %22, %cst_307 {dimension_numbers = #tpu.dot_dimension_numbers<[1], [0], [0], [1], [0, 0, 1, 1], [], []>} : vector<8x32xbf16>, vector<32x128xbf16>, vector<8x128xf32> -> vector<8x128xf32>
    %644 = arith.addf %640, %643 : vector<8x128xf32>
    %645 = arith.index_cast %638 : i32 to index
    %c0_308 = arith.constant 0 : index
    %646 = vector.load %arg11[%645, %c0_308] : memref<64x128xf32, #tpu.memory_space<vmem>>, vector<8x128xf32>
    %c0_309 = arith.constant 0 : index
    %c0_310 = arith.constant 0 : index
    %647 = vector.load %arg14[%c0_309, %c0_310] : memref<8x32xf32, #tpu.memory_space<vmem>>, vector<8x32xf32>
    %648 = arith.truncf %647 : vector<8x32xf32> to vector<8x32xbf16>
    %cst_311 = arith.constant dense<0.000000e+00> : vector<8x128xf32>
    %649 = tpu.matmul %648, %24, %cst_311 {dimension_numbers = #tpu.dot_dimension_numbers<[1], [0], [0], [1], [0, 0, 1, 1], [], []>} : vector<8x32xbf16>, vector<32x128xbf16>, vector<8x128xf32> -> vector<8x128xf32>
    %650 = arith.addf %646, %649 : vector<8x128xf32>
    %651 = arith.negf %644 : vector<8x128xf32>
    %652 = math.exp %651 : vector<8x128xf32>
    %cst_312 = arith.constant 1.000000e+00 : f32
    %653 = vector.broadcast %cst_312 : f32 to vector<8x128xf32>
    %654 = arith.addf %653, %652 : vector<8x128xf32>
    %655 = arith.divf %653, %654 : vector<8x128xf32>
    %656 = math.tanh %644 : vector<8x128xf32>
    %657 = vector.extract_strided_slice %655 {offsets = [0, 0], sizes = [8, 32], strides = [1, 1]} : vector<8x128xf32> to vector<8x32xf32>
    %658 = vector.extract_strided_slice %655 {offsets = [0, 32], sizes = [8, 32], strides = [1, 1]} : vector<8x128xf32> to vector<8x32xf32>
    %659 = vector.extract_strided_slice %656 {offsets = [0, 64], sizes = [8, 32], strides = [1, 1]} : vector<8x128xf32> to vector<8x32xf32>
    %660 = vector.extract_strided_slice %655 {offsets = [0, 96], sizes = [8, 32], strides = [1, 1]} : vector<8x128xf32> to vector<8x32xf32>
    %661 = arith.negf %650 : vector<8x128xf32>
    %662 = math.exp %661 : vector<8x128xf32>
    %cst_313 = arith.constant 1.000000e+00 : f32
    %663 = vector.broadcast %cst_313 : f32 to vector<8x128xf32>
    %664 = arith.addf %663, %662 : vector<8x128xf32>
    %665 = arith.divf %663, %664 : vector<8x128xf32>
    %666 = math.tanh %650 : vector<8x128xf32>
    %667 = vector.extract_strided_slice %665 {offsets = [0, 0], sizes = [8, 32], strides = [1, 1]} : vector<8x128xf32> to vector<8x32xf32>
    %668 = vector.extract_strided_slice %665 {offsets = [0, 32], sizes = [8, 32], strides = [1, 1]} : vector<8x128xf32> to vector<8x32xf32>
    %669 = vector.extract_strided_slice %666 {offsets = [0, 64], sizes = [8, 32], strides = [1, 1]} : vector<8x128xf32> to vector<8x32xf32>
    %670 = vector.extract_strided_slice %665 {offsets = [0, 96], sizes = [8, 32], strides = [1, 1]} : vector<8x128xf32> to vector<8x32xf32>
    %c0_314 = arith.constant 0 : index
    %c0_315 = arith.constant 0 : index
    %671 = vector.load %arg13[%c0_314, %c0_315] : memref<8x32xf32, #tpu.memory_space<vmem>>, vector<8x32xf32>
    %672 = arith.mulf %658, %671 : vector<8x32xf32>
    %673 = arith.mulf %657, %659 : vector<8x32xf32>
    %674 = arith.addf %672, %673 : vector<8x32xf32>
    %675 = math.tanh %674 : vector<8x32xf32>
    %676 = arith.mulf %660, %675 : vector<8x32xf32>
    %c0_316 = arith.constant 0 : index
    %c0_317 = arith.constant 0 : index
    %677 = vector.load %arg15[%c0_316, %c0_317] : memref<8x32xf32, #tpu.memory_space<vmem>>, vector<8x32xf32>
    %678 = arith.mulf %668, %677 : vector<8x32xf32>
    %679 = arith.mulf %667, %669 : vector<8x32xf32>
    %680 = arith.addf %678, %679 : vector<8x32xf32>
    %681 = math.tanh %680 : vector<8x32xf32>
    %682 = arith.mulf %670, %681 : vector<8x32xf32>
    %683 = arith.index_cast %635 : i32 to index
    %c0_318 = arith.constant 0 : index
    %684 = vector.load %arg3[%683, %c0_318] : memref<64x1xf32, #tpu.memory_space<vmem>>, vector<8x1xf32>
    %685 = arith.index_cast %638 : i32 to index
    %c0_319 = arith.constant 0 : index
    %686 = vector.load %arg4[%685, %c0_319] : memref<64x1xf32, #tpu.memory_space<vmem>>, vector<8x1xf32>
    %cst_320 = arith.constant 0.000000e+00 : f32
    %687 = vector.broadcast %cst_320 : f32 to vector<8x1xf32>
    %688 = arith.cmpf ogt, %684, %687 : vector<8x1xf32>
    %cst_321 = arith.constant 0.000000e+00 : f32
    %689 = vector.broadcast %cst_321 : f32 to vector<8x1xf32>
    %690 = arith.cmpf ogt, %686, %689 : vector<8x1xf32>
    %c0_322 = arith.constant 0 : index
    %c0_323 = arith.constant 0 : index
    %691 = vector.load %arg13[%c0_322, %c0_323] : memref<8x32xf32, #tpu.memory_space<vmem>>, vector<8x32xf32>
    %692 = vector.shape_cast %688 : vector<8x1xi1> to vector<8x1xi1>
    %693 = vector.broadcast %692 : vector<8x1xi1> to vector<8x32xi1>
    %694 = arith.select %693, %674, %691 : vector<8x32xi1>, vector<8x32xf32>
    %c0_324 = arith.constant 0 : index
    %c0_325 = arith.constant 0 : index
    %695 = vector.load %arg13[%c0_324, %c0_325] : memref<8x32xf32, #tpu.memory_space<vmem>>, vector<8x32xf32>
    tpu.vector_store %arg13[%c0_324, %c0_325], %694 {strides = array<i32>} : memref<8x32xf32, #tpu.memory_space<vmem>>, vector<8x32xf32>,
    %c0_326 = arith.constant 0 : index
    %c0_327 = arith.constant 0 : index
    %696 = vector.load %arg12[%c0_326, %c0_327] : memref<8x32xf32, #tpu.memory_space<vmem>>, vector<8x32xf32>
    %697 = vector.shape_cast %688 : vector<8x1xi1> to vector<8x1xi1>
    %698 = vector.broadcast %697 : vector<8x1xi1> to vector<8x32xi1>
    %699 = arith.select %698, %676, %696 : vector<8x32xi1>, vector<8x32xf32>
    %c0_328 = arith.constant 0 : index
    %c0_329 = arith.constant 0 : index
    %700 = vector.load %arg12[%c0_328, %c0_329] : memref<8x32xf32, #tpu.memory_space<vmem>>, vector<8x32xf32>
    tpu.vector_store %arg12[%c0_328, %c0_329], %699 {strides = array<i32>} : memref<8x32xf32, #tpu.memory_space<vmem>>, vector<8x32xf32>,
    %c0_330 = arith.constant 0 : index
    %c0_331 = arith.constant 0 : index
    %701 = vector.load %arg15[%c0_330, %c0_331] : memref<8x32xf32, #tpu.memory_space<vmem>>, vector<8x32xf32>
    %702 = vector.shape_cast %690 : vector<8x1xi1> to vector<8x1xi1>
    %703 = vector.broadcast %702 : vector<8x1xi1> to vector<8x32xi1>
    %704 = arith.select %703, %680, %701 : vector<8x32xi1>, vector<8x32xf32>
    %c0_332 = arith.constant 0 : index
    %c0_333 = arith.constant 0 : index
    %705 = vector.load %arg15[%c0_332, %c0_333] : memref<8x32xf32, #tpu.memory_space<vmem>>, vector<8x32xf32>
    tpu.vector_store %arg15[%c0_332, %c0_333], %704 {strides = array<i32>} : memref<8x32xf32, #tpu.memory_space<vmem>>, vector<8x32xf32>,
    %c0_334 = arith.constant 0 : index
    %c0_335 = arith.constant 0 : index
    %706 = vector.load %arg14[%c0_334, %c0_335] : memref<8x32xf32, #tpu.memory_space<vmem>>, vector<8x32xf32>
    %707 = vector.shape_cast %690 : vector<8x1xi1> to vector<8x1xi1>
    %708 = vector.broadcast %707 : vector<8x1xi1> to vector<8x32xi1>
    %709 = arith.select %708, %682, %706 : vector<8x32xi1>, vector<8x32xf32>
    %c0_336 = arith.constant 0 : index
    %c0_337 = arith.constant 0 : index
    %710 = vector.load %arg14[%c0_336, %c0_337] : memref<8x32xf32, #tpu.memory_space<vmem>>, vector<8x32xf32>
    tpu.vector_store %arg14[%c0_336, %c0_337], %709 {strides = array<i32>} : memref<8x32xf32, #tpu.memory_space<vmem>>, vector<8x32xf32>,
    %711 = vector.broadcast %684 : vector<8x1xf32> to vector<8x32xf32>
    %712 = arith.mulf %676, %711 : vector<8x32xf32>
    %713 = arith.truncf %712 : vector<8x32xf32> to vector<8x32xbf16>
    %714 = arith.index_cast %635 : i32 to index
    %c0_338 = arith.constant 0 : index
    %715 = vector.load %arg8[%714, %c0_338] : memref<64x32xbf16, #tpu.memory_space<vmem>>, vector<8x32xbf16>
    tpu.vector_store %arg8[%714, %c0_338], %713 {strides = array<i32>} : memref<64x32xbf16, #tpu.memory_space<vmem>>, vector<8x32xbf16>,
    %716 = vector.broadcast %686 : vector<8x1xf32> to vector<8x32xf32>
    %717 = arith.mulf %682, %716 : vector<8x32xf32>
    %718 = arith.truncf %717 : vector<8x32xf32> to vector<8x32xbf16>
    %719 = arith.index_cast %638 : i32 to index
    %c0_339 = arith.constant 0 : index
    %720 = vector.load %arg9[%719, %c0_339] : memref<64x32xbf16, #tpu.memory_space<vmem>>, vector<8x32xbf16>
    tpu.vector_store %arg9[%719, %c0_339], %718 {strides = array<i32>} : memref<64x32xbf16, #tpu.memory_space<vmem>>, vector<8x32xbf16>,
    %c8_i32_340 = arith.constant 8 : i32
    return
  }
  func.func @transform_0(%arg0: i32) -> (i32, i32) {
    %c0_i32 = arith.constant 0 : i32
    %c0_i32_0 = arith.constant 0 : i32
    return %arg0, %c0_i32 : i32, i32
  }
  func.func @transform_1(%arg0: i32) -> (i32, i32) {
    %c0_i32 = arith.constant 0 : i32
    %0 = arith.subi %c0_i32, %arg0 : i32
    %c0_i32_0 = arith.constant 0 : i32
    %c0_i32_1 = arith.constant 0 : i32
    return %0, %c0_i32_0 : i32, i32
  }
  func.func @transform_2(%arg0: i32) -> (i32, i32) {
    %c0_i32 = arith.constant 0 : i32
    %c0_i32_0 = arith.constant 0 : i32
    return %arg0, %c0_i32 : i32, i32
  }
  func.func @transform_3(%arg0: i32) -> (i32, i32) {
    %c0_i32 = arith.constant 0 : i32
    %0 = arith.subi %c0_i32, %arg0 : i32
    %c0_i32_0 = arith.constant 0 : i32
    %c0_i32_1 = arith.constant 0 : i32
    return %0, %c0_i32_0 : i32, i32
  }
  func.func @transform_4(%arg0: i32) -> (i32, i32, i32, i32) {
    %c0_i32 = arith.constant 0 : i32
    %c0_i32_0 = arith.constant 0 : i32
    %c0_i32_1 = arith.constant 0 : i32
    %c0_i32_2 = arith.constant 0 : i32
    %c0_i32_3 = arith.constant 0 : i32
    return %c0_i32, %c0_i32_0, %c0_i32_1, %c0_i32_2 : i32, i32, i32, i32
  }
  func.func @transform_5(%arg0: i32) -> (i32, i32, i32) {
    %c0_i32 = arith.constant 0 : i32
    %c0_i32_0 = arith.constant 0 : i32
    %c0_i32_1 = arith.constant 0 : i32
    %c0_i32_2 = arith.constant 0 : i32
    return %c0_i32, %c0_i32_0, %c0_i32_1 : i32, i32, i32
  }
  func.func @transform_6(%arg0: i32) -> (i32, i32, i32) {
    %c0_i32 = arith.constant 0 : i32
    %c0_i32_0 = arith.constant 0 : i32
    %c0_i32_1 = arith.constant 0 : i32
    %c0_i32_2 = arith.constant 0 : i32
    return %c0_i32, %c0_i32_0, %c0_i32_1 : i32, i32, i32
  }
  func.func @transform_7(%arg0: i32) -> (i32, i32) {
    %c0_i32 = arith.constant 0 : i32
    %c0_i32_0 = arith.constant 0 : i32
    return %arg0, %c0_i32 : i32, i32
  }
  func.func @transform_8(%arg0: i32) -> (i32, i32) {
    %c0_i32 = arith.constant 0 : i32
    %0 = arith.subi %c0_i32, %arg0 : i32
    %c0_i32_0 = arith.constant 0 : i32
    %c0_i32_1 = arith.constant 0 : i32
    return %0, %c0_i32_0 : i32, i32
  }
}

</mosaic_0001>

<llo_original>
// kernel: tpu_custom_call.1
$region0: #{tpu_custom_call.1}
  #allocation0 [shape = 'u32[]', space=smem, size = 0x4, offset = 0x4, fixed_abs, tag = 'smem constant byte address 0x4 - core index']
  #allocation1 [shape = 'u32[72,128]{1,0:T(1,128)}', space=vmem, size = 0x9000, scoped, tag = 'internal scratch']
  #allocation2 [shape = 'f32[64,128]{1,0:T(8,128)}', space=vmem, size = 0x8000, scoped, tag = 'scratch operand']
  #allocation3 [shape = 'f32[64,128]{1,0:T(8,128)}', space=vmem, size = 0x8000, scoped, tag = 'scratch operand']
  #allocation4 [shape = 'f32[8,32]{1,0:T(8,128)}', space=vmem, size = 0x1000, scoped, tag = 'scratch operand']
  #allocation5 [shape = 'f32[8,32]{1,0:T(8,128)}', space=vmem, size = 0x1000, scoped, tag = 'scratch operand']
  #allocation6 [shape = 'f32[8,32]{1,0:T(8,128)}', space=vmem, size = 0x1000, scoped, tag = 'scratch operand']
  #allocation7 [shape = 'f32[8,32]{1,0:T(8,128)}', space=vmem, size = 0x1000, scoped, tag = 'scratch operand']
  %s0 = inlined_call_operand.vmem [shape: bf16[64,16], index: 0, kind: input, shape index: {}]
  %s1 = inlined_call_operand.vmem [shape: bf16[64,16], index: 1, kind: input, shape index: {}]
  %s2 = inlined_call_operand.vmem [shape: f32[64,1], index: 2, kind: input, shape index: {}]
  %s3 = inlined_call_operand.vmem [shape: f32[64,1], index: 3, kind: input, shape index: {}]
  %s4 = inlined_call_operand.vmem [shape: bf16[2,1,16,128], index: 4, kind: input, shape index: {}]
  %s5 = inlined_call_operand.vmem [shape: bf16[2,32,128], index: 5, kind: input, shape index: {}]
  %s6 = inlined_call_operand.vmem [shape: f32[2,1,128], index: 6, kind: input, shape index: {}]
  %s7 = inlined_call_operand.vmem [shape: bf16[64,32], index: 7, kind: output, shape index: {0}]
  %s8 = inlined_call_operand.vmem [shape: bf16[64,32], index: 8, kind: output, shape index: {1}]
  %9 = xla_tuple %s7, %s8
  %s10 = sld [smem:[#allocation0]]
  $region50: #{tpu_custom_call.1} parent=0
    _
  %s12 = ssub.s32 1, %s10
  %s13 = scalar_select 0, %s12, %s10
  // Predicated region
  $region2: #{tpu_custom_call.1} parent=0 // pred_check
    _
  $region3: #{tpu_custom_call.1} parent=0 // pred_check_branch
    %15 = sbr.rel (0) target = $region5
  $region4: #{tpu_custom_call.1} parent=0 // pred_region
    _
  $region5: #{tpu_custom_call.1} parent=0 // pred_fallthru
    _
  // Predicated region
  $region6: #{tpu_custom_call.1} parent=0 // pred_check
    _
  $region7: #{tpu_custom_call.1} parent=0 // pred_check_branch
    %17 = sbr.rel (0) target = $region9
  $region8: #{tpu_custom_call.1} parent=0 // pred_region
    %s18 = ssub.s32 0, 0
    %s19 = smul.u32 8, %s18
    %p20 = scmp.lt.s32.totalorder %s19, 7
    %s21 = scalar_select %p20, %s19, 7
    %s22 = smul.addr %s21, 4
    %s23 = scalar_lea.vmem %s1, %s22
    %s24 = ssub.s32 0, 0
    %s25 = smul.u32 8, %s24
  $region9: #{tpu_custom_call.1} parent=0 // pred_fallthru
    _
  // Predicated region
  $region10: #{tpu_custom_call.1} parent=0 // pred_check
    _
  $region11: #{tpu_custom_call.1} parent=0 // pred_check_branch
    %27 = sbr.rel (0) target = $region13
  $region12: #{tpu_custom_call.1} parent=0 // pred_region
    _
  $region13: #{tpu_custom_call.1} parent=0 // pred_fallthru
    _
  // Predicated region
  $region14: #{tpu_custom_call.1} parent=0 // pred_check
    _
  $region15: #{tpu_custom_call.1} parent=0 // pred_check_branch
    %29 = sbr.rel (0) target = $region17
  $region16: #{tpu_custom_call.1} parent=0 // pred_region
    %s30 = ssub.s32 0, 0
    %s31 = smul.u32 8, %s30
    %p32 = scmp.lt.s32.totalorder %s31, 7
    %s33 = scalar_select %p32, %s31, 7
    %s34 = smul.addr %s33, 8
    %s35 = scalar_lea.vmem %s3, %s34
    %s36 = ssub.s32 0, 0
    %s37 = smul.u32 8, %s36
  $region17: #{tpu_custom_call.1} parent=0 // pred_fallthru
    _
  // Predicated region
  $region18: #{tpu_custom_call.1} parent=0 // pred_check
    _
  $region19: #{tpu_custom_call.1} parent=0 // pred_check_branch
    %39 = sbr.rel (0) target = $region21
  $region20: #{tpu_custom_call.1} parent=0 // pred_region
    _
  $region21: #{tpu_custom_call.1} parent=0 // pred_fallthru
    _
  // Predicated region
  $region22: #{tpu_custom_call.1} parent=0 // pred_check
    _
  $region23: #{tpu_custom_call.1} parent=0 // pred_check_branch
    %41 = sbr.rel (0) target = $region25
  $region24: #{tpu_custom_call.1} parent=0 // pred_region
    _
  $region25: #{tpu_custom_call.1} parent=0 // pred_fallthru
    _
  // Predicated region
  $region26: #{tpu_custom_call.1} parent=0 // pred_check
    _
  $region27: #{tpu_custom_call.1} parent=0 // pred_check_branch
    %43 = sbr.rel (0) target = $region29
  $region28: #{tpu_custom_call.1} parent=0 // pred_region
    _
  $region29: #{tpu_custom_call.1} parent=0 // pred_fallthru
    _
  %s44 = ssub.s32 0, 0
  %s45 = smul.u32 8, %s44
  %p46 = scmp.lt.s32.totalorder %s45, 7
  %s47 = scalar_select %p46, %s45, 7
  %s48 = smul.addr %s47, 4
  %s49 = scalar_lea.vmem %s1, %s48
  %s50 = ssub.s32 0, 0
  %s51 = smul.u32 8, %s50
  %p52 = scmp.lt.s32.totalorder %s51, 7
  %s53 = scalar_select %p52, %s51, 7
  %s54 = smul.addr %s53, 8
  %s55 = scalar_lea.vmem %s3, %s54
  %s56 = ssub.s32 0, 0
  %s57 = smul.u32 8, %s56
  %p58 = scmp.lt.s32.totalorder %s57, 7
  %s59 = scalar_select %p58, %s57, 7
  %s60 = smul.addr %s59, 4
  %s61 = scalar_lea.vmem %s8, %s60
  %s62 = ssub.s32 0, 0
  %s63 = smul.u32 8, %s62
  %p64 = scmp.lt.s32.totalorder %s63, 7
  %s65 = scalar_select %p64, %s63, 7
  %s66 = smul.addr %s65, 4
  %s67 = scalar_lea.vmem %s1, %s66
  %s68 = ssub.s32 0, 0
  %s69 = smul.u32 8, %s68
  %s70 = ssub.s32 0, 0
  %s71 = smul.u32 8, %s70
  %p72 = scmp.lt.s32.totalorder %s71, 7
  %s73 = scalar_select %p72, %s71, 7
  %s74 = smul.addr %s73, 8
  %s75 = scalar_lea.vmem %s3, %s74
  %s76 = ssub.s32 0, 0
  %s77 = smul.u32 8, %s76
  %s78 = ssub.s32 0, 0
  %s79 = smul.u32 8, %s78
  %p80 = scmp.lt.s32.totalorder %s79, 7
  %s81 = scalar_select %p80, %s79, 7
  %s82 = smul.addr %s81, 4
  %s83 = scalar_lea.vmem %s8, %s82
  %s84 = ssub.s32 0, 0
  %s85 = smul.u32 8, %s84
  %p87 = scmp.eq.s32.totalorder 0, 0
  // Predicated region
  $region30: #{tpu_custom_call.1} parent=0 // pred_check
    %p88 = pneg %p87
  $region31: #{tpu_custom_call.1} parent=0 // pred_check_branch
    %90 = sbr.rel (%p88) target = $region33
  $region32: #{tpu_custom_call.1} parent=0 // pred_region
    %vm91 = vcmask 261120
    %92 = vst.msk [vmem:[#allocation4] sm:$0xff] %vm91, 0.0
    %93 = vst.msk [vmem:[#allocation5] sm:$0xff] %vm91, 0.0
    %94 = vst.msk [vmem:[#allocation6] sm:$0xff] %vm91, 0.0
    %95 = vst.msk [vmem:[#allocation7] sm:$0xff] %vm91, 0.0
  $region33: #{tpu_custom_call.1} parent=0 // pred_fallthru
    _
  %v96 = vld [vmem:[%s0] sm:$0xf]
  %v97 = vld [vmem:[%s0 + $0x4] sm:$0xf]
  %v98 = vld [vmem:[%s0 + $0x8] sm:$0xf]
  %v99 = vld [vmem:[%s0 + $0xc] sm:$0xf]
  %v100 = vld [vmem:[%s0 + $0x10] sm:$0xf]
  %v101 = vld [vmem:[%s0 + $0x14] sm:$0xf]
  %v102 = vld [vmem:[%s0 + $0x18] sm:$0xf]
  %v103 = vld [vmem:[%s0 + $0x1c] sm:$0xf]
  %v104 = vld [vmem:[%s4] sm:$0xf]
  %v105 = vld [vmem:[%s4 + $0x4] sm:$0xf]
  %v106 = vld [vmem:[%s67] sm:$0xf]
  %v107 = vld [vmem:[%s67 + $0x4] sm:$0xf]
  %v108 = vld [vmem:[%s67 + $0x8] sm:$0xf]
  %v109 = vld [vmem:[%s67 + $0xc] sm:$0xf]
  %v110 = vld [vmem:[%s67 + $0x10] sm:$0xf]
  %v111 = vld [vmem:[%s67 + $0x14] sm:$0xf]
  %v112 = vld [vmem:[%s67 + $0x18] sm:$0xf]
  %v113 = vld [vmem:[%s67 + $0x1c] sm:$0xf]
  %s114 = scalar_lea.vmem %s4, 8
  %v115 = vld [vmem:[%s114] sm:$0xf]
  %v116 = vld [vmem:[%s114 + $0x4] sm:$0xf]
  %v117 = vld [vmem:[%s6] sm:$0x1]
  %v119 = vperm.slane %v117, 0
  %v129 = vunpack.c.l.b16 %v96
  %v130 = vunpack.c.l.b16 %v97
  %v131 = vunpack.c.l.b16 %v98
  %v132 = vunpack.c.l.b16 %v99
  %v133 = vunpack.c.l.b16 %v100
  %v134 = vunpack.c.l.b16 %v101
  %v135 = vunpack.c.l.b16 %v102
  %v136 = vunpack.c.l.b16 %v103
  %v137 = vpack.c.b16 %v130, %v129
  %v138 = vpack.c.b16 %v132, %v131
  %v139 = vpack.c.b16 %v134, %v133
  %v140 = vpack.c.b16 %v136, %v135
  %v143 = vunpack.c.l.b16 %v104
  %v144 = vunpack.c.l.b16 %v105
  %v145 = vpack.c.b16 %v144, %v143
  %vm147 = vcmask 130048
  %v149 = vsel %vm147, %v137, 0
  %v152 = vsel %vm147, %v138, 0
  %v155 = vsel %vm147, %v139, 0
  %v158 = vsel %vm147, %v140, 0
  %160 = vmatpush.bf16.msra.mxu0 0
  %161 = vmatpush.bf16.msra.mxu0 0
  %162 = vmatpush.bf16.msra.mxu0 0
  %163 = vmatpush.bf16.msra.mxu0 0
  %164 = vmatpush.bf16.msra.mxu0 0
  %165 = vmatpush.bf16.msra.mxu0 0
  %166 = vmatpush.bf16.msra.mxu0 0
  %167 = vmatpush.bf16.msra.mxu0 %v145
  %168 = vmatmul.bf16.gmra.mxu0 %v149
  %v169 = vpop.f32.mrf.mxu0
  %v170 = vadd.f32 %v119, %v169
  %v171 = vpop.f32.mrf.mxu0
  %v172 = vadd.f32 %v119, %v171
  %173 = vmatmul.bf16.gmra.mxu0 %v152
  %v174 = vpop.f32.mrf.mxu0
  %v175 = vadd.f32 %v119, %v174
  %v176 = vpop.f32.mrf.mxu0
  %v177 = vadd.f32 %v119, %v176
  %178 = vmatmul.bf16.gmra.mxu0 %v155
  %v179 = vpop.f32.mrf.mxu0
  %v180 = vadd.f32 %v119, %v179
  %v181 = vpop.f32.mrf.mxu0
  %v182 = vadd.f32 %v119, %v181
  %183 = vmatmul.bf16.gmra.mxu0 %v158
  %v184 = vpop.f32.mrf.mxu0
  %v185 = vadd.f32 %v119, %v184
  %v186 = vpop.f32.mrf.mxu0
  %v187 = vadd.f32 %v119, %v186
  %188 = vdwg.mxu0
  %189 = vst [vmem:[#allocation2] sm:$0xff] %v170
  %190 = vst [vmem:[#allocation2 + $0x8] sm:$0xff] %v172
  %191 = vst [vmem:[#allocation2 + $0x10] sm:$0xff] %v175
  %192 = vst [vmem:[#allocation2 + $0x18] sm:$0xff] %v177
  %193 = vst [vmem:[#allocation2 + $0x20] sm:$0xff] %v180
  %194 = vst [vmem:[#allocation2 + $0x28] sm:$0xff] %v182
  %195 = vst [vmem:[#allocation2 + $0x30] sm:$0xff] %v185
  %196 = vst [vmem:[#allocation2 + $0x38] sm:$0xff] %v187
  %s197 = scalar_lea.vmem %s6, 1
  %v198 = vld [vmem:[%s197] sm:$0x1]
  %v200 = vperm.slane %v198, 0
  %v210 = vunpack.c.l.b16 %v106
  %v211 = vunpack.c.l.b16 %v107
  %v212 = vunpack.c.l.b16 %v108
  %v213 = vunpack.c.l.b16 %v109
  %v214 = vunpack.c.l.b16 %v110
  %v215 = vunpack.c.l.b16 %v111
  %v216 = vunpack.c.l.b16 %v112
  %v217 = vunpack.c.l.b16 %v113
  %v218 = vpack.c.b16 %v211, %v210
  %v219 = vpack.c.b16 %v213, %v212
  %v220 = vpack.c.b16 %v215, %v214
  %v221 = vpack.c.b16 %v217, %v216
  %v224 = vunpack.c.l.b16 %v115
  %v225 = vunpack.c.l.b16 %v116
  %v226 = vpack.c.b16 %v225, %v224
  %v229 = vsel %vm147, %v218, 0
  %v232 = vsel %vm147, %v219, 0
  %v235 = vsel %vm147, %v220, 0
  %v238 = vsel %vm147, %v221, 0
  %240 = vmatpush.bf16.msra.mxu0 0
  %241 = vmatpush.bf16.msra.mxu0 0
  %242 = vmatpush.bf16.msra.mxu0 0
  %243 = vmatpush.bf16.msra.mxu0 0
  %244 = vmatpush.bf16.msra.mxu0 0
  %245 = vmatpush.bf16.msra.mxu0 0
  %246 = vmatpush.bf16.msra.mxu0 0
  %247 = vmatpush.bf16.msra.mxu0 %v226
  %248 = vmatmul.bf16.gmra.mxu0 %v229
  %v249 = vpop.f32.mrf.mxu0
  %v250 = vadd.f32 %v200, %v249
  %v251 = vpop.f32.mrf.mxu0
  %v252 = vadd.f32 %v200, %v251
  %253 = vmatmul.bf16.gmra.mxu0 %v232
  %v254 = vpop.f32.mrf.mxu0
  %v255 = vadd.f32 %v200, %v254
  %v256 = vpop.f32.mrf.mxu0
  %v257 = vadd.f32 %v200, %v256
  %258 = vmatmul.bf16.gmra.mxu0 %v235
  %v259 = vpop.f32.mrf.mxu0
  %v260 = vadd.f32 %v200, %v259
  %v261 = vpop.f32.mrf.mxu0
  %v262 = vadd.f32 %v200, %v261
  %263 = vmatmul.bf16.gmra.mxu0 %v238
  %v264 = vpop.f32.mrf.mxu0
  %v265 = vadd.f32 %v200, %v264
  %v266 = vpop.f32.mrf.mxu0
  %v267 = vadd.f32 %v200, %v266
  %268 = vdwg.mxu0
  %269 = vst [vmem:[#allocation3] sm:$0xff] %v250
  %270 = vst [vmem:[#allocation3 + $0x8] sm:$0xff] %v252
  %271 = vst [vmem:[#allocation3 + $0x10] sm:$0xff] %v255
  %272 = vst [vmem:[#allocation3 + $0x18] sm:$0xff] %v257
  %273 = vst [vmem:[#allocation3 + $0x20] sm:$0xff] %v260
  %274 = vst [vmem:[#allocation3 + $0x28] sm:$0xff] %v262
  %275 = vst [vmem:[#allocation3 + $0x30] sm:$0xff] %v265
  %276 = vst [vmem:[#allocation3 + $0x38] sm:$0xff] %v267
  %v277 = vld [vmem:[%s5] sm:$0xf]
  %v278 = vld [vmem:[%s5 + $0x4] sm:$0xf]
  %v279 = vld [vmem:[%s5 + $0x8] sm:$0xf]
  %v280 = vld [vmem:[%s5 + $0xc] sm:$0xf]
  %s281 = scalar_lea.vmem %s5, 16
  %v282 = vld [vmem:[%s281] sm:$0xf]
  %v283 = vld [vmem:[%s281 + $0x4] sm:$0xf]
  %v284 = vld [vmem:[%s281 + $0x8] sm:$0xf]
  %v285 = vld [vmem:[%s281 + $0xc] sm:$0xf]
  %v286 = vld [vmem:[#allocation2] sm:$0xff]
  %v287 = vld [vmem:[#allocation4] sm:$0xff]
  %v288 = vpack.c.bf16 %v287, %v287
  %v293 = vunpack.c.l.b16 %v277
  %v294 = vunpack.c.l.b16 %v278
  %v295 = vunpack.c.l.b16 %v279
  %v296 = vunpack.c.l.b16 %v280
  %v297 = vpack.c.b16 %v294, %v293
  %v298 = vpack.c.b16 %v296, %v295
  %vm301 = vcmask 261120
  %v303 = vsel %vm301, %v288, 0
  %305 = vmatpush.bf16.msra.mxu0 0
  %306 = vmatpush.bf16.msra.mxu0 0
  %307 = vmatpush.bf16.msra.mxu0 0
  %308 = vmatpush.bf16.msra.mxu0 0
  %309 = vmatpush.bf16.msra.mxu0 0
  %310 = vmatpush.bf16.msra.mxu0 0
  %311 = vmatpush.bf16.msra.mxu0 %v298
  %312 = vmatpush.bf16.msra.mxu0 %v297
  %313 = vmatmul.bf16.gmra.mxu0 %v303
  %v314 = vpop.f32.mrf.mxu0
  %v315 = vadd.f32 0.0, %v314
  %v316 = vpop.f32.mrf.mxu0
  %317 = vdwg.mxu0
  %v318 = vadd.f32 %v286, %v315
  %s319 = scalar_lea.vmem [#allocation3], 56
  %v320 = vld [vmem:[%s319] sm:$0xff]
  %v321 = vld [vmem:[#allocation6] sm:$0xff]
  %v322 = vpack.c.bf16 %v321, %v321
  %v327 = vunpack.c.l.b16 %v282
  %v328 = vunpack.c.l.b16 %v283
  %v329 = vunpack.c.l.b16 %v284
  %v330 = vunpack.c.l.b16 %v285
  %v331 = vpack.c.b16 %v328, %v327
  %v332 = vpack.c.b16 %v330, %v329
  %v336 = vsel %vm301, %v322, 0
  %338 = vmatpush.bf16.msra.mxu0 0
  %339 = vmatpush.bf16.msra.mxu0 0
  %340 = vmatpush.bf16.msra.mxu0 0
  %341 = vmatpush.bf16.msra.mxu0 0
  %342 = vmatpush.bf16.msra.mxu0 0
  %343 = vmatpush.bf16.msra.mxu0 0
  %344 = vmatpush.bf16.msra.mxu0 %v332
  %345 = vmatpush.bf16.msra.mxu0 %v331
  %346 = vmatmul.bf16.gmra.mxu0 %v336
  %v347 = vpop.f32.mrf.mxu0
  %v348 = vadd.f32 0.0, %v347
  %v349 = vpop.f32.mrf.mxu0
  %350 = vdwg.mxu0
  %v351 = vadd.f32 %v320, %v348
  %v352 = vxor.u32 %v318, 2147483648
  %v353 = vmul.f32 %v352, 1.442695
  %v354 = vpow.pop %v353
  %v355 = vadd.f32 %v354, 1.0
  %v356 = vrcp.pop %v355
  %v357 = vmul.f32 %v355, %v356
  %v358 = vsub.f32 1.0, %v357
  %v359 = vmul.f32 %v356, %v358
  %v360 = vadd.f32 %v356, %v359
  %vm361 = vweird.f32 %v355
  %vm362 = vweird.f32 %v356
  %vm363 = vmor %vm361, %vm362
  %v364 = vsel %vm363, %v356, %v360
  %v365 = vand.u32 2147483647, %v355
  %vm366 = vcmp.eq.f32.partialorder %v365, 8.507059e+37
  %v367 = vand.u32 %v355, 2147483648
  %v368 = vor.u32 1.1754944e-38, %v367
  %v369 = vsel %vm366, %v368, %v364
  %v370 = vmul.f32 1.0, %v369
  %v371 = vtanh.pop %v318
  %v372 = vxor.u32 %v351, 2147483648
  %v373 = vmul.f32 %v372, 1.442695
  %v374 = vpow.pop %v373
  %v375 = vadd.f32 %v374, 1.0
  %v376 = vrcp.pop %v375
  %v377 = vmul.f32 %v375, %v376
  %v378 = vsub.f32 1.0, %v377
  %v379 = vmul.f32 %v376, %v378
  %v380 = vadd.f32 %v376, %v379
  %vm381 = vweird.f32 %v375
  %vm382 = vweird.f32 %v376
  %vm383 = vmor %vm381, %vm382
  %v384 = vsel %vm383, %v376, %v380
  %v385 = vand.u32 2147483647, %v375
  %vm386 = vcmp.eq.f32.partialorder %v385, 8.507059e+37
  %v387 = vand.u32 %v375, 2147483648
  %v388 = vor.u32 1.1754944e-38, %v387
  %v389 = vsel %vm386, %v388, %v384
  %v390 = vmul.f32 1.0, %v389
  %v391 = vtanh.pop %v351
  %v392 = vld [vmem:[#allocation5] sm:$0xff]
  %394 = vrot.lane.b32.xlu0 %v392, 32
  %v395 = vpop.permute.xlu0 %394
  %v397 = vmul.f32 %v370, %v395
  %399 = vrot.lane.b32.xlu0 %v371, 64
  %v400 = vpop.permute.xlu0 %399
  %v402 = vmul.f32 %v370, %v400
  %404 = vrot.lane.b32.xlu0 %v402, 32
  %v405 = vpop.permute.xlu0 %404
  %v407 = vadd.f32 %v397, %v405
  %v408 = vtanh.pop %v407
  %410 = vrot.lane.b32.xlu0 %v408, 64
  %v411 = vpop.permute.xlu0 %410
  %v413 = vmul.f32 %v370, %v411
  %v414 = vld [vmem:[#allocation7] sm:$0xff]
  %416 = vrot.lane.b32.xlu0 %v414, 32
  %v417 = vpop.permute.xlu0 %416
  %v419 = vmul.f32 %v390, %v417
  %421 = vrot.lane.b32.xlu0 %v391, 64
  %v422 = vpop.permute.xlu0 %421
  %v424 = vmul.f32 %v390, %v422
  %426 = vrot.lane.b32.xlu0 %v424, 32
  %v427 = vpop.permute.xlu0 %426
  %v429 = vadd.f32 %v419, %v427
  %v430 = vtanh.pop %v429
  %432 = vrot.lane.b32.xlu0 %v430, 64
  %v433 = vpop.permute.xlu0 %432
  %v435 = vmul.f32 %v390, %v433
  %v436 = vld [vmem:[%s2] sm:$0xff]
  %s437 = scalar_lea.vmem %s75, 56
  %v438 = vld [vmem:[%s437] sm:$0xff]
  %vm439 = vcmp.gt.f32.partialorder %v436, 0.0
  %vm440 = vcmp.gt.f32.partialorder %v438, 0.0
  %v441 = vsel %vm439, 1, 0
  %442 = vset.pattern.permute.xlu0 0
  %443 = vperm.xlu0 %442, %v441
  %v444 = vpop.permute.xlu0 %443
  %vm445 = vcmp.eq.s32.totalorder %v444, 1
  %v446 = vsel %vm445, %v407, %v395
  %448 = vrot.lane.b32.xlu0 %v446, 96
  %v449 = vpop.permute.xlu0 %448
  %451 = vst.msk [vmem:[#allocation5] sm:$0xff] %vm301, %v449
  %v452 = vld [vmem:[#allocation4] sm:$0xff]
  %454 = vrot.lane.b32.xlu0 %v452, 96
  %v455 = vpop.permute.xlu0 %454
  %v457 = vsel %vm445, %v413, %v455
  %459 = vrot.lane.b32.xlu0 %v457, 32
  %v460 = vpop.permute.xlu0 %459
  %462 = vst.msk [vmem:[#allocation4] sm:$0xff] %vm301, %v460
  %v463 = vld [vmem:[#allocation7] sm:$0xff]
  %v464 = vsel %vm440, 1, 0
  %465 = vset.pattern.permute.xlu0 0
  %466 = vperm.xlu0 %465, %v464
  %v467 = vpop.permute.xlu0 %466
  %vm468 = vcmp.eq.s32.totalorder %v467, 1
  %470 = vrot.lane.b32.xlu0 %v463, 32
  %v471 = vpop.permute.xlu0 %470
  %v473 = vsel %vm468, %v429, %v471
  %475 = vrot.lane.b32.xlu0 %v473, 96
  %v476 = vpop.permute.xlu0 %475
  %478 = vst.msk [vmem:[#allocation7] sm:$0xff] %vm301, %v476
  %v479 = vld [vmem:[#allocation6] sm:$0xff]
  %481 = vrot.lane.b32.xlu0 %v479, 96
  %v482 = vpop.permute.xlu0 %481
  %v484 = vsel %vm468, %v435, %v482
  %486 = vrot.lane.b32.xlu0 %v484, 32
  %v487 = vpop.permute.xlu0 %486
  %489 = vst.msk [vmem:[#allocation6] sm:$0xff] %vm301, %v487
  %491 = vset.pattern.permute.xlu0 0
  %492 = vperm.xlu0 %491, %v436
  %v493 = vpop.permute.xlu0 %492
  %v495 = vmul.f32 %v413, %v493
  %v496 = vpack.c.bf16 %v495, %v495
  %498 = vrot.lane.b32.xlu0 %v496, 32
  %v499 = vpop.permute.xlu0 %498
  %vm501 = vcmask 257024
  %502 = vst.msk [vmem:[%s7] sm:$0xf] %vm501, %v499
  %504 = vset.pattern.permute.xlu0 0
  %505 = vperm.xlu0 %504, %v438
  %v506 = vpop.permute.xlu0 %505
  %v508 = vmul.f32 %v435, %v506
  %v509 = vpack.c.bf16 %v508, %v508
  %511 = vrot.lane.b32.xlu0 %v509, 32
  %v512 = vpop.permute.xlu0 %511
  %s514 = scalar_lea.vmem %s83, 28
  %515 = vst.msk [vmem:[%s514] sm:$0xf] %vm501, %v512
  %s516 = scalar_lea.vmem [#allocation2], 8
  %v517 = vld [vmem:[%s516] sm:$0xff]
  %v518 = vld [vmem:[#allocation4] sm:$0xff]
  %v519 = vpack.c.bf16 %v518, %v518
  %v521 = vsel %vm301, %v519, 0
  %523 = vmatpush.bf16.msra.mxu0 0
  %524 = vmatpush.bf16.msra.mxu0 0
  %525 = vmatpush.bf16.msra.mxu0 0
  %526 = vmatpush.bf16.msra.mxu0 0
  %527 = vmatpush.bf16.msra.mxu0 0
  %528 = vmatpush.bf16.msra.mxu0 0
  %529 = vmatpush.bf16.msra.mxu0 %v298
  %530 = vmatpush.bf16.msra.mxu0 %v297
  %531 = vmatmul.bf16.gmra.mxu0 %v521
  %v532 = vpop.f32.mrf.mxu0
  %v533 = vadd.f32 0.0, %v532
  %v534 = vpop.f32.mrf.mxu0
  %535 = vdwg.mxu0
  %v536 = vadd.f32 %v517, %v533
  %s537 = scalar_lea.vmem [#allocation3], 48
  %v538 = vld [vmem:[%s537] sm:$0xff]
  %v539 = vld [vmem:[#allocation6] sm:$0xff]
  %v540 = vpack.c.bf16 %v539, %v539
  %v542 = vsel %vm301, %v540, 0
  %544 = vmatpush.bf16.msra.mxu0 0
  %545 = vmatpush.bf16.msra.mxu0 0
  %546 = vmatpush.bf16.msra.mxu0 0
  %547 = vmatpush.bf16.msra.mxu0 0
  %548 = vmatpush.bf16.msra.mxu0 0
  %549 = vmatpush.bf16.msra.mxu0 0
  %550 = vmatpush.bf16.msra.mxu0 %v332
  %551 = vmatpush.bf16.msra.mxu0 %v331
  %552 = vmatmul.bf16.gmra.mxu0 %v542
  %v553 = vpop.f32.mrf.mxu0
  %v554 = vadd.f32 0.0, %v553
  %v555 = vpop.f32.mrf.mxu0
  %556 = vdwg.mxu0
  %v557 = vadd.f32 %v538, %v554
  %v558 = vxor.u32 %v536, 2147483648
  %v559 = vmul.f32 %v558, 1.442695
  %v560 = vpow.pop %v559
  %v561 = vadd.f32 %v560, 1.0
  %v562 = vrcp.pop %v561
  %v563 = vmul.f32 %v561, %v562
  %v564 = vsub.f32 1.0, %v563
  %v565 = vmul.f32 %v562, %v564
  %v566 = vadd.f32 %v562, %v565
  %vm567 = vweird.f32 %v561
  %vm568 = vweird.f32 %v562
  %vm569 = vmor %vm567, %vm568
  %v570 = vsel %vm569, %v562, %v566
  %v571 = vand.u32 2147483647, %v561
  %vm572 = vcmp.eq.f32.partialorder %v571, 8.507059e+37
  %v573 = vand.u32 %v561, 2147483648
  %v574 = vor.u32 1.1754944e-38, %v573
  %v575 = vsel %vm572, %v574, %v570
  %v576 = vmul.f32 1.0, %v575
  %v577 = vtanh.pop %v536
  %v578 = vxor.u32 %v557, 2147483648
  %v579 = vmul.f32 %v578, 1.442695
  %v580 = vpow.pop %v579
  %v581 = vadd.f32 %v580, 1.0
  %v582 = vrcp.pop %v581
  %v583 = vmul.f32 %v581, %v582
  %v584 = vsub.f32 1.0, %v583
  %v585 = vmul.f32 %v582, %v584
  %v586 = vadd.f32 %v582, %v585
  %vm587 = vweird.f32 %v581
  %vm588 = vweird.f32 %v582
  %vm589 = vmor %vm587, %vm588
  %v590 = vsel %vm589, %v582, %v586
  %v591 = vand.u32 2147483647, %v581
  %vm592 = vcmp.eq.f32.partialorder %v591, 8.507059e+37
  %v593 = vand.u32 %v581, 2147483648
  %v594 = vor.u32 1.1754944e-38, %v593
  %v595 = vsel %vm592, %v594, %v590
  %v596 = vmul.f32 1.0, %v595
  %v597 = vtanh.pop %v557
  %v598 = vld [vmem:[#allocation5] sm:$0xff]
  %600 = vrot.lane.b32.xlu0 %v598, 32
  %v601 = vpop.permute.xlu0 %600
  %v603 = vmul.f32 %v576, %v601
  %605 = vrot.lane.b32.xlu0 %v577, 64
  %v606 = vpop.permute.xlu0 %605
  %v608 = vmul.f32 %v576, %v606
  %610 = vrot.lane.b32.xlu0 %v608, 32
  %v611 = vpop.permute.xlu0 %610
  %v613 = vadd.f32 %v603, %v611
  %v614 = vtanh.pop %v613
  %616 = vrot.lane.b32.xlu0 %v614, 64
  %v617 = vpop.permute.xlu0 %616
  %v619 = vmul.f32 %v576, %v617
  %v620 = vld [vmem:[#allocation7] sm:$0xff]
  %622 = vrot.lane.b32.xlu0 %v620, 32
  %v623 = vpop.permute.xlu0 %622
  %v625 = vmul.f32 %v596, %v623
  %627 = vrot.lane.b32.xlu0 %v597, 64
  %v628 = vpop.permute.xlu0 %627
  %v630 = vmul.f32 %v596, %v628
  %632 = vrot.lane.b32.xlu0 %v630, 32
  %v633 = vpop.permute.xlu0 %632
  %v635 = vadd.f32 %v625, %v633
  %v636 = vtanh.pop %v635
  %638 = vrot.lane.b32.xlu0 %v636, 64
  %v639 = vpop.permute.xlu0 %638
  %v641 = vmul.f32 %v596, %v639
  %s642 = scalar_lea.vmem %s2, 8
  %v643 = vld [vmem:[%s642] sm:$0xff]
  %s644 = scalar_lea.vmem %s75, 48
  %v645 = vld [vmem:[%s644] sm:$0xff]
  %vm646 = vcmp.gt.f32.partialorder %v643, 0.0
  %vm647 = vcmp.gt.f32.partialorder %v645, 0.0
  %v648 = vsel %vm646, 1, 0
  %649 = vset.pattern.permute.xlu0 0
  %650 = vperm.xlu0 %649, %v648
  %v651 = vpop.permute.xlu0 %650
  %vm652 = vcmp.eq.s32.totalorder %v651, 1
  %v653 = vsel %vm652, %v613, %v601
  %655 = vrot.lane.b32.xlu0 %v653, 96
  %v656 = vpop.permute.xlu0 %655
  %658 = vst.msk [vmem:[#allocation5] sm:$0xff] %vm301, %v656
  %v659 = vld [vmem:[#allocation4] sm:$0xff]
  %661 = vrot.lane.b32.xlu0 %v659, 96
  %v662 = vpop.permute.xlu0 %661
  %v664 = vsel %vm652, %v619, %v662
  %666 = vrot.lane.b32.xlu0 %v664, 32
  %v667 = vpop.permute.xlu0 %666
  %669 = vst.msk [vmem:[#allocation4] sm:$0xff] %vm301, %v667
  %v670 = vld [vmem:[#allocation7] sm:$0xff]
  %v671 = vsel %vm647, 1, 0
  %672 = vset.pattern.permute.xlu0 0
  %673 = vperm.xlu0 %672, %v671
  %v674 = vpop.permute.xlu0 %673
  %vm675 = vcmp.eq.s32.totalorder %v674, 1
  %677 = vrot.lane.b32.xlu0 %v670, 32
  %v678 = vpop.permute.xlu0 %677
  %v680 = vsel %vm675, %v635, %v678
  %682 = vrot.lane.b32.xlu0 %v680, 96
  %v683 = vpop.permute.xlu0 %682
  %685 = vst.msk [vmem:[#allocation7] sm:$0xff] %vm301, %v683
  %v686 = vld [vmem:[#allocation6] sm:$0xff]
  %688 = vrot.lane.b32.xlu0 %v686, 96
  %v689 = vpop.permute.xlu0 %688
  %v691 = vsel %vm675, %v641, %v689
  %693 = vrot.lane.b32.xlu0 %v691, 32
  %v694 = vpop.permute.xlu0 %693
  %696 = vst.msk [vmem:[#allocation6] sm:$0xff] %vm301, %v694
  %698 = vset.pattern.permute.xlu0 0
  %699 = vperm.xlu0 %698, %v643
  %v700 = vpop.permute.xlu0 %699
  %v702 = vmul.f32 %v619, %v700
  %v703 = vpack.c.bf16 %v702, %v702
  %705 = vrot.lane.b32.xlu0 %v703, 32
  %v706 = vpop.permute.xlu0 %705
  %s708 = scalar_lea.vmem %s7, 4
  %709 = vst.msk [vmem:[%s708] sm:$0xf] %vm501, %v706
  %711 = vset.pattern.permute.xlu0 0
  %712 = vperm.xlu0 %711, %v645
  %v713 = vpop.permute.xlu0 %712
  %v715 = vmul.f32 %v641, %v713
  %v716 = vpack.c.bf16 %v715, %v715
  %718 = vrot.lane.b32.xlu0 %v716, 32
  %v719 = vpop.permute.xlu0 %718
  %s721 = scalar_lea.vmem %s83, 24
  %722 = vst.msk [vmem:[%s721] sm:$0xf] %vm501, %v719
  %s723 = scalar_lea.vmem [#allocation2], 16
  %v724 = vld [vmem:[%s723] sm:$0xff]
  %v725 = vld [vmem:[#allocation4] sm:$0xff]
  %v726 = vpack.c.bf16 %v725, %v725
  %v728 = vsel %vm301, %v726, 0
  %730 = vmatpush.bf16.msra.mxu0 0
  %731 = vmatpush.bf16.msra.mxu0 0
  %732 = vmatpush.bf16.msra.mxu0 0
  %733 = vmatpush.bf16.msra.mxu0 0
  %734 = vmatpush.bf16.msra.mxu0 0
  %735 = vmatpush.bf16.msra.mxu0 0
  %736 = vmatpush.bf16.msra.mxu0 %v298
  %737 = vmatpush.bf16.msra.mxu0 %v297
  %738 = vmatmul.bf16.gmra.mxu0 %v728
  %v739 = vpop.f32.mrf.mxu0
  %v740 = vadd.f32 0.0, %v739
  %v741 = vpop.f32.mrf.mxu0
  %742 = vdwg.mxu0
  %v743 = vadd.f32 %v724, %v740
  %s744 = scalar_lea.vmem [#allocation3], 40
  %v745 = vld [vmem:[%s744] sm:$0xff]
  %v746 = vld [vmem:[#allocation6] sm:$0xff]
  %v747 = vpack.c.bf16 %v746, %v746
  %v749 = vsel %vm301, %v747, 0
  %751 = vmatpush.bf16.msra.mxu0 0
  %752 = vmatpush.bf16.msra.mxu0 0
  %753 = vmatpush.bf16.msra.mxu0 0
  %754 = vmatpush.bf16.msra.mxu0 0
  %755 = vmatpush.bf16.msra.mxu0 0
  %756 = vmatpush.bf16.msra.mxu0 0
  %757 = vmatpush.bf16.msra.mxu0 %v332
  %758 = vmatpush.bf16.msra.mxu0 %v331
  %759 = vmatmul.bf16.gmra.mxu0 %v749
  %v760 = vpop.f32.mrf.mxu0
  %v761 = vadd.f32 0.0, %v760
  %v762 = vpop.f32.mrf.mxu0
  %763 = vdwg.mxu0
  %v764 = vadd.f32 %v745, %v761
  %v765 = vxor.u32 %v743, 2147483648
  %v766 = vmul.f32 %v765, 1.442695
  %v767 = vpow.pop %v766
  %v768 = vadd.f32 %v767, 1.0
  %v769 = vrcp.pop %v768
  %v770 = vmul.f32 %v768, %v769
  %v771 = vsub.f32 1.0, %v770
  %v772 = vmul.f32 %v769, %v771
  %v773 = vadd.f32 %v769, %v772
  %vm774 = vweird.f32 %v768
  %vm775 = vweird.f32 %v769
  %vm776 = vmor %vm774, %vm775
  %v777 = vsel %vm776, %v769, %v773
  %v778 = vand.u32 2147483647, %v768
  %vm779 = vcmp.eq.f32.partialorder %v778, 8.507059e+37
  %v780 = vand.u32 %v768, 2147483648
  %v781 = vor.u32 1.1754944e-38, %v780
  %v782 = vsel %vm779, %v781, %v777
  %v783 = vmul.f32 1.0, %v782
  %v784 = vtanh.pop %v743
  %v785 = vxor.u32 %v764, 2147483648
  %v786 = vmul.f32 %v785, 1.442695
  %v787 = vpow.pop %v786
  %v788 = vadd.f32 %v787, 1.0
  %v789 = vrcp.pop %v788
  %v790 = vmul.f32 %v788, %v789
  %v791 = vsub.f32 1.0, %v790
  %v792 = vmul.f32 %v789, %v791
  %v793 = vadd.f32 %v789, %v792
  %vm794 = vweird.f32 %v788
  %vm795 = vweird.f32 %v789
  %vm796 = vmor %vm794, %vm795
  %v797 = vsel %vm796, %v789, %v793
  %v798 = vand.u32 2147483647, %v788
  %vm799 = vcmp.eq.f32.partialorder %v798, 8.507059e+37
  %v800 = vand.u32 %v788, 2147483648
  %v801 = vor.u32 1.1754944e-38, %v800
  %v802 = vsel %vm799, %v801, %v797
  %v803 = vmul.f32 1.0, %v802
  %v804 = vtanh.pop %v764
  %v805 = vld [vmem:[#allocation5] sm:$0xff]
  %807 = vrot.lane.b32.xlu0 %v805, 32
  %v808 = vpop.permute.xlu0 %807
  %v810 = vmul.f32 %v783, %v808
  %812 = vrot.lane.b32.xlu0 %v784, 64
  %v813 = vpop.permute.xlu0 %812
  %v815 = vmul.f32 %v783, %v813
  %817 = vrot.lane.b32.xlu0 %v815, 32
  %v818 = vpop.permute.xlu0 %817
  %v820 = vadd.f32 %v810, %v818
  %v821 = vtanh.pop %v820
  %823 = vrot.lane.b32.xlu0 %v821, 64
  %v824 = vpop.permute.xlu0 %823
  %v826 = vmul.f32 %v783, %v824
  %v827 = vld [vmem:[#allocation7] sm:$0xff]
  %829 = vrot.lane.b32.xlu0 %v827, 32
  %v830 = vpop.permute.xlu0 %829
  %v832 = vmul.f32 %v803, %v830
  %834 = vrot.lane.b32.xlu0 %v804, 64
  %v835 = vpop.permute.xlu0 %834
  %v837 = vmul.f32 %v803, %v835
  %839 = vrot.lane.b32.xlu0 %v837, 32
  %v840 = vpop.permute.xlu0 %839
  %v842 = vadd.f32 %v832, %v840
  %v843 = vtanh.pop %v842
  %845 = vrot.lane.b32.xlu0 %v843, 64
  %v846 = vpop.permute.xlu0 %845
  %v848 = vmul.f32 %v803, %v846
  %s849 = scalar_lea.vmem %s2, 16
  %v850 = vld [vmem:[%s849] sm:$0xff]
  %s851 = scalar_lea.vmem %s75, 40
  %v852 = vld [vmem:[%s851] sm:$0xff]
  %vm853 = vcmp.gt.f32.partialorder %v850, 0.0
  %vm854 = vcmp.gt.f32.partialorder %v852, 0.0
  %v855 = vsel %vm853, 1, 0
  %856 = vset.pattern.permute.xlu0 0
  %857 = vperm.xlu0 %856, %v855
  %v858 = vpop.permute.xlu0 %857
  %vm859 = vcmp.eq.s32.totalorder %v858, 1
  %v860 = vsel %vm859, %v820, %v808
  %862 = vrot.lane.b32.xlu0 %v860, 96
  %v863 = vpop.permute.xlu0 %862
  %865 = vst.msk [vmem:[#allocation5] sm:$0xff] %vm301, %v863
  %v866 = vld [vmem:[#allocation4] sm:$0xff]
  %868 = vrot.lane.b32.xlu0 %v866, 96
  %v869 = vpop.permute.xlu0 %868
  %v871 = vsel %vm859, %v826, %v869
  %873 = vrot.lane.b32.xlu0 %v871, 32
  %v874 = vpop.permute.xlu0 %873
  %876 = vst.msk [vmem:[#allocation4] sm:$0xff] %vm301, %v874
  %v877 = vld [vmem:[#allocation7] sm:$0xff]
  %v878 = vsel %vm854, 1, 0
  %879 = vset.pattern.permute.xlu0 0
  %880 = vperm.xlu0 %879, %v878
  %v881 = vpop.permute.xlu0 %880
  %vm882 = vcmp.eq.s32.totalorder %v881, 1
  %884 = vrot.lane.b32.xlu0 %v877, 32
  %v885 = vpop.permute.xlu0 %884
  %v887 = vsel %vm882, %v842, %v885
  %889 = vrot.lane.b32.xlu0 %v887, 96
  %v890 = vpop.permute.xlu0 %889
  %892 = vst.msk [vmem:[#allocation7] sm:$0xff] %vm301, %v890
  %v893 = vld [vmem:[#allocation6] sm:$0xff]
  %895 = vrot.lane.b32.xlu0 %v893, 96
  %v896 = vpop.permute.xlu0 %895
  %v898 = vsel %vm882, %v848, %v896
  %900 = vrot.lane.b32.xlu0 %v898, 32
  %v901 = vpop.permute.xlu0 %900
  %903 = vst.msk [vmem:[#allocation6] sm:$0xff] %vm301, %v901
  %905 = vset.pattern.permute.xlu0 0
  %906 = vperm.xlu0 %905, %v850
  %v907 = vpop.permute.xlu0 %906
  %v909 = vmul.f32 %v826, %v907
  %v910 = vpack.c.bf16 %v909, %v909
  %912 = vrot.lane.b32.xlu0 %v910, 32
  %v913 = vpop.permute.xlu0 %912
  %s915 = scalar_lea.vmem %s7, 8
  %916 = vst.msk [vmem:[%s915] sm:$0xf] %vm501, %v913
  %918 = vset.pattern.permute.xlu0 0
  %919 = vperm.xlu0 %918, %v852
  %v920 = vpop.permute.xlu0 %919
  %v922 = vmul.f32 %v848, %v920
  %v923 = vpack.c.bf16 %v922, %v922
  %925 = vrot.lane.b32.xlu0 %v923, 32
  %v926 = vpop.permute.xlu0 %925
  %s928 = scalar_lea.vmem %s83, 20
  %929 = vst.msk [vmem:[%s928] sm:$0xf] %vm501, %v926
  %s930 = scalar_lea.vmem [#allocation2], 24
  %v931 = vld [vmem:[%s930] sm:$0xff]
  %v932 = vld [vmem:[#allocation4] sm:$0xff]
  %v933 = vpack.c.bf16 %v932, %v932
  %v935 = vsel %vm301, %v933, 0
  %937 = vmatpush.bf16.msra.mxu0 0
  %938 = vmatpush.bf16.msra.mxu0 0
  %939 = vmatpush.bf16.msra.mxu0 0
  %940 = vmatpush.bf16.msra.mxu0 0
  %941 = vmatpush.bf16.msra.mxu0 0
  %942 = vmatpush.bf16.msra.mxu0 0
  %943 = vmatpush.bf16.msra.mxu0 %v298
  %944 = vmatpush.bf16.msra.mxu0 %v297
  %945 = vmatmul.bf16.gmra.mxu0 %v935
  %v946 = vpop.f32.mrf.mxu0
  %v947 = vadd.f32 0.0, %v946
  %v948 = vpop.f32.mrf.mxu0
  %949 = vdwg.mxu0
  %v950 = vadd.f32 %v931, %v947
  %s951 = scalar_lea.vmem [#allocation3], 32
  %v952 = vld [vmem:[%s951] sm:$0xff]
  %v953 = vld [vmem:[#allocation6] sm:$0xff]
  %v954 = vpack.c.bf16 %v953, %v953
  %v956 = vsel %vm301, %v954, 0
  %958 = vmatpush.bf16.msra.mxu0 0
  %959 = vmatpush.bf16.msra.mxu0 0
  %960 = vmatpush.bf16.msra.mxu0 0
  %961 = vmatpush.bf16.msra.mxu0 0
  %962 = vmatpush.bf16.msra.mxu0 0
  %963 = vmatpush.bf16.msra.mxu0 0
  %964 = vmatpush.bf16.msra.mxu0 %v332
  %965 = vmatpush.bf16.msra.mxu0 %v331
  %966 = vmatmul.bf16.gmra.mxu0 %v956
  %v967 = vpop.f32.mrf.mxu0
  %v968 = vadd.f32 0.0, %v967
  %v969 = vpop.f32.mrf.mxu0
  %970 = vdwg.mxu0
  %v971 = vadd.f32 %v952, %v968
  %v972 = vxor.u32 %v950, 2147483648
  %v973 = vmul.f32 %v972, 1.442695
  %v974 = vpow.pop %v973
  %v975 = vadd.f32 %v974, 1.0
  %v976 = vrcp.pop %v975
  %v977 = vmul.f32 %v975, %v976
  %v978 = vsub.f32 1.0, %v977
  %v979 = vmul.f32 %v976, %v978
  %v980 = vadd.f32 %v976, %v979
  %vm981 = vweird.f32 %v975
  %vm982 = vweird.f32 %v976
  %vm983 = vmor %vm981, %vm982
  %v984 = vsel %vm983, %v976, %v980
  %v985 = vand.u32 2147483647, %v975
  %vm986 = vcmp.eq.f32.partialorder %v985, 8.507059e+37
  %v987 = vand.u32 %v975, 2147483648
  %v988 = vor.u32 1.1754944e-38, %v987
  %v989 = vsel %vm986, %v988, %v984
  %v990 = vmul.f32 1.0, %v989
  %v991 = vtanh.pop %v950
  %v992 = vxor.u32 %v971, 2147483648
  %v993 = vmul.f32 %v992, 1.442695
  %v994 = vpow.pop %v993
  %v995 = vadd.f32 %v994, 1.0
  %v996 = vrcp.pop %v995
  %v997 = vmul.f32 %v995, %v996
  %v998 = vsub.f32 1.0, %v997
  %v999 = vmul.f32 %v996, %v998
  %v1000 = vadd.f32 %v996, %v999
  %vm1001 = vweird.f32 %v995
  %vm1002 = vweird.f32 %v996
  %vm1003 = vmor %vm1001, %vm1002
  %v1004 = vsel %vm1003, %v996, %v1000
  %v1005 = vand.u32 2147483647, %v995
  %vm1006 = vcmp.eq.f32.partialorder %v1005, 8.507059e+37
  %v1007 = vand.u32 %v995, 2147483648
  %v1008 = vor.u32 1.1754944e-38, %v1007
  %v1009 = vsel %vm1006, %v1008, %v1004
  %v1010 = vmul.f32 1.0, %v1009
  %v1011 = vtanh.pop %v971
  %v1012 = vld [vmem:[#allocation5] sm:$0xff]
  %1014 = vrot.lane.b32.xlu0 %v1012, 32
  %v1015 = vpop.permute.xlu0 %1014
  %v1017 = vmul.f32 %v990, %v1015
  %1019 = vrot.lane.b32.xlu0 %v991, 64
  %v1020 = vpop.permute.xlu0 %1019
  %v1022 = vmul.f32 %v990, %v1020
  %1024 = vrot.lane.b32.xlu0 %v1022, 32
  %v1025 = vpop.permute.xlu0 %1024
  %v1027 = vadd.f32 %v1017, %v1025
  %v1028 = vtanh.pop %v1027
  %1030 = vrot.lane.b32.xlu0 %v1028, 64
  %v1031 = vpop.permute.xlu0 %1030
  %v1033 = vmul.f32 %v990, %v1031
  %v1034 = vld [vmem:[#allocation7] sm:$0xff]
  %1036 = vrot.lane.b32.xlu0 %v1034, 32
  %v1037 = vpop.permute.xlu0 %1036
  %v1039 = vmul.f32 %v1010, %v1037
  %1041 = vrot.lane.b32.xlu0 %v1011, 64
  %v1042 = vpop.permute.xlu0 %1041
  %v1044 = vmul.f32 %v1010, %v1042
  %1046 = vrot.lane.b32.xlu0 %v1044, 32
  %v1047 = vpop.permute.xlu0 %1046
  %v1049 = vadd.f32 %v1039, %v1047
  %v1050 = vtanh.pop %v1049
  %1052 = vrot.lane.b32.xlu0 %v1050, 64
  %v1053 = vpop.permute.xlu0 %1052
  %v1055 = vmul.f32 %v1010, %v1053
  %s1056 = scalar_lea.vmem %s2, 24
  %v1057 = vld [vmem:[%s1056] sm:$0xff]
  %s1058 = scalar_lea.vmem %s75, 32
  %v1059 = vld [vmem:[%s1058] sm:$0xff]
  %vm1060 = vcmp.gt.f32.partialorder %v1057, 0.0
  %vm1061 = vcmp.gt.f32.partialorder %v1059, 0.0
  %v1062 = vsel %vm1060, 1, 0
  %1063 = vset.pattern.permute.xlu0 0
  %1064 = vperm.xlu0 %1063, %v1062
  %v1065 = vpop.permute.xlu0 %1064
  %vm1066 = vcmp.eq.s32.totalorder %v1065, 1
  %v1067 = vsel %vm1066, %v1027, %v1015
  %1069 = vrot.lane.b32.xlu0 %v1067, 96
  %v1070 = vpop.permute.xlu0 %1069
  %1072 = vst.msk [vmem:[#allocation5] sm:$0xff] %vm301, %v1070
  %v1073 = vld [vmem:[#allocation4] sm:$0xff]
  %1075 = vrot.lane.b32.xlu0 %v1073, 96
  %v1076 = vpop.permute.xlu0 %1075
  %v1078 = vsel %vm1066, %v1033, %v1076
  %1080 = vrot.lane.b32.xlu0 %v1078, 32
  %v1081 = vpop.permute.xlu0 %1080
  %1083 = vst.msk [vmem:[#allocation4] sm:$0xff] %vm301, %v1081
  %v1084 = vld [vmem:[#allocation7] sm:$0xff]
  %v1085 = vsel %vm1061, 1, 0
  %1086 = vset.pattern.permute.xlu0 0
  %1087 = vperm.xlu0 %1086, %v1085
  %v1088 = vpop.permute.xlu0 %1087
  %vm1089 = vcmp.eq.s32.totalorder %v1088, 1
  %1091 = vrot.lane.b32.xlu0 %v1084, 32
  %v1092 = vpop.permute.xlu0 %1091
  %v1094 = vsel %vm1089, %v1049, %v1092
  %1096 = vrot.lane.b32.xlu0 %v1094, 96
  %v1097 = vpop.permute.xlu0 %1096
  %1099 = vst.msk [vmem:[#allocation7] sm:$0xff] %vm301, %v1097
  %v1100 = vld [vmem:[#allocation6] sm:$0xff]
  %1102 = vrot.lane.b32.xlu0 %v1100, 96
  %v1103 = vpop.permute.xlu0 %1102
  %v1105 = vsel %vm1089, %v1055, %v1103
  %1107 = vrot.lane.b32.xlu0 %v1105, 32
  %v1108 = vpop.permute.xlu0 %1107
  %1110 = vst.msk [vmem:[#allocation6] sm:$0xff] %vm301, %v1108
  %1112 = vset.pattern.permute.xlu0 0
  %1113 = vperm.xlu0 %1112, %v1057
  %v1114 = vpop.permute.xlu0 %1113
  %v1116 = vmul.f32 %v1033, %v1114
  %v1117 = vpack.c.bf16 %v1116, %v1116
  %1119 = vrot.lane.b32.xlu0 %v1117, 32
  %v1120 = vpop.permute.xlu0 %1119
  %s1122 = scalar_lea.vmem %s7, 12
  %1123 = vst.msk [vmem:[%s1122] sm:$0xf] %vm501, %v1120
  %1125 = vset.pattern.permute.xlu0 0
  %1126 = vperm.xlu0 %1125, %v1059
  %v1127 = vpop.permute.xlu0 %1126
  %v1129 = vmul.f32 %v1055, %v1127
  %v1130 = vpack.c.bf16 %v1129, %v1129
  %1132 = vrot.lane.b32.xlu0 %v1130, 32
  %v1133 = vpop.permute.xlu0 %1132
  %s1135 = scalar_lea.vmem %s83, 16
  %1136 = vst.msk [vmem:[%s1135] sm:$0xf] %vm501, %v1133
  %s1137 = scalar_lea.vmem [#allocation2], 32
  %v1138 = vld [vmem:[%s1137] sm:$0xff]
  %v1139 = vld [vmem:[#allocation4] sm:$0xff]
  %v1140 = vpack.c.bf16 %v1139, %v1139
  %v1142 = vsel %vm301, %v1140, 0
  %1144 = vmatpush.bf16.msra.mxu0 0
  %1145 = vmatpush.bf16.msra.mxu0 0
  %1146 = vmatpush.bf16.msra.mxu0 0
  %1147 = vmatpush.bf16.msra.mxu0 0
  %1148 = vmatpush.bf16.msra.mxu0 0
  %1149 = vmatpush.bf16.msra.mxu0 0
  %1150 = vmatpush.bf16.msra.mxu0 %v298
  %1151 = vmatpush.bf16.msra.mxu0 %v297
  %1152 = vmatmul.bf16.gmra.mxu0 %v1142
  %v1153 = vpop.f32.mrf.mxu0
  %v1154 = vadd.f32 0.0, %v1153
  %v1155 = vpop.f32.mrf.mxu0
  %1156 = vdwg.mxu0
  %v1157 = vadd.f32 %v1138, %v1154
  %s1158 = scalar_lea.vmem [#allocation3], 24
  %v1159 = vld [vmem:[%s1158] sm:$0xff]
  %v1160 = vld [vmem:[#allocation6] sm:$0xff]
  %v1161 = vpack.c.bf16 %v1160, %v1160
  %v1163 = vsel %vm301, %v1161, 0
  %1165 = vmatpush.bf16.msra.mxu0 0
  %1166 = vmatpush.bf16.msra.mxu0 0
  %1167 = vmatpush.bf16.msra.mxu0 0
  %1168 = vmatpush.bf16.msra.mxu0 0
  %1169 = vmatpush.bf16.msra.mxu0 0
  %1170 = vmatpush.bf16.msra.mxu0 0
  %1171 = vmatpush.bf16.msra.mxu0 %v332
  %1172 = vmatpush.bf16.msra.mxu0 %v331
  %1173 = vmatmul.bf16.gmra.mxu0 %v1163
  %v1174 = vpop.f32.mrf.mxu0
  %v1175 = vadd.f32 0.0, %v1174
  %v1176 = vpop.f32.mrf.mxu0
  %1177 = vdwg.mxu0
  %v1178 = vadd.f32 %v1159, %v1175
  %v1179 = vxor.u32 %v1157, 2147483648
  %v1180 = vmul.f32 %v1179, 1.442695
  %v1181 = vpow.pop %v1180
  %v1182 = vadd.f32 %v1181, 1.0
  %v1183 = vrcp.pop %v1182
  %v1184 = vmul.f32 %v1182, %v1183
  %v1185 = vsub.f32 1.0, %v1184
  %v1186 = vmul.f32 %v1183, %v1185
  %v1187 = vadd.f32 %v1183, %v1186
  %vm1188 = vweird.f32 %v1182
  %vm1189 = vweird.f32 %v1183
  %vm1190 = vmor %vm1188, %vm1189
  %v1191 = vsel %vm1190, %v1183, %v1187
  %v1192 = vand.u32 2147483647, %v1182
  %vm1193 = vcmp.eq.f32.partialorder %v1192, 8.507059e+37
  %v1194 = vand.u32 %v1182, 2147483648
  %v1195 = vor.u32 1.1754944e-38, %v1194
  %v1196 = vsel %vm1193, %v1195, %v1191
  %v1197 = vmul.f32 1.0, %v1196
  %v1198 = vtanh.pop %v1157
  %v1199 = vxor.u32 %v1178, 2147483648
  %v1200 = vmul.f32 %v1199, 1.442695
  %v1201 = vpow.pop %v1200
  %v1202 = vadd.f32 %v1201, 1.0
  %v1203 = vrcp.pop %v1202
  %v1204 = vmul.f32 %v1202, %v1203
  %v1205 = vsub.f32 1.0, %v1204
  %v1206 = vmul.f32 %v1203, %v1205
  %v1207 = vadd.f32 %v1203, %v1206
  %vm1208 = vweird.f32 %v1202
  %vm1209 = vweird.f32 %v1203
  %vm1210 = vmor %vm1208, %vm1209
  %v1211 = vsel %vm1210, %v1203, %v1207
  %v1212 = vand.u32 2147483647, %v1202
  %vm1213 = vcmp.eq.f32.partialorder %v1212, 8.507059e+37
  %v1214 = vand.u32 %v1202, 2147483648
  %v1215 = vor.u32 1.1754944e-38, %v1214
  %v1216 = vsel %vm1213, %v1215, %v1211
  %v1217 = vmul.f32 1.0, %v1216
  %v1218 = vtanh.pop %v1178
  %v1219 = vld [vmem:[#allocation5] sm:$0xff]
  %1221 = vrot.lane.b32.xlu0 %v1219, 32
  %v1222 = vpop.permute.xlu0 %1221
  %v1224 = vmul.f32 %v1197, %v1222
  %1226 = vrot.lane.b32.xlu0 %v1198, 64
  %v1227 = vpop.permute.xlu0 %1226
  %v1229 = vmul.f32 %v1197, %v1227
  %1231 = vrot.lane.b32.xlu0 %v1229, 32
  %v1232 = vpop.permute.xlu0 %1231
  %v1234 = vadd.f32 %v1224, %v1232
  %v1235 = vtanh.pop %v1234
  %1237 = vrot.lane.b32.xlu0 %v1235, 64
  %v1238 = vpop.permute.xlu0 %1237
  %v1240 = vmul.f32 %v1197, %v1238
  %v1241 = vld [vmem:[#allocation7] sm:$0xff]
  %1243 = vrot.lane.b32.xlu0 %v1241, 32
  %v1244 = vpop.permute.xlu0 %1243
  %v1246 = vmul.f32 %v1217, %v1244
  %1248 = vrot.lane.b32.xlu0 %v1218, 64
  %v1249 = vpop.permute.xlu0 %1248
  %v1251 = vmul.f32 %v1217, %v1249
  %1253 = vrot.lane.b32.xlu0 %v1251, 32
  %v1254 = vpop.permute.xlu0 %1253
  %v1256 = vadd.f32 %v1246, %v1254
  %v1257 = vtanh.pop %v1256
  %1259 = vrot.lane.b32.xlu0 %v1257, 64
  %v1260 = vpop.permute.xlu0 %1259
  %v1262 = vmul.f32 %v1217, %v1260
  %s1263 = scalar_lea.vmem %s2, 32
  %v1264 = vld [vmem:[%s1263] sm:$0xff]
  %s1265 = scalar_lea.vmem %s75, 24
  %v1266 = vld [vmem:[%s1265] sm:$0xff]
  %vm1267 = vcmp.gt.f32.partialorder %v1264, 0.0
  %vm1268 = vcmp.gt.f32.partialorder %v1266, 0.0
  %v1269 = vsel %vm1267, 1, 0
  %1270 = vset.pattern.permute.xlu0 0
  %1271 = vperm.xlu0 %1270, %v1269
  %v1272 = vpop.permute.xlu0 %1271
  %vm1273 = vcmp.eq.s32.totalorder %v1272, 1
  %v1274 = vsel %vm1273, %v1234, %v1222
  %1276 = vrot.lane.b32.xlu0 %v1274, 96
  %v1277 = vpop.permute.xlu0 %1276
  %1279 = vst.msk [vmem:[#allocation5] sm:$0xff] %vm301, %v1277
  %v1280 = vld [vmem:[#allocation4] sm:$0xff]
  %1282 = vrot.lane.b32.xlu0 %v1280, 96
  %v1283 = vpop.permute.xlu0 %1282
  %v1285 = vsel %vm1273, %v1240, %v1283
  %1287 = vrot.lane.b32.xlu0 %v1285, 32
  %v1288 = vpop.permute.xlu0 %1287
  %1290 = vst.msk [vmem:[#allocation4] sm:$0xff] %vm301, %v1288
  %v1291 = vld [vmem:[#allocation7] sm:$0xff]
  %v1292 = vsel %vm1268, 1, 0
  %1293 = vset.pattern.permute.xlu0 0
  %1294 = vperm.xlu0 %1293, %v1292
  %v1295 = vpop.permute.xlu0 %1294
  %vm1296 = vcmp.eq.s32.totalorder %v1295, 1
  %1298 = vrot.lane.b32.xlu0 %v1291, 32
  %v1299 = vpop.permute.xlu0 %1298
  %v1301 = vsel %vm1296, %v1256, %v1299
  %1303 = vrot.lane.b32.xlu0 %v1301, 96
  %v1304 = vpop.permute.xlu0 %1303
  %1306 = vst.msk [vmem:[#allocation7] sm:$0xff] %vm301, %v1304
  %v1307 = vld [vmem:[#allocation6] sm:$0xff]
  %1309 = vrot.lane.b32.xlu0 %v1307, 96
  %v1310 = vpop.permute.xlu0 %1309
  %v1312 = vsel %vm1296, %v1262, %v1310
  %1314 = vrot.lane.b32.xlu0 %v1312, 32
  %v1315 = vpop.permute.xlu0 %1314
  %1317 = vst.msk [vmem:[#allocation6] sm:$0xff] %vm301, %v1315
  %1319 = vset.pattern.permute.xlu0 0
  %1320 = vperm.xlu0 %1319, %v1264
  %v1321 = vpop.permute.xlu0 %1320
  %v1323 = vmul.f32 %v1240, %v1321
  %v1324 = vpack.c.bf16 %v1323, %v1323
  %1326 = vrot.lane.b32.xlu0 %v1324, 32
  %v1327 = vpop.permute.xlu0 %1326
  %s1329 = scalar_lea.vmem %s7, 16
  %1330 = vst.msk [vmem:[%s1329] sm:$0xf] %vm501, %v1327
  %1332 = vset.pattern.permute.xlu0 0
  %1333 = vperm.xlu0 %1332, %v1266
  %v1334 = vpop.permute.xlu0 %1333
  %v1336 = vmul.f32 %v1262, %v1334
  %v1337 = vpack.c.bf16 %v1336, %v1336
  %1339 = vrot.lane.b32.xlu0 %v1337, 32
  %v1340 = vpop.permute.xlu0 %1339
  %s1342 = scalar_lea.vmem %s83, 12
  %1343 = vst.msk [vmem:[%s1342] sm:$0xf] %vm501, %v1340
  %s1344 = scalar_lea.vmem [#allocation2], 40
  %v1345 = vld [vmem:[%s1344] sm:$0xff]
  %v1346 = vld [vmem:[#allocation4] sm:$0xff]
  %v1347 = vpack.c.bf16 %v1346, %v1346
  %v1349 = vsel %vm301, %v1347, 0
  %1351 = vmatpush.bf16.msra.mxu0 0
  %1352 = vmatpush.bf16.msra.mxu0 0
  %1353 = vmatpush.bf16.msra.mxu0 0
  %1354 = vmatpush.bf16.msra.mxu0 0
  %1355 = vmatpush.bf16.msra.mxu0 0
  %1356 = vmatpush.bf16.msra.mxu0 0
  %1357 = vmatpush.bf16.msra.mxu0 %v298
  %1358 = vmatpush.bf16.msra.mxu0 %v297
  %1359 = vmatmul.bf16.gmra.mxu0 %v1349
  %v1360 = vpop.f32.mrf.mxu0
  %v1361 = vadd.f32 0.0, %v1360
  %v1362 = vpop.f32.mrf.mxu0
  %1363 = vdwg.mxu0
  %v1364 = vadd.f32 %v1345, %v1361
  %s1365 = scalar_lea.vmem [#allocation3], 16
  %v1366 = vld [vmem:[%s1365] sm:$0xff]
  %v1367 = vld [vmem:[#allocation6] sm:$0xff]
  %v1368 = vpack.c.bf16 %v1367, %v1367
  %v1370 = vsel %vm301, %v1368, 0
  %1372 = vmatpush.bf16.msra.mxu0 0
  %1373 = vmatpush.bf16.msra.mxu0 0
  %1374 = vmatpush.bf16.msra.mxu0 0
  %1375 = vmatpush.bf16.msra.mxu0 0
  %1376 = vmatpush.bf16.msra.mxu0 0
  %1377 = vmatpush.bf16.msra.mxu0 0
  %1378 = vmatpush.bf16.msra.mxu0 %v332
  %1379 = vmatpush.bf16.msra.mxu0 %v331
  %1380 = vmatmul.bf16.gmra.mxu0 %v1370
  %v1381 = vpop.f32.mrf.mxu0
  %v1382 = vadd.f32 0.0, %v1381
  %v1383 = vpop.f32.mrf.mxu0
  %1384 = vdwg.mxu0
  %v1385 = vadd.f32 %v1366, %v1382
  %v1386 = vxor.u32 %v1364, 2147483648
  %v1387 = vmul.f32 %v1386, 1.442695
  %v1388 = vpow.pop %v1387
  %v1389 = vadd.f32 %v1388, 1.0
  %v1390 = vrcp.pop %v1389
  %v1391 = vmul.f32 %v1389, %v1390
  %v1392 = vsub.f32 1.0, %v1391
  %v1393 = vmul.f32 %v1390, %v1392
  %v1394 = vadd.f32 %v1390, %v1393
  %vm1395 = vweird.f32 %v1389
  %vm1396 = vweird.f32 %v1390
  %vm1397 = vmor %vm1395, %vm1396
  %v1398 = vsel %vm1397, %v1390, %v1394
  %v1399 = vand.u32 2147483647, %v1389
  %vm1400 = vcmp.eq.f32.partialorder %v1399, 8.507059e+37
  %v1401 = vand.u32 %v1389, 2147483648
  %v1402 = vor.u32 1.1754944e-38, %v1401
  %v1403 = vsel %vm1400, %v1402, %v1398
  %v1404 = vmul.f32 1.0, %v1403
  %v1405 = vtanh.pop %v1364
  %v1406 = vxor.u32 %v1385, 2147483648
  %v1407 = vmul.f32 %v1406, 1.442695
  %v1408 = vpow.pop %v1407
  %v1409 = vadd.f32 %v1408, 1.0
  %v1410 = vrcp.pop %v1409
  %v1411 = vmul.f32 %v1409, %v1410
  %v1412 = vsub.f32 1.0, %v1411
  %v1413 = vmul.f32 %v1410, %v1412
  %v1414 = vadd.f32 %v1410, %v1413
  %vm1415 = vweird.f32 %v1409
  %vm1416 = vweird.f32 %v1410
  %vm1417 = vmor %vm1415, %vm1416
  %v1418 = vsel %vm1417, %v1410, %v1414
  %v1419 = vand.u32 2147483647, %v1409
  %vm1420 = vcmp.eq.f32.partialorder %v1419, 8.507059e+37
  %v1421 = vand.u32 %v1409, 2147483648
  %v1422 = vor.u32 1.1754944e-38, %v1421
  %v1423 = vsel %vm1420, %v1422, %v1418
  %v1424 = vmul.f32 1.0, %v1423
  %v1425 = vtanh.pop %v1385
  %v1426 = vld [vmem:[#allocation5] sm:$0xff]
  %1428 = vrot.lane.b32.xlu0 %v1426, 32
  %v1429 = vpop.permute.xlu0 %1428
  %v1431 = vmul.f32 %v1404, %v1429
  %1433 = vrot.lane.b32.xlu0 %v1405, 64
  %v1434 = vpop.permute.xlu0 %1433
  %v1436 = vmul.f32 %v1404, %v1434
  %1438 = vrot.lane.b32.xlu0 %v1436, 32
  %v1439 = vpop.permute.xlu0 %1438
  %v1441 = vadd.f32 %v1431, %v1439
  %v1442 = vtanh.pop %v1441
  %1444 = vrot.lane.b32.xlu0 %v1442, 64
  %v1445 = vpop.permute.xlu0 %1444
  %v1447 = vmul.f32 %v1404, %v1445
  %v1448 = vld [vmem:[#allocation7] sm:$0xff]
  %1450 = vrot.lane.b32.xlu0 %v1448, 32
  %v1451 = vpop.permute.xlu0 %1450
  %v1453 = vmul.f32 %v1424, %v1451
  %1455 = vrot.lane.b32.xlu0 %v1425, 64
  %v1456 = vpop.permute.xlu0 %1455
  %v1458 = vmul.f32 %v1424, %v1456
  %1460 = vrot.lane.b32.xlu0 %v1458, 32
  %v1461 = vpop.permute.xlu0 %1460
  %v1463 = vadd.f32 %v1453, %v1461
  %v1464 = vtanh.pop %v1463
  %1466 = vrot.lane.b32.xlu0 %v1464, 64
  %v1467 = vpop.permute.xlu0 %1466
  %v1469 = vmul.f32 %v1424, %v1467
  %s1470 = scalar_lea.vmem %s2, 40
  %v1471 = vld [vmem:[%s1470] sm:$0xff]
  %s1472 = scalar_lea.vmem %s75, 16
  %v1473 = vld [vmem:[%s1472] sm:$0xff]
  %vm1474 = vcmp.gt.f32.partialorder %v1471, 0.0
  %vm1475 = vcmp.gt.f32.partialorder %v1473, 0.0
  %v1476 = vsel %vm1474, 1, 0
  %1477 = vset.pattern.permute.xlu0 0
  %1478 = vperm.xlu0 %1477, %v1476
  %v1479 = vpop.permute.xlu0 %1478
  %vm1480 = vcmp.eq.s32.totalorder %v1479, 1
  %v1481 = vsel %vm1480, %v1441, %v1429
  %1483 = vrot.lane.b32.xlu0 %v1481, 96
  %v1484 = vpop.permute.xlu0 %1483
  %1486 = vst.msk [vmem:[#allocation5] sm:$0xff] %vm301, %v1484
  %v1487 = vld [vmem:[#allocation4] sm:$0xff]
  %1489 = vrot.lane.b32.xlu0 %v1487, 96
  %v1490 = vpop.permute.xlu0 %1489
  %v1492 = vsel %vm1480, %v1447, %v1490
  %1494 = vrot.lane.b32.xlu0 %v1492, 32
  %v1495 = vpop.permute.xlu0 %1494
  %1497 = vst.msk [vmem:[#allocation4] sm:$0xff] %vm301, %v1495
  %v1498 = vld [vmem:[#allocation7] sm:$0xff]
  %v1499 = vsel %vm1475, 1, 0
  %1500 = vset.pattern.permute.xlu0 0
  %1501 = vperm.xlu0 %1500, %v1499
  %v1502 = vpop.permute.xlu0 %1501
  %vm1503 = vcmp.eq.s32.totalorder %v1502, 1
  %1505 = vrot.lane.b32.xlu0 %v1498, 32
  %v1506 = vpop.permute.xlu0 %1505
  %v1508 = vsel %vm1503, %v1463, %v1506
  %1510 = vrot.lane.b32.xlu0 %v1508, 96
  %v1511 = vpop.permute.xlu0 %1510
  %1513 = vst.msk [vmem:[#allocation7] sm:$0xff] %vm301, %v1511
  %v1514 = vld [vmem:[#allocation6] sm:$0xff]
  %1516 = vrot.lane.b32.xlu0 %v1514, 96
  %v1517 = vpop.permute.xlu0 %1516
  %v1519 = vsel %vm1503, %v1469, %v1517
  %1521 = vrot.lane.b32.xlu0 %v1519, 32
  %v1522 = vpop.permute.xlu0 %1521
  %1524 = vst.msk [vmem:[#allocation6] sm:$0xff] %vm301, %v1522
  %1526 = vset.pattern.permute.xlu0 0
  %1527 = vperm.xlu0 %1526, %v1471
  %v1528 = vpop.permute.xlu0 %1527
  %v1530 = vmul.f32 %v1447, %v1528
  %v1531 = vpack.c.bf16 %v1530, %v1530
  %1533 = vrot.lane.b32.xlu0 %v1531, 32
  %v1534 = vpop.permute.xlu0 %1533
  %s1536 = scalar_lea.vmem %s7, 20
  %1537 = vst.msk [vmem:[%s1536] sm:$0xf] %vm501, %v1534
  %1539 = vset.pattern.permute.xlu0 0
  %1540 = vperm.xlu0 %1539, %v1473
  %v1541 = vpop.permute.xlu0 %1540
  %v1543 = vmul.f32 %v1469, %v1541
  %v1544 = vpack.c.bf16 %v1543, %v1543
  %1546 = vrot.lane.b32.xlu0 %v1544, 32
  %v1547 = vpop.permute.xlu0 %1546
  %s1549 = scalar_lea.vmem %s83, 8
  %1550 = vst.msk [vmem:[%s1549] sm:$0xf] %vm501, %v1547
  %s1551 = scalar_lea.vmem [#allocation2], 48
  %v1552 = vld [vmem:[%s1551] sm:$0xff]
  %v1553 = vld [vmem:[#allocation4] sm:$0xff]
  %v1554 = vpack.c.bf16 %v1553, %v1553
  %v1556 = vsel %vm301, %v1554, 0
  %1558 = vmatpush.bf16.msra.mxu0 0
  %1559 = vmatpush.bf16.msra.mxu0 0
  %1560 = vmatpush.bf16.msra.mxu0 0
  %1561 = vmatpush.bf16.msra.mxu0 0
  %1562 = vmatpush.bf16.msra.mxu0 0
  %1563 = vmatpush.bf16.msra.mxu0 0
  %1564 = vmatpush.bf16.msra.mxu0 %v298
  %1565 = vmatpush.bf16.msra.mxu0 %v297
  %1566 = vmatmul.bf16.gmra.mxu0 %v1556
  %v1567 = vpop.f32.mrf.mxu0
  %v1568 = vadd.f32 0.0, %v1567
  %v1569 = vpop.f32.mrf.mxu0
  %1570 = vdwg.mxu0
  %v1571 = vadd.f32 %v1552, %v1568
  %s1572 = scalar_lea.vmem [#allocation3], 8
  %v1573 = vld [vmem:[%s1572] sm:$0xff]
  %v1574 = vld [vmem:[#allocation6] sm:$0xff]
  %v1575 = vpack.c.bf16 %v1574, %v1574
  %v1577 = vsel %vm301, %v1575, 0
  %1579 = vmatpush.bf16.msra.mxu0 0
  %1580 = vmatpush.bf16.msra.mxu0 0
  %1581 = vmatpush.bf16.msra.mxu0 0
  %1582 = vmatpush.bf16.msra.mxu0 0
  %1583 = vmatpush.bf16.msra.mxu0 0
  %1584 = vmatpush.bf16.msra.mxu0 0
  %1585 = vmatpush.bf16.msra.mxu0 %v332
  %1586 = vmatpush.bf16.msra.mxu0 %v331
  %1587 = vmatmul.bf16.gmra.mxu0 %v1577
  %v1588 = vpop.f32.mrf.mxu0
  %v1589 = vadd.f32 0.0, %v1588
  %v1590 = vpop.f32.mrf.mxu0
  %1591 = vdwg.mxu0
  %v1592 = vadd.f32 %v1573, %v1589
  %v1593 = vxor.u32 %v1571, 2147483648
  %v1594 = vmul.f32 %v1593, 1.442695
  %v1595 = vpow.pop %v1594
  %v1596 = vadd.f32 %v1595, 1.0
  %v1597 = vrcp.pop %v1596
  %v1598 = vmul.f32 %v1596, %v1597
  %v1599 = vsub.f32 1.0, %v1598
  %v1600 = vmul.f32 %v1597, %v1599
  %v1601 = vadd.f32 %v1597, %v1600
  %vm1602 = vweird.f32 %v1596
  %vm1603 = vweird.f32 %v1597
  %vm1604 = vmor %vm1602, %vm1603
  %v1605 = vsel %vm1604, %v1597, %v1601
  %v1606 = vand.u32 2147483647, %v1596
  %vm1607 = vcmp.eq.f32.partialorder %v1606, 8.507059e+37
  %v1608 = vand.u32 %v1596, 2147483648
  %v1609 = vor.u32 1.1754944e-38, %v1608
  %v1610 = vsel %vm1607, %v1609, %v1605
  %v1611 = vmul.f32 1.0, %v1610
  %v1612 = vtanh.pop %v1571
  %v1613 = vxor.u32 %v1592, 2147483648
  %v1614 = vmul.f32 %v1613, 1.442695
  %v1615 = vpow.pop %v1614
  %v1616 = vadd.f32 %v1615, 1.0
  %v1617 = vrcp.pop %v1616
  %v1618 = vmul.f32 %v1616, %v1617
  %v1619 = vsub.f32 1.0, %v1618
  %v1620 = vmul.f32 %v1617, %v1619
  %v1621 = vadd.f32 %v1617, %v1620
  %vm1622 = vweird.f32 %v1616
  %vm1623 = vweird.f32 %v1617
  %vm1624 = vmor %vm1622, %vm1623
  %v1625 = vsel %vm1624, %v1617, %v1621
  %v1626 = vand.u32 2147483647, %v1616
  %vm1627 = vcmp.eq.f32.partialorder %v1626, 8.507059e+37
  %v1628 = vand.u32 %v1616, 2147483648
  %v1629 = vor.u32 1.1754944e-38, %v1628
  %v1630 = vsel %vm1627, %v1629, %v1625
  %v1631 = vmul.f32 1.0, %v1630
  %v1632 = vtanh.pop %v1592
  %v1633 = vld [vmem:[#allocation5] sm:$0xff]
  %1635 = vrot.lane.b32.xlu0 %v1633, 32
  %v1636 = vpop.permute.xlu0 %1635
  %v1638 = vmul.f32 %v1611, %v1636
  %1640 = vrot.lane.b32.xlu0 %v1612, 64
  %v1641 = vpop.permute.xlu0 %1640
  %v1643 = vmul.f32 %v1611, %v1641
  %1645 = vrot.lane.b32.xlu0 %v1643, 32
  %v1646 = vpop.permute.xlu0 %1645
  %v1648 = vadd.f32 %v1638, %v1646
  %v1649 = vtanh.pop %v1648
  %1651 = vrot.lane.b32.xlu0 %v1649, 64
  %v1652 = vpop.permute.xlu0 %1651
  %v1654 = vmul.f32 %v1611, %v1652
  %v1655 = vld [vmem:[#allocation7] sm:$0xff]
  %1657 = vrot.lane.b32.xlu0 %v1655, 32
  %v1658 = vpop.permute.xlu0 %1657
  %v1660 = vmul.f32 %v1631, %v1658
  %1662 = vrot.lane.b32.xlu0 %v1632, 64
  %v1663 = vpop.permute.xlu0 %1662
  %v1665 = vmul.f32 %v1631, %v1663
  %1667 = vrot.lane.b32.xlu0 %v1665, 32
  %v1668 = vpop.permute.xlu0 %1667
  %v1670 = vadd.f32 %v1660, %v1668
  %v1671 = vtanh.pop %v1670
  %1673 = vrot.lane.b32.xlu0 %v1671, 64
  %v1674 = vpop.permute.xlu0 %1673
  %v1676 = vmul.f32 %v1631, %v1674
  %s1677 = scalar_lea.vmem %s2, 48
  %v1678 = vld [vmem:[%s1677] sm:$0xff]
  %s1679 = scalar_lea.vmem %s75, 8
  %v1680 = vld [vmem:[%s1679] sm:$0xff]
  %vm1681 = vcmp.gt.f32.partialorder %v1678, 0.0
  %vm1682 = vcmp.gt.f32.partialorder %v1680, 0.0
  %v1683 = vsel %vm1681, 1, 0
  %1684 = vset.pattern.permute.xlu0 0
  %1685 = vperm.xlu0 %1684, %v1683
  %v1686 = vpop.permute.xlu0 %1685
  %vm1687 = vcmp.eq.s32.totalorder %v1686, 1
  %v1688 = vsel %vm1687, %v1648, %v1636
  %1690 = vrot.lane.b32.xlu0 %v1688, 96
  %v1691 = vpop.permute.xlu0 %1690
  %1693 = vst.msk [vmem:[#allocation5] sm:$0xff] %vm301, %v1691
  %v1694 = vld [vmem:[#allocation4] sm:$0xff]
  %1696 = vrot.lane.b32.xlu0 %v1694, 96
  %v1697 = vpop.permute.xlu0 %1696
  %v1699 = vsel %vm1687, %v1654, %v1697
  %1701 = vrot.lane.b32.xlu0 %v1699, 32
  %v1702 = vpop.permute.xlu0 %1701
  %1704 = vst.msk [vmem:[#allocation4] sm:$0xff] %vm301, %v1702
  %v1705 = vld [vmem:[#allocation7] sm:$0xff]
  %v1706 = vsel %vm1682, 1, 0
  %1707 = vset.pattern.permute.xlu0 0
  %1708 = vperm.xlu0 %1707, %v1706
  %v1709 = vpop.permute.xlu0 %1708
  %vm1710 = vcmp.eq.s32.totalorder %v1709, 1
  %1712 = vrot.lane.b32.xlu0 %v1705, 32
  %v1713 = vpop.permute.xlu0 %1712
  %v1715 = vsel %vm1710, %v1670, %v1713
  %1717 = vrot.lane.b32.xlu0 %v1715, 96
  %v1718 = vpop.permute.xlu0 %1717
  %1720 = vst.msk [vmem:[#allocation7] sm:$0xff] %vm301, %v1718
  %v1721 = vld [vmem:[#allocation6] sm:$0xff]
  %1723 = vrot.lane.b32.xlu0 %v1721, 96
  %v1724 = vpop.permute.xlu0 %1723
  %v1726 = vsel %vm1710, %v1676, %v1724
  %1728 = vrot.lane.b32.xlu0 %v1726, 32
  %v1729 = vpop.permute.xlu0 %1728
  %1731 = vst.msk [vmem:[#allocation6] sm:$0xff] %vm301, %v1729
  %1733 = vset.pattern.permute.xlu0 0
  %1734 = vperm.xlu0 %1733, %v1678
  %v1735 = vpop.permute.xlu0 %1734
  %v1737 = vmul.f32 %v1654, %v1735
  %v1738 = vpack.c.bf16 %v1737, %v1737
  %1740 = vrot.lane.b32.xlu0 %v1738, 32
  %v1741 = vpop.permute.xlu0 %1740
  %s1743 = scalar_lea.vmem %s7, 24
  %1744 = vst.msk [vmem:[%s1743] sm:$0xf] %vm501, %v1741
  %1746 = vset.pattern.permute.xlu0 0
  %1747 = vperm.xlu0 %1746, %v1680
  %v1748 = vpop.permute.xlu0 %1747
  %v1750 = vmul.f32 %v1676, %v1748
  %v1751 = vpack.c.bf16 %v1750, %v1750
  %1753 = vrot.lane.b32.xlu0 %v1751, 32
  %v1754 = vpop.permute.xlu0 %1753
  %s1756 = scalar_lea.vmem %s83, 4
  %1757 = vst.msk [vmem:[%s1756] sm:$0xf] %vm501, %v1754
  %s1758 = scalar_lea.vmem [#allocation2], 56
  %v1759 = vld [vmem:[%s1758] sm:$0xff]
  %v1760 = vld [vmem:[#allocation4] sm:$0xff]
  %v1761 = vpack.c.bf16 %v1760, %v1760
  %v1763 = vsel %vm301, %v1761, 0
  %1765 = vmatpush.bf16.msra.mxu0 0
  %1766 = vmatpush.bf16.msra.mxu0 0
  %1767 = vmatpush.bf16.msra.mxu0 0
  %1768 = vmatpush.bf16.msra.mxu0 0
  %1769 = vmatpush.bf16.msra.mxu0 0
  %1770 = vmatpush.bf16.msra.mxu0 0
  %1771 = vmatpush.bf16.msra.mxu0 %v298
  %1772 = vmatpush.bf16.msra.mxu0 %v297
  %1773 = vmatmul.bf16.gmra.mxu0 %v1763
  %v1774 = vpop.f32.mrf.mxu0
  %v1775 = vadd.f32 0.0, %v1774
  %v1776 = vpop.f32.mrf.mxu0
  %1777 = vdwg.mxu0
  %v1778 = vadd.f32 %v1759, %v1775
  %v1779 = vld [vmem:[#allocation3] sm:$0xff]
  %v1780 = vld [vmem:[#allocation6] sm:$0xff]
  %v1781 = vpack.c.bf16 %v1780, %v1780
  %v1783 = vsel %vm301, %v1781, 0
  %1785 = vmatpush.bf16.msra.mxu0 0
  %1786 = vmatpush.bf16.msra.mxu0 0
  %1787 = vmatpush.bf16.msra.mxu0 0
  %1788 = vmatpush.bf16.msra.mxu0 0
  %1789 = vmatpush.bf16.msra.mxu0 0
  %1790 = vmatpush.bf16.msra.mxu0 0
  %1791 = vmatpush.bf16.msra.mxu0 %v332
  %1792 = vmatpush.bf16.msra.mxu0 %v331
  %1793 = vmatmul.bf16.gmra.mxu0 %v1783
  %v1794 = vpop.f32.mrf.mxu0
  %v1795 = vadd.f32 0.0, %v1794
  %v1796 = vpop.f32.mrf.mxu0
  %1797 = vdwg.mxu0
  %v1798 = vadd.f32 %v1779, %v1795
  %v1799 = vxor.u32 %v1778, 2147483648
  %v1800 = vmul.f32 %v1799, 1.442695
  %v1801 = vpow.pop %v1800
  %v1802 = vadd.f32 %v1801, 1.0
  %v1803 = vrcp.pop %v1802
  %v1804 = vmul.f32 %v1802, %v1803
  %v1805 = vsub.f32 1.0, %v1804
  %v1806 = vmul.f32 %v1803, %v1805
  %v1807 = vadd.f32 %v1803, %v1806
  %vm1808 = vweird.f32 %v1802
  %vm1809 = vweird.f32 %v1803
  %vm1810 = vmor %vm1808, %vm1809
  %v1811 = vsel %vm1810, %v1803, %v1807
  %v1812 = vand.u32 2147483647, %v1802
  %vm1813 = vcmp.eq.f32.partialorder %v1812, 8.507059e+37
  %v1814 = vand.u32 %v1802, 2147483648
  %v1815 = vor.u32 1.1754944e-38, %v1814
  %v1816 = vsel %vm1813, %v1815, %v1811
  %v1817 = vmul.f32 1.0, %v1816
  %v1818 = vtanh.pop %v1778
  %v1819 = vxor.u32 %v1798, 2147483648
  %v1820 = vmul.f32 %v1819, 1.442695
  %v1821 = vpow.pop %v1820
  %v1822 = vadd.f32 %v1821, 1.0
  %v1823 = vrcp.pop %v1822
  %v1824 = vmul.f32 %v1822, %v1823
  %v1825 = vsub.f32 1.0, %v1824
  %v1826 = vmul.f32 %v1823, %v1825
  %v1827 = vadd.f32 %v1823, %v1826
  %vm1828 = vweird.f32 %v1822
  %vm1829 = vweird.f32 %v1823
  %vm1830 = vmor %vm1828, %vm1829
  %v1831 = vsel %vm1830, %v1823, %v1827
  %v1832 = vand.u32 2147483647, %v1822
  %vm1833 = vcmp.eq.f32.partialorder %v1832, 8.507059e+37
  %v1834 = vand.u32 %v1822, 2147483648
  %v1835 = vor.u32 1.1754944e-38, %v1834
  %v1836 = vsel %vm1833, %v1835, %v1831
  %v1837 = vmul.f32 1.0, %v1836
  %v1838 = vtanh.pop %v1798
  %v1839 = vld [vmem:[#allocation5] sm:$0xff]
  %1841 = vrot.lane.b32.xlu0 %v1839, 32
  %v1842 = vpop.permute.xlu0 %1841
  %v1844 = vmul.f32 %v1817, %v1842
  %1846 = vrot.lane.b32.xlu0 %v1818, 64
  %v1847 = vpop.permute.xlu0 %1846
  %v1849 = vmul.f32 %v1817, %v1847
  %1851 = vrot.lane.b32.xlu0 %v1849, 32
  %v1852 = vpop.permute.xlu0 %1851
  %v1854 = vadd.f32 %v1844, %v1852
  %v1855 = vtanh.pop %v1854
  %1857 = vrot.lane.b32.xlu0 %v1855, 64
  %v1858 = vpop.permute.xlu0 %1857
  %v1860 = vmul.f32 %v1817, %v1858
  %v1861 = vld [vmem:[#allocation7] sm:$0xff]
  %1863 = vrot.lane.b32.xlu0 %v1861, 32
  %v1864 = vpop.permute.xlu0 %1863
  %v1866 = vmul.f32 %v1837, %v1864
  %1868 = vrot.lane.b32.xlu0 %v1838, 64
  %v1869 = vpop.permute.xlu0 %1868
  %v1871 = vmul.f32 %v1837, %v1869
  %1873 = vrot.lane.b32.xlu0 %v1871, 32
  %v1874 = vpop.permute.xlu0 %1873
  %v1876 = vadd.f32 %v1866, %v1874
  %v1877 = vtanh.pop %v1876
  %1879 = vrot.lane.b32.xlu0 %v1877, 64
  %v1880 = vpop.permute.xlu0 %1879
  %v1882 = vmul.f32 %v1837, %v1880
  %s1883 = scalar_lea.vmem %s2, 56
  %v1884 = vld [vmem:[%s1883] sm:$0xff]
  %v1885 = vld [vmem:[%s75] sm:$0xff]
  %vm1886 = vcmp.gt.f32.partialorder %v1884, 0.0
  %vm1887 = vcmp.gt.f32.partialorder %v1885, 0.0
  %v1888 = vsel %vm1886, 1, 0
  %1889 = vset.pattern.permute.xlu0 0
  %1890 = vperm.xlu0 %1889, %v1888
  %v1891 = vpop.permute.xlu0 %1890
  %vm1892 = vcmp.eq.s32.totalorder %v1891, 1
  %v1893 = vsel %vm1892, %v1854, %v1842
  %1895 = vrot.lane.b32.xlu0 %v1893, 96
  %v1896 = vpop.permute.xlu0 %1895
  %1898 = vst.msk [vmem:[#allocation5] sm:$0xff] %vm301, %v1896
  %v1899 = vld [vmem:[#allocation4] sm:$0xff]
  %1901 = vrot.lane.b32.xlu0 %v1899, 96
  %v1902 = vpop.permute.xlu0 %1901
  %v1904 = vsel %vm1892, %v1860, %v1902
  %1906 = vrot.lane.b32.xlu0 %v1904, 32
  %v1907 = vpop.permute.xlu0 %1906
  %1909 = vst.msk [vmem:[#allocation4] sm:$0xff] %vm301, %v1907
  %v1910 = vld [vmem:[#allocation7] sm:$0xff]
  %v1911 = vsel %vm1887, 1, 0
  %1912 = vset.pattern.permute.xlu0 0
  %1913 = vperm.xlu0 %1912, %v1911
  %v1914 = vpop.permute.xlu0 %1913
  %vm1915 = vcmp.eq.s32.totalorder %v1914, 1
  %1917 = vrot.lane.b32.xlu0 %v1910, 32
  %v1918 = vpop.permute.xlu0 %1917
  %v1920 = vsel %vm1915, %v1876, %v1918
  %1922 = vrot.lane.b32.xlu0 %v1920, 96
  %v1923 = vpop.permute.xlu0 %1922
  %1925 = vst.msk [vmem:[#allocation7] sm:$0xff] %vm301, %v1923
  %v1926 = vld [vmem:[#allocation6] sm:$0xff]
  %1928 = vrot.lane.b32.xlu0 %v1926, 96
  %v1929 = vpop.permute.xlu0 %1928
  %v1931 = vsel %vm1915, %v1882, %v1929
  %1933 = vrot.lane.b32.xlu0 %v1931, 32
  %v1934 = vpop.permute.xlu0 %1933
  %1936 = vst.msk [vmem:[#allocation6] sm:$0xff] %vm301, %v1934
  %1938 = vset.pattern.permute.xlu0 0
  %1939 = vperm.xlu0 %1938, %v1884
  %v1940 = vpop.permute.xlu0 %1939
  %v1942 = vmul.f32 %v1860, %v1940
  %v1943 = vpack.c.bf16 %v1942, %v1942
  %1945 = vrot.lane.b32.xlu0 %v1943, 32
  %v1946 = vpop.permute.xlu0 %1945
  %s1948 = scalar_lea.vmem %s7, 28
  %1949 = vst.msk [vmem:[%s1948] sm:$0xf] %vm501, %v1946
  %1951 = vset.pattern.permute.xlu0 0
  %1952 = vperm.xlu0 %1951, %v1885
  %v1953 = vpop.permute.xlu0 %1952
  %v1955 = vmul.f32 %v1882, %v1953
  %v1956 = vpack.c.bf16 %v1955, %v1955
  %1958 = vrot.lane.b32.xlu0 %v1956, 32
  %v1959 = vpop.permute.xlu0 %1958
  %1961 = vst.msk [vmem:[%s83] sm:$0xf] %vm501, %v1959
  %s1962 = ssub.s32 0, 0
  %s1963 = smul.u32 8, %s1962
  %p1964 = scmp.lt.s32.totalorder %s1963, 7
  %s1965 = scalar_select %p1964, %s1963, 7
  %s1966 = smul.addr %s1965, 4
  %s1967 = scalar_lea.vmem %s8, %s1966
  // Predicated region
  $region34: #{tpu_custom_call.1} parent=0 // pred_check
    _
  $region35: #{tpu_custom_call.1} parent=0 // pred_check_branch
    %1969 = sbr.rel (0) target = $region37
  $region36: #{tpu_custom_call.1} parent=0 // pred_region
    _
  $region37: #{tpu_custom_call.1} parent=0 // pred_fallthru
    _
  // Predicated region
  $region38: #{tpu_custom_call.1} parent=0 // pred_check
    _
  $region39: #{tpu_custom_call.1} parent=0 // pred_check_branch
    %1971 = sbr.rel (0) target = $region41
  $region40: #{tpu_custom_call.1} parent=0 // pred_region
    %s1972 = ssub.s32 0, 0
    %s1973 = smul.u32 8, %s1972
  $region41: #{tpu_custom_call.1} parent=0 // pred_fallthru
    _
  // Predicated region
  $region42: #{tpu_custom_call.1} parent=0 // pred_check
    _
  $region43: #{tpu_custom_call.1} parent=0 // pred_check_branch
    %1975 = sbr.rel (0) target = $region45
  $region44: #{tpu_custom_call.1} parent=0 // pred_region
    _
  $region45: #{tpu_custom_call.1} parent=0 // pred_fallthru
    _
  // Predicated region
  $region46: #{tpu_custom_call.1} parent=0 // pred_check
    _
  $region47: #{tpu_custom_call.1} parent=0 // pred_check_branch
    %1977 = sbr.rel (0) target = $region49
  $region48: #{tpu_custom_call.1} parent=0 // pred_region
    %s1978 = ssub.s32 0, 0
    %s1979 = smul.u32 8, %s1978
    %p1980 = scmp.lt.s32.totalorder %s1979, 7
    %s1981 = scalar_select %p1980, %s1979, 7
    %s1982 = smul.addr %s1981, 4
    %s1983 = scalar_lea.vmem %s8, %s1982
  $region49: #{tpu_custom_call.1} parent=0 // pred_fallthru
    _

</llo_original>
